<compile_context>
chip_gen: v5e
topology: v5e:2x2
jax: 0.10.0
libtpu: 0.0.40
codegen_flags: <defaults>
</compile_context>

<pallas_src>
import math

import jax
import jax.numpy as jnp
from jax.experimental import pallas as pl
from jax.experimental.pallas import tpu as pltpu

SH_DEGREE = 0
NUM_COEFFS = 3 * (SH_DEGREE + 1) ** 2        # 3
OUT_FEATURES = NUM_COEFFS + 1 + 3 + 4        # 11  (sh | opacity | scale | rotation)
GN_EPS = 1e-5
INV_SQRT2 = 1.0 / math.sqrt(2.0)


def _round_up(x, m):
    return -(-x // m) * m


def gaussian_head_kernel(x_ref, w1_ref, b1_ref, w2_ref, b2_ref, out_ref):
    x = x_ref[...].astype(jnp.float32)                          # (TM, C)

    # CustomGroupNorm1d assumed == GroupNorm(num_groups=1) over channels (per point).
    # The affine (gamma/beta) is pre-folded into W1/b1 on the host.
    mean = jnp.mean(x, axis=-1, keepdims=True)
    var = jnp.mean((x - mean) ** 2, axis=-1, keepdims=True)
    xn = (x - mean) * jax.lax.rsqrt(var + GN_EPS)

    # feat2attr: Linear(C, C) -> GELU(exact erf) -> Linear(C, OUT)
    h = jnp.dot(xn, w1_ref[...], preferred_element_type=jnp.float32) + b1_ref[...]
    h = 0.5 * h * (1.0 + jax.lax.erf(h * INV_SQRT2))            # nn.GELU default (erf)
    a = jnp.dot(h, w2_ref[...], preferred_element_type=jnp.float32) + b2_ref[...]

    # Per-attribute activations applied via lane masks (avoids lane slicing/concat):
    #   [0:nc)        sh coefficients   -> identity
    #   [nc]          opacity (alpha)   -> sigmoid
    #   [nc+1:nc+4)   scale             -> relu   (scale_activation='relu', no pos-for-scale)
    #   [nc+4:nc+8)   rotation          -> L2 normalize (F.normalize eps=1e-12)
    # Lanes >= nc+8 (if the output is padded to 128) are left as-is and sliced off
    # in the wrapper; the rotation mask is bounded above so they never enter rot_sq.
    nc = NUM_COEFFS
    lane = jax.lax.broadcasted_iota(jnp.int32, a.shape, 1)
    is_alpha = lane == nc
    is_scale = (lane >= nc + 1) & (lane < nc + 4)
    is_rot = (lane >= nc + 4) & (lane < nc + 8)

    out = a
    out = jnp.where(is_alpha, jax.nn.sigmoid(a), out)
    out = jnp.where(is_scale, jnp.maximum(a, 0.0), out)
    rot_sq = jnp.where(is_rot, a * a, 0.0)
    # x / max(||x||, 1e-12)  ==  x * rsqrt(max(||x||^2, 1e-24))  (single EUP rsqrt)
    inv_norm = jax.lax.rsqrt(
        jnp.maximum(jnp.sum(rot_sq, axis=-1, keepdims=True), 1e-24))
    out = jnp.where(is_rot, a * inv_norm, out)

    out_ref[...] = out.astype(out_ref.dtype)


def gaussian_head_forward(positions, features, params, *, tm=None,
                          vmem_budget_bytes=40 << 20):
    """positions: (B, N, 3); features: (B, N, C). Returns Gaussian attributes."""
    B, N, C = features.shape
    rows = B * N

    # Lane-dense output (padded to 128) only when reads dominate (C >= 128);
    # for small C keep the exact 11-lane output and rely on a large row tile.
    out_w = 128 if C >= 128 else OUT_FEATURES

    # Native-dtype DMA; cast happens inside the kernel.
    x = features.reshape(rows, C)
    x_bytes = jnp.dtype(x.dtype).itemsize

    # Fold the GroupNorm affine into the first Linear:
    #   (xn*gamma + beta) @ W1 + b1 == xn @ (gamma[:,None]*W1) + (beta @ W1 + b1)
    gamma = params["gamma"].astype(jnp.float32)
    beta = params["beta"].astype(jnp.float32)
    w1_raw = params["w1"].astype(jnp.float32)            # (C, C)
    w1 = w1_raw * gamma[:, None]
    b1 = (params["b1"].astype(jnp.float32) + beta @ w1_raw).reshape(1, C)
    w2 = params["w2"].astype(jnp.float32)                # (C, OUT_FEATURES)
    b2 = params["b2"].astype(jnp.float32)
    if out_w != OUT_FEATURES:
        w2 = jnp.pad(w2, ((0, 0), (0, out_w - OUT_FEATURES)))
        b2 = jnp.pad(b2, (0, out_w - OUT_FEATURES))
    b2 = b2.reshape(1, out_w)

    # VMEM footprint estimate: double-buffered x tile + out tile + (worst case
    # double-buffered) weights + slack.
    weights_bytes = 2 * 4 * (C * C + C + C * out_w + out_w)

    def footprint(t):
        return 2 * t * C * x_bytes + 2 * t * out_w * 4 + weights_bytes + (1 << 20)

    if tm is None:
        tm = 16
        for cand in (2048, 1024, 512, 256, 128, 64, 32, 16):
            if footprint(cand) <= vmem_budget_bytes:
                tm = cand
                break
    # Don't pad tiny workloads up to a huge tile (keep tm a multiple of 16 so
    # bf16 inputs also satisfy the sublane tiling).
    tm = min(tm, _round_up(rows, 16))

    rows_p = _round_up(rows, tm)
    if rows_p != rows:
        x = jnp.pad(x, ((0, rows_p - rows), (0, 0)))

    vmem_limit = int(max(footprint(tm) + (8 << 20), 32 << 20))

    attrs = pl.pallas_call(
        gaussian_head_kernel,
        out_shape=jax.ShapeDtypeStruct((rows_p, out_w), jnp.float32),
        grid_spec=pltpu.PrefetchScalarGridSpec(
            num_scalar_prefetch=0,
            grid=(rows_p // tm,),
            in_specs=[
                pl.BlockSpec((tm, C), lambda i: (i, 0)),          # x tile
                pl.BlockSpec((C, C), lambda i: (0, 0)),           # W1 (affine folded)
                pl.BlockSpec((1, C), lambda i: (0, 0)),           # b1
                pl.BlockSpec((C, out_w), lambda i: (0, 0)),       # W2 (lane-padded)
                pl.BlockSpec((1, out_w), lambda i: (0, 0)),       # b2
            ],
            out_specs=pl.BlockSpec((tm, out_w), lambda i: (i, 0)),
        ),
        compiler_params=pltpu.CompilerParams(
            dimension_semantics=("parallel",),
            vmem_limit_bytes=vmem_limit,
        ),
    )(x, w1, b1, w2, b2)

    attrs = attrs[:rows, :OUT_FEATURES].reshape(B, N, OUT_FEATURES)
    coeffs = attrs[..., :NUM_COEFFS].reshape(B, N, (SH_DEGREE + 1) ** 2, 3)
    alphas = attrs[..., NUM_COEFFS:NUM_COEFFS + 1]
    scales = attrs[..., NUM_COEFFS + 1:NUM_COEFFS + 4]
    rotations = attrs[..., NUM_COEFFS + 4:NUM_COEFFS + 8]

    # TODO(synk): `render` (CUDA Gaussian rasterizer) and `distCUDA2` have no Pallas
    # equivalent; return the Gaussian attributes instead of rendered images.
    return positions, coeffs, alphas, scales, rotations


def _reference_forward(features, params):
    """Pure-JAX reference of the fused per-point math (for correctness check)."""
    x = features.astype(jnp.float32)
    mean = jnp.mean(x, axis=-1, keepdims=True)
    var = jnp.mean((x - mean) ** 2, axis=-1, keepdims=True)
    xn = (x - mean) * jax.lax.rsqrt(var + GN_EPS)
    xn = xn * params["gamma"] + params["beta"]
    h = xn @ params["w1"] + params["b1"]
    h = 0.5 * h * (1.0 + jax.lax.erf(h * INV_SQRT2))
    a = h @ params["w2"] + params["b2"]
    nc = NUM_COEFFS
    coeffs = a[..., :nc]
    alphas = jax.nn.sigmoid(a[..., nc:nc + 1])
    scales = jnp.maximum(a[..., nc + 1:nc + 4], 0.0)
    rot = a[..., nc + 4:nc + 8]
    rot = rot / jnp.maximum(jnp.linalg.norm(rot, axis=-1, keepdims=True), 1e-12)
    return coeffs, alphas, scales, rot


def _xavier_uniform(key, fan_in, fan_out, gain=1.0):
    bound = gain * math.sqrt(6.0 / (fan_in + fan_out))
    return jax.random.uniform(key, (fan_in, fan_out), jnp.float32, -bound, bound)


def init_params(key, in_features):
    # Deterministic synthetic init (xavier-uniform weights, zero biases, unit-norm affine).
    k1, k2 = jax.random.split(key)
    C, OUT = in_features, OUT_FEATURES
    return {
        "gamma": jnp.ones((C,), jnp.float32),
        "beta": jnp.zeros((C,), jnp.float32),
        "w1": _xavier_uniform(k1, C, C),
        "b1": jnp.zeros((C,), jnp.float32),
        "w2": _xavier_uniform(k2, C, OUT),          # sections share gain 1.0
        "b2": jnp.zeros((OUT,), jnp.float32),
    }


if __name__ == "__main__":
    B, N, C = 2, 128, 32   # small shapes; n_freqs=0 so no positional-encoding branch

    key = jax.random.PRNGKey(0)
    k_feat, k_pos, k_par = jax.random.split(key, 3)
    features = jax.random.normal(k_feat, (B, N, C), jnp.float32)
    positions = jax.random.normal(k_pos, (B, N, 3), jnp.float32)
    params = init_params(k_par, C)

    pos_out, coeffs, alphas, scales, rotations = gaussian_head_forward(
        positions, features, params)
    jax.block_until_ready((pos_out, coeffs, alphas, scales, rotations))

    # Shape / property checks.
    assert coeffs.shape == (B, N, (SH_DEGREE + 1) ** 2, 3)
    assert alphas.shape == (B, N, 1)
    assert scales.shape == (B, N, 3)
    assert rotations.shape == (B, N, 4)
    assert bool(jnp.all(jnp.isfinite(coeffs)))
    assert bool(jnp.all((alphas >= 0.0) & (alphas <= 1.0)))
    assert bool(jnp.all(scales >= 0.0))
    assert bool(jnp.allclose(jnp.linalg.norm(rotations, axis=-1), 1.0, atol=1e-5))

    # Numerical check against a pure-JAX reference (loose tol for MXU matmul precision).
    rc, ra, rs, rr = _reference_forward(features, params)
    assert bool(jnp.allclose(coeffs.reshape(B, N, -1), rc, atol=2e-2, rtol=2e-2))
    assert bool(jnp.allclose(alphas, ra, atol=2e-2, rtol=2e-2))
    assert bool(jnp.allclose(scales, rs, atol=2e-2, rtol=2e-2))
    assert bool(jnp.allclose(rotations, rr, atol=2e-2, rtol=2e-2))

    print("KERNEL_OK")
</pallas_src>

<mosaic_0001>
module attributes {stable_mosaic.version = 11 : i64} {
  func.func @gaussian_head_kernel(%arg0: i32, %arg1: memref<256x32xf32, #tpu.memory_space<vmem>>, %arg2: memref<32x32xf32, #tpu.memory_space<vmem>>, %arg3: memref<1x32xf32, #tpu.memory_space<vmem>>, %arg4: memref<32x11xf32, #tpu.memory_space<vmem>>, %arg5: memref<1x11xf32, #tpu.memory_space<vmem>>, %arg6: memref<256x11xf32, #tpu.memory_space<vmem>>) attributes {dimension_semantics = [#tpu.dimension_semantics<parallel>], iteration_bounds = array<i64: 1>, scalar_prefetch = 0 : i64, scratch_operands = 0 : i64, tpu.core_type = #tpu.core_type<tc>, window_params = [{transform_indices = @transform_0, window_bounds = array<i64: 256, 32>}, {pipeline_mode = #tpu.pipeline_mode<synchronous>, transform_indices = @transform_1, window_bounds = array<i64: 32, 32>}, {pipeline_mode = #tpu.pipeline_mode<synchronous>, transform_indices = @transform_2, window_bounds = array<i64: 1, 32>}, {pipeline_mode = #tpu.pipeline_mode<synchronous>, transform_indices = @transform_3, window_bounds = array<i64: 32, 11>}, {pipeline_mode = #tpu.pipeline_mode<synchronous>, transform_indices = @transform_4, window_bounds = array<i64: 1, 11>}, {transform_indices = @transform_5, window_bounds = array<i64: 256, 11>}]} {
    %c0 = arith.constant 0 : index
    %c0_0 = arith.constant 0 : index
    %0 = vector.load %arg1[%c0, %c0_0] : memref<256x32xf32, #tpu.memory_space<vmem>>, vector<256x32xf32>
    %cst = arith.constant dense<0.000000e+00> : vector<256xf32>
    %1 = vector.multi_reduction <add>, %0, %cst [1] : vector<256x32xf32> to vector<256xf32>
    %2 = vector.shape_cast %1 : vector<256xf32> to vector<256x1xf32>
    %cst_1 = arith.constant 3.200000e+01 : f32
    %3 = vector.broadcast %cst_1 : f32 to vector<256x1xf32>
    %4 = arith.divf %2, %3 : vector<256x1xf32>
    %5 = vector.broadcast %4 : vector<256x1xf32> to vector<256x32xf32>
    %6 = arith.subf %0, %5 : vector<256x32xf32>
    %7 = arith.mulf %6, %6 : vector<256x32xf32>
    %cst_2 = arith.constant dense<0.000000e+00> : vector<256xf32>
    %8 = vector.multi_reduction <add>, %7, %cst_2 [1] : vector<256x32xf32> to vector<256xf32>
    %9 = vector.shape_cast %8 : vector<256xf32> to vector<256x1xf32>
    %cst_3 = arith.constant 3.200000e+01 : f32
    %10 = vector.broadcast %cst_3 : f32 to vector<256x1xf32>
    %11 = arith.divf %9, %10 : vector<256x1xf32>
    %12 = vector.broadcast %4 : vector<256x1xf32> to vector<256x32xf32>
    %13 = arith.subf %0, %12 : vector<256x32xf32>
    %cst_4 = arith.constant 9.99999974E-6 : f32
    %14 = vector.broadcast %cst_4 : f32 to vector<256x1xf32>
    %15 = arith.addf %11, %14 : vector<256x1xf32>
    %16 = math.rsqrt %15 : vector<256x1xf32>
    %17 = vector.broadcast %16 : vector<256x1xf32> to vector<256x32xf32>
    %18 = arith.mulf %13, %17 : vector<256x32xf32>
    %c0_5 = arith.constant 0 : index
    %c0_6 = arith.constant 0 : index
    %19 = vector.load %arg2[%c0_5, %c0_6] : memref<32x32xf32, #tpu.memory_space<vmem>>, vector<32x32xf32>
    %cst_7 = arith.constant dense<0.000000e+00> : vector<256x32xf32>
    %20 = tpu.matmul %18, %19, %cst_7 {dimension_numbers = #tpu.dot_dimension_numbers<[1], [0], [0], [1], [0, 0, 1, 1], [], []>} : vector<256x32xf32>, vector<32x32xf32>, vector<256x32xf32> -> vector<256x32xf32>
    %c0_8 = arith.constant 0 : index
    %c0_9 = arith.constant 0 : index
    %21 = vector.load %arg3[%c0_8, %c0_9] : memref<1x32xf32, #tpu.memory_space<vmem>>, vector<1x32xf32>
    %22 = vector.broadcast %21 : vector<1x32xf32> to vector<256x32xf32>
    %23 = arith.addf %20, %22 : vector<256x32xf32>
    %cst_10 = arith.constant 5.000000e-01 : f32
    %24 = vector.broadcast %cst_10 : f32 to vector<256x32xf32>
    %25 = arith.mulf %24, %23 : vector<256x32xf32>
    %cst_11 = arith.constant 0.707106769 : f32
    %26 = vector.broadcast %cst_11 : f32 to vector<256x32xf32>
    %27 = arith.mulf %23, %26 : vector<256x32xf32>
    %28 = math.erf %27 : vector<256x32xf32>
    %cst_12 = arith.constant 1.000000e+00 : f32
    %29 = vector.broadcast %cst_12 : f32 to vector<256x32xf32>
    %30 = arith.addf %29, %28 : vector<256x32xf32>
    %31 = arith.mulf %25, %30 : vector<256x32xf32>
    %c0_13 = arith.constant 0 : index
    %c0_14 = arith.constant 0 : index
    %32 = vector.load %arg4[%c0_13, %c0_14] : memref<32x11xf32, #tpu.memory_space<vmem>>, vector<32x11xf32>
    %cst_15 = arith.constant dense<0.000000e+00> : vector<256x11xf32>
    %33 = tpu.matmul %31, %32, %cst_15 {dimension_numbers = #tpu.dot_dimension_numbers<[1], [0], [0], [1], [0, 0, 1, 1], [], []>} : vector<256x32xf32>, vector<32x11xf32>, vector<256x11xf32> -> vector<256x11xf32>
    %c0_16 = arith.constant 0 : index
    %c0_17 = arith.constant 0 : index
    %34 = vector.load %arg5[%c0_16, %c0_17] : memref<1x11xf32, #tpu.memory_space<vmem>>, vector<1x11xf32>
    %35 = vector.broadcast %34 : vector<1x11xf32> to vector<256x11xf32>
    %36 = arith.addf %33, %35 : vector<256x11xf32>
    %37 = tpu.iota {dimensions = array<i32: 1>} : vector<256x11xi32>
    %c3_i32 = arith.constant 3 : i32
    %38 = vector.broadcast %c3_i32 : i32 to vector<256x11xi32>
    %39 = arith.cmpi eq, %37, %38 : vector<256x11xi32>
    %c4_i32 = arith.constant 4 : i32
    %40 = vector.broadcast %c4_i32 : i32 to vector<256x11xi32>
    %41 = arith.cmpi sge, %37, %40 : vector<256x11xi32>
    %c7_i32 = arith.constant 7 : i32
    %42 = vector.broadcast %c7_i32 : i32 to vector<256x11xi32>
    %43 = arith.cmpi slt, %37, %42 : vector<256x11xi32>
    %44 = arith.andi %41, %43 : vector<256x11xi1>
    %c7_i32_18 = arith.constant 7 : i32
    %45 = vector.broadcast %c7_i32_18 : i32 to vector<256x11xi32>
    %46 = arith.cmpi sge, %37, %45 : vector<256x11xi32>
    %c11_i32 = arith.constant 11 : i32
    %47 = vector.broadcast %c11_i32 : i32 to vector<256x11xi32>
    %48 = arith.cmpi slt, %37, %47 : vector<256x11xi32>
    %49 = arith.andi %46, %48 : vector<256x11xi1>
    %50 = arith.negf %36 : vector<256x11xf32>
    %51 = math.exp %50 : vector<256x11xf32>
    %cst_19 = arith.constant 1.000000e+00 : f32
    %52 = vector.broadcast %cst_19 : f32 to vector<256x11xf32>
    %53 = arith.addf %52, %51 : vector<256x11xf32>
    %54 = arith.divf %52, %53 : vector<256x11xf32>
    %55 = arith.select %39, %54, %36 : vector<256x11xi1>, vector<256x11xf32>
    %cst_20 = arith.constant 0.000000e+00 : f32
    %56 = vector.broadcast %cst_20 : f32 to vector<256x11xf32>
    %57 = arith.maximumf %36, %56 : vector<256x11xf32>
    %58 = arith.select %44, %57, %55 : vector<256x11xi1>, vector<256x11xf32>
    %59 = arith.mulf %36, %36 : vector<256x11xf32>
    %cst_21 = arith.constant 0.000000e+00 : f32
    %60 = vector.broadcast %cst_21 : f32 to vector<256x11xf32>
    %61 = arith.select %49, %59, %60 : vector<256x11xi1>, vector<256x11xf32>
    %cst_22 = arith.constant dense<0.000000e+00> : vector<256xf32>
    %62 = vector.multi_reduction <add>, %61, %cst_22 [1] : vector<256x11xf32> to vector<256xf32>
    %63 = vector.shape_cast %62 : vector<256xf32> to vector<256x1xf32>
    %cst_23 = arith.constant 1.000000e-24 : f32
    %64 = vector.broadcast %cst_23 : f32 to vector<256x1xf32>
    %65 = arith.maximumf %63, %64 : vector<256x1xf32>
    %66 = math.rsqrt %65 : vector<256x1xf32>
    %67 = vector.broadcast %66 : vector<256x1xf32> to vector<256x11xf32>
    %68 = arith.mulf %36, %67 : vector<256x11xf32>
    %69 = arith.select %49, %68, %58 : vector<256x11xi1>, vector<256x11xf32>
    %c0_24 = arith.constant 0 : index
    %c0_25 = arith.constant 0 : index
    %70 = vector.load %arg6[%c0_24, %c0_25] : memref<256x11xf32, #tpu.memory_space<vmem>>, vector<256x11xf32>
    tpu.vector_store %arg6[%c0_24, %c0_25], %69 {strides = array<i32>} : memref<256x11xf32, #tpu.memory_space<vmem>>, vector<256x11xf32>,
    return
  }
  func.func @transform_0(%arg0: i32) -> (i32, i32) {
    %c0_i32 = arith.constant 0 : i32
    %c0_i32_0 = arith.constant 0 : i32
    return %arg0, %c0_i32 : i32, i32
  }
  func.func @transform_1(%arg0: i32) -> (i32, i32) {
    %c0_i32 = arith.constant 0 : i32
    %c0_i32_0 = arith.constant 0 : i32
    %c0_i32_1 = arith.constant 0 : i32
    return %c0_i32, %c0_i32_0 : i32, i32
  }
  func.func @transform_2(%arg0: i32) -> (i32, i32) {
    %c0_i32 = arith.constant 0 : i32
    %c0_i32_0 = arith.constant 0 : i32
    %c0_i32_1 = arith.constant 0 : i32
    return %c0_i32, %c0_i32_0 : i32, i32
  }
  func.func @transform_3(%arg0: i32) -> (i32, i32) {
    %c0_i32 = arith.constant 0 : i32
    %c0_i32_0 = arith.constant 0 : i32
    %c0_i32_1 = arith.constant 0 : i32
    return %c0_i32, %c0_i32_0 : i32, i32
  }
  func.func @transform_4(%arg0: i32) -> (i32, i32) {
    %c0_i32 = arith.constant 0 : i32
    %c0_i32_0 = arith.constant 0 : i32
    %c0_i32_1 = arith.constant 0 : i32
    return %c0_i32, %c0_i32_0 : i32, i32
  }
  func.func @transform_5(%arg0: i32) -> (i32, i32) {
    %c0_i32 = arith.constant 0 : i32
    %c0_i32_0 = arith.constant 0 : i32
    return %arg0, %c0_i32 : i32, i32
  }
}

</mosaic_0001>

<llo_original>
// kernel: tpu_custom_call.1
$region0: #{tpu_custom_call.1}
  #allocation0 [shape = 'u32[]', space=smem, size = 0x4, offset = 0x4, fixed_abs, tag = 'smem constant byte address 0x4 - core index']
  #allocation1 [shape = 'u32[72,128]{1,0:T(1,128)}', space=vmem, size = 0x9000, scoped, tag = 'internal scratch']
  %s0 = inlined_call_operand.vmem [shape: f32[256,32], index: 0, kind: input, shape index: {}]
  %s1 = inlined_call_operand.vmem [shape: f32[32,32], index: 1, kind: input, shape index: {}]
  %s2 = inlined_call_operand.vmem [shape: f32[1,32], index: 2, kind: input, shape index: {}]
  %s3 = inlined_call_operand.vmem [shape: f32[32,11], index: 3, kind: input, shape index: {}]
  %s4 = inlined_call_operand.vmem [shape: f32[1,11], index: 4, kind: input, shape index: {}]
  %s5 = inlined_call_operand.vmem [shape: f32[256,11], index: 5, kind: output, shape index: {}]
  %s6 = sld [smem:[#allocation0]]
  $region30: #{tpu_custom_call.1} parent=0
    _
  %s8 = ssub.s32 1, %s6
  %s9 = scalar_select 0, %s8, %s6
  // Predicated region
  $region2: #{tpu_custom_call.1} parent=0 // pred_check
    _
  $region3: #{tpu_custom_call.1} parent=0 // pred_check_branch
    %11 = sbr.rel (0) target = $region5
  $region4: #{tpu_custom_call.1} parent=0 // pred_region
    _
  $region5: #{tpu_custom_call.1} parent=0 // pred_fallthru
    _
  // Predicated region
  $region6: #{tpu_custom_call.1} parent=0 // pred_check
    _
  $region7: #{tpu_custom_call.1} parent=0 // pred_check_branch
    %13 = sbr.rel (0) target = $region9
  $region8: #{tpu_custom_call.1} parent=0 // pred_region
    _
  $region9: #{tpu_custom_call.1} parent=0 // pred_fallthru
    _
  // Predicated region
  $region10: #{tpu_custom_call.1} parent=0 // pred_check
    _
  $region11: #{tpu_custom_call.1} parent=0 // pred_check_branch
    %15 = sbr.rel (0) target = $region13
  $region12: #{tpu_custom_call.1} parent=0 // pred_region
    _
  $region13: #{tpu_custom_call.1} parent=0 // pred_fallthru
    _
  // Predicated region
  $region14: #{tpu_custom_call.1} parent=0 // pred_check
    _
  $region15: #{tpu_custom_call.1} parent=0 // pred_check_branch
    %17 = sbr.rel (0) target = $region17
  $region16: #{tpu_custom_call.1} parent=0 // pred_region
    _
  $region17: #{tpu_custom_call.1} parent=0 // pred_fallthru
    _
  // Predicated region
  $region18: #{tpu_custom_call.1} parent=0 // pred_check
    _
  $region19: #{tpu_custom_call.1} parent=0 // pred_check_branch
    %19 = sbr.rel (0) target = $region21
  $region20: #{tpu_custom_call.1} parent=0 // pred_region
    _
  $region21: #{tpu_custom_call.1} parent=0 // pred_fallthru
    _
  %v20 = vld [vmem:[%s0] sm:$0xff]
  %v21 = vld [vmem:[%s0 + $0x8] sm:$0xff]
  %v22 = vld [vmem:[%s0 + $0x10] sm:$0xff]
  %v23 = vld [vmem:[%s0 + $0x18] sm:$0xff]
  %v24 = vld [vmem:[%s0 + $0x20] sm:$0xff]
  %v25 = vld [vmem:[%s0 + $0x28] sm:$0xff]
  %v26 = vld [vmem:[%s0 + $0x30] sm:$0xff]
  %v27 = vld [vmem:[%s0 + $0x38] sm:$0xff]
  %v28 = vld [vmem:[%s0 + $0x40] sm:$0xff]
  %v29 = vld [vmem:[%s0 + $0x48] sm:$0xff]
  %v30 = vld [vmem:[%s0 + $0x50] sm:$0xff]
  %v31 = vld [vmem:[%s0 + $0x58] sm:$0xff]
  %v32 = vld [vmem:[%s0 + $0x60] sm:$0xff]
  %v33 = vld [vmem:[%s0 + $0x68] sm:$0xff]
  %v34 = vld [vmem:[%s0 + $0x70] sm:$0xff]
  %v35 = vld [vmem:[%s0 + $0x78] sm:$0xff]
  %v36 = vld [vmem:[%s0 + $0x80] sm:$0xff]
  %v37 = vld [vmem:[%s0 + $0x88] sm:$0xff]
  %v38 = vld [vmem:[%s0 + $0x90] sm:$0xff]
  %v39 = vld [vmem:[%s0 + $0x98] sm:$0xff]
  %v40 = vld [vmem:[%s0 + $0xa0] sm:$0xff]
  %v41 = vld [vmem:[%s0 + $0xa8] sm:$0xff]
  %v42 = vld [vmem:[%s0 + $0xb0] sm:$0xff]
  %v43 = vld [vmem:[%s0 + $0xb8] sm:$0xff]
  %v44 = vld [vmem:[%s0 + $0xc0] sm:$0xff]
  %v45 = vld [vmem:[%s0 + $0xc8] sm:$0xff]
  %v46 = vld [vmem:[%s0 + $0xd0] sm:$0xff]
  %v47 = vld [vmem:[%s0 + $0xd8] sm:$0xff]
  %v48 = vld [vmem:[%s0 + $0xe0] sm:$0xff]
  %v49 = vld [vmem:[%s0 + $0xe8] sm:$0xff]
  %v50 = vld [vmem:[%s0 + $0xf0] sm:$0xff]
  %v51 = vld [vmem:[%s0 + $0xf8] sm:$0xff]
  %vm52 = vcmask 261120
  %v53 = vsel %vm52, %v20, 0.0
  %54 = vadd.xlane.f32.xlu0 %v53
  %v55 = vpop.xlane.xlu0 %54
  %v56 = vsel %vm52, %v21, 0.0
  %57 = vadd.xlane.f32.xlu0 %v56
  %v58 = vpop.xlane.xlu0 %57
  %v59 = vsel %vm52, %v22, 0.0
  %60 = vadd.xlane.f32.xlu0 %v59
  %v61 = vpop.xlane.xlu0 %60
  %v62 = vsel %vm52, %v23, 0.0
  %63 = vadd.xlane.f32.xlu0 %v62
  %v64 = vpop.xlane.xlu0 %63
  %v65 = vsel %vm52, %v24, 0.0
  %66 = vadd.xlane.f32.xlu0 %v65
  %v67 = vpop.xlane.xlu0 %66
  %v68 = vsel %vm52, %v25, 0.0
  %69 = vadd.xlane.f32.xlu0 %v68
  %v70 = vpop.xlane.xlu0 %69
  %v71 = vsel %vm52, %v26, 0.0
  %72 = vadd.xlane.f32.xlu0 %v71
  %v73 = vpop.xlane.xlu0 %72
  %v74 = vsel %vm52, %v27, 0.0
  %75 = vadd.xlane.f32.xlu0 %v74
  %v76 = vpop.xlane.xlu0 %75
  %v77 = vsel %vm52, %v28, 0.0
  %78 = vadd.xlane.f32.xlu0 %v77
  %v79 = vpop.xlane.xlu0 %78
  %v80 = vsel %vm52, %v29, 0.0
  %81 = vadd.xlane.f32.xlu0 %v80
  %v82 = vpop.xlane.xlu0 %81
  %v83 = vsel %vm52, %v30, 0.0
  %84 = vadd.xlane.f32.xlu0 %v83
  %v85 = vpop.xlane.xlu0 %84
  %v86 = vsel %vm52, %v31, 0.0
  %87 = vadd.xlane.f32.xlu0 %v86
  %v88 = vpop.xlane.xlu0 %87
  %v89 = vsel %vm52, %v32, 0.0
  %90 = vadd.xlane.f32.xlu0 %v89
  %v91 = vpop.xlane.xlu0 %90
  %v92 = vsel %vm52, %v33, 0.0
  %93 = vadd.xlane.f32.xlu0 %v92
  %v94 = vpop.xlane.xlu0 %93
  %v95 = vsel %vm52, %v34, 0.0
  %96 = vadd.xlane.f32.xlu0 %v95
  %v97 = vpop.xlane.xlu0 %96
  %v98 = vsel %vm52, %v35, 0.0
  %99 = vadd.xlane.f32.xlu0 %v98
  %v100 = vpop.xlane.xlu0 %99
  %v101 = vsel %vm52, %v36, 0.0
  %102 = vadd.xlane.f32.xlu0 %v101
  %v103 = vpop.xlane.xlu0 %102
  %v104 = vsel %vm52, %v37, 0.0
  %105 = vadd.xlane.f32.xlu0 %v104
  %v106 = vpop.xlane.xlu0 %105
  %v107 = vsel %vm52, %v38, 0.0
  %108 = vadd.xlane.f32.xlu0 %v107
  %v109 = vpop.xlane.xlu0 %108
  %v110 = vsel %vm52, %v39, 0.0
  %111 = vadd.xlane.f32.xlu0 %v110
  %v112 = vpop.xlane.xlu0 %111
  %v113 = vsel %vm52, %v40, 0.0
  %114 = vadd.xlane.f32.xlu0 %v113
  %v115 = vpop.xlane.xlu0 %114
  %v116 = vsel %vm52, %v41, 0.0
  %117 = vadd.xlane.f32.xlu0 %v116
  %v118 = vpop.xlane.xlu0 %117
  %v119 = vsel %vm52, %v42, 0.0
  %120 = vadd.xlane.f32.xlu0 %v119
  %v121 = vpop.xlane.xlu0 %120
  %v122 = vsel %vm52, %v43, 0.0
  %123 = vadd.xlane.f32.xlu0 %v122
  %v124 = vpop.xlane.xlu0 %123
  %v125 = vsel %vm52, %v44, 0.0
  %126 = vadd.xlane.f32.xlu0 %v125
  %v127 = vpop.xlane.xlu0 %126
  %v128 = vsel %vm52, %v45, 0.0
  %129 = vadd.xlane.f32.xlu0 %v128
  %v130 = vpop.xlane.xlu0 %129
  %v131 = vsel %vm52, %v46, 0.0
  %132 = vadd.xlane.f32.xlu0 %v131
  %v133 = vpop.xlane.xlu0 %132
  %v134 = vsel %vm52, %v47, 0.0
  %135 = vadd.xlane.f32.xlu0 %v134
  %v136 = vpop.xlane.xlu0 %135
  %v137 = vsel %vm52, %v48, 0.0
  %138 = vadd.xlane.f32.xlu0 %v137
  %v139 = vpop.xlane.xlu0 %138
  %v140 = vsel %vm52, %v49, 0.0
  %141 = vadd.xlane.f32.xlu0 %v140
  %v142 = vpop.xlane.xlu0 %141
  %v143 = vsel %vm52, %v50, 0.0
  %144 = vadd.xlane.f32.xlu0 %v143
  %v145 = vpop.xlane.xlu0 %144
  %v146 = vsel %vm52, %v51, 0.0
  %147 = vadd.xlane.f32.xlu0 %v146
  %v148 = vpop.xlane.xlu0 %147
  %v149 = vrcp.pop 32.0
  %v150 = vmul.f32 32.0, %v149
  %v151 = vsub.f32 1.0, %v150
  %v152 = vmul.f32 %v149, %v151
  %v153 = vadd.f32 %v149, %v152
  %vm154 = vweird.f32 %v149
  %v155 = vsel %vm154, %v149, %v153
  %v156 = vmul.f32 %v55, %v155
  %v157 = vmul.f32 %v58, %v155
  %v158 = vmul.f32 %v61, %v155
  %v159 = vmul.f32 %v64, %v155
  %v160 = vmul.f32 %v67, %v155
  %v161 = vmul.f32 %v70, %v155
  %v162 = vmul.f32 %v73, %v155
  %v163 = vmul.f32 %v76, %v155
  %v164 = vmul.f32 %v79, %v155
  %v165 = vmul.f32 %v82, %v155
  %v166 = vmul.f32 %v85, %v155
  %v167 = vmul.f32 %v88, %v155
  %v168 = vmul.f32 %v91, %v155
  %v169 = vmul.f32 %v94, %v155
  %v170 = vmul.f32 %v97, %v155
  %v171 = vmul.f32 %v100, %v155
  %v172 = vmul.f32 %v103, %v155
  %v173 = vmul.f32 %v106, %v155
  %v174 = vmul.f32 %v109, %v155
  %v175 = vmul.f32 %v112, %v155
  %v176 = vmul.f32 %v115, %v155
  %v177 = vmul.f32 %v118, %v155
  %v178 = vmul.f32 %v121, %v155
  %v179 = vmul.f32 %v124, %v155
  %v180 = vmul.f32 %v127, %v155
  %v181 = vmul.f32 %v130, %v155
  %v182 = vmul.f32 %v133, %v155
  %v183 = vmul.f32 %v136, %v155
  %v184 = vmul.f32 %v139, %v155
  %v185 = vmul.f32 %v142, %v155
  %v186 = vmul.f32 %v145, %v155
  %v187 = vmul.f32 %v148, %v155
  %v188 = vsub.f32 %v20, %v156
  %v189 = vsub.f32 %v21, %v157
  %v190 = vsub.f32 %v22, %v158
  %v191 = vsub.f32 %v23, %v159
  %v192 = vsub.f32 %v24, %v160
  %v193 = vsub.f32 %v25, %v161
  %v194 = vsub.f32 %v26, %v162
  %v195 = vsub.f32 %v27, %v163
  %v196 = vsub.f32 %v28, %v164
  %v197 = vsub.f32 %v29, %v165
  %v198 = vsub.f32 %v30, %v166
  %v199 = vsub.f32 %v31, %v167
  %v200 = vsub.f32 %v32, %v168
  %v201 = vsub.f32 %v33, %v169
  %v202 = vsub.f32 %v34, %v170
  %v203 = vsub.f32 %v35, %v171
  %v204 = vsub.f32 %v36, %v172
  %v205 = vsub.f32 %v37, %v173
  %v206 = vsub.f32 %v38, %v174
  %v207 = vsub.f32 %v39, %v175
  %v208 = vsub.f32 %v40, %v176
  %v209 = vsub.f32 %v41, %v177
  %v210 = vsub.f32 %v42, %v178
  %v211 = vsub.f32 %v43, %v179
  %v212 = vsub.f32 %v44, %v180
  %v213 = vsub.f32 %v45, %v181
  %v214 = vsub.f32 %v46, %v182
  %v215 = vsub.f32 %v47, %v183
  %v216 = vsub.f32 %v48, %v184
  %v217 = vsub.f32 %v49, %v185
  %v218 = vsub.f32 %v50, %v186
  %v219 = vsub.f32 %v51, %v187
  %v220 = vmul.f32 %v188, %v188
  %v221 = vmul.f32 %v189, %v189
  %v222 = vmul.f32 %v190, %v190
  %v223 = vmul.f32 %v191, %v191
  %v224 = vmul.f32 %v192, %v192
  %v225 = vmul.f32 %v193, %v193
  %v226 = vmul.f32 %v194, %v194
  %v227 = vmul.f32 %v195, %v195
  %v228 = vmul.f32 %v196, %v196
  %v229 = vmul.f32 %v197, %v197
  %v230 = vmul.f32 %v198, %v198
  %v231 = vmul.f32 %v199, %v199
  %v232 = vmul.f32 %v200, %v200
  %v233 = vmul.f32 %v201, %v201
  %v234 = vmul.f32 %v202, %v202
  %v235 = vmul.f32 %v203, %v203
  %v236 = vmul.f32 %v204, %v204
  %v237 = vmul.f32 %v205, %v205
  %v238 = vmul.f32 %v206, %v206
  %v239 = vmul.f32 %v207, %v207
  %v240 = vmul.f32 %v208, %v208
  %v241 = vmul.f32 %v209, %v209
  %v242 = vmul.f32 %v210, %v210
  %v243 = vmul.f32 %v211, %v211
  %v244 = vmul.f32 %v212, %v212
  %v245 = vmul.f32 %v213, %v213
  %v246 = vmul.f32 %v214, %v214
  %v247 = vmul.f32 %v215, %v215
  %v248 = vmul.f32 %v216, %v216
  %v249 = vmul.f32 %v217, %v217
  %v250 = vmul.f32 %v218, %v218
  %v251 = vmul.f32 %v219, %v219
  %v252 = vsel %vm52, %v220, 0.0
  %253 = vadd.xlane.f32.xlu0 %v252
  %v254 = vpop.xlane.xlu0 %253
  %v255 = vsel %vm52, %v221, 0.0
  %256 = vadd.xlane.f32.xlu0 %v255
  %v257 = vpop.xlane.xlu0 %256
  %v258 = vsel %vm52, %v222, 0.0
  %259 = vadd.xlane.f32.xlu0 %v258
  %v260 = vpop.xlane.xlu0 %259
  %v261 = vsel %vm52, %v223, 0.0
  %262 = vadd.xlane.f32.xlu0 %v261
  %v263 = vpop.xlane.xlu0 %262
  %v264 = vsel %vm52, %v224, 0.0
  %265 = vadd.xlane.f32.xlu0 %v264
  %v266 = vpop.xlane.xlu0 %265
  %v267 = vsel %vm52, %v225, 0.0
  %268 = vadd.xlane.f32.xlu0 %v267
  %v269 = vpop.xlane.xlu0 %268
  %v270 = vsel %vm52, %v226, 0.0
  %271 = vadd.xlane.f32.xlu0 %v270
  %v272 = vpop.xlane.xlu0 %271
  %v273 = vsel %vm52, %v227, 0.0
  %274 = vadd.xlane.f32.xlu0 %v273
  %v275 = vpop.xlane.xlu0 %274
  %v276 = vsel %vm52, %v228, 0.0
  %277 = vadd.xlane.f32.xlu0 %v276
  %v278 = vpop.xlane.xlu0 %277
  %v279 = vsel %vm52, %v229, 0.0
  %280 = vadd.xlane.f32.xlu0 %v279
  %v281 = vpop.xlane.xlu0 %280
  %v282 = vsel %vm52, %v230, 0.0
  %283 = vadd.xlane.f32.xlu0 %v282
  %v284 = vpop.xlane.xlu0 %283
  %v285 = vsel %vm52, %v231, 0.0
  %286 = vadd.xlane.f32.xlu0 %v285
  %v287 = vpop.xlane.xlu0 %286
  %v288 = vsel %vm52, %v232, 0.0
  %289 = vadd.xlane.f32.xlu0 %v288
  %v290 = vpop.xlane.xlu0 %289
  %v291 = vsel %vm52, %v233, 0.0
  %292 = vadd.xlane.f32.xlu0 %v291
  %v293 = vpop.xlane.xlu0 %292
  %v294 = vsel %vm52, %v234, 0.0
  %295 = vadd.xlane.f32.xlu0 %v294
  %v296 = vpop.xlane.xlu0 %295
  %v297 = vsel %vm52, %v235, 0.0
  %298 = vadd.xlane.f32.xlu0 %v297
  %v299 = vpop.xlane.xlu0 %298
  %v300 = vsel %vm52, %v236, 0.0
  %301 = vadd.xlane.f32.xlu0 %v300
  %v302 = vpop.xlane.xlu0 %301
  %v303 = vsel %vm52, %v237, 0.0
  %304 = vadd.xlane.f32.xlu0 %v303
  %v305 = vpop.xlane.xlu0 %304
  %v306 = vsel %vm52, %v238, 0.0
  %307 = vadd.xlane.f32.xlu0 %v306
  %v308 = vpop.xlane.xlu0 %307
  %v309 = vsel %vm52, %v239, 0.0
  %310 = vadd.xlane.f32.xlu0 %v309
  %v311 = vpop.xlane.xlu0 %310
  %v312 = vsel %vm52, %v240, 0.0
  %313 = vadd.xlane.f32.xlu0 %v312
  %v314 = vpop.xlane.xlu0 %313
  %v315 = vsel %vm52, %v241, 0.0
  %316 = vadd.xlane.f32.xlu0 %v315
  %v317 = vpop.xlane.xlu0 %316
  %v318 = vsel %vm52, %v242, 0.0
  %319 = vadd.xlane.f32.xlu0 %v318
  %v320 = vpop.xlane.xlu0 %319
  %v321 = vsel %vm52, %v243, 0.0
  %322 = vadd.xlane.f32.xlu0 %v321
  %v323 = vpop.xlane.xlu0 %322
  %v324 = vsel %vm52, %v244, 0.0
  %325 = vadd.xlane.f32.xlu0 %v324
  %v326 = vpop.xlane.xlu0 %325
  %v327 = vsel %vm52, %v245, 0.0
  %328 = vadd.xlane.f32.xlu0 %v327
  %v329 = vpop.xlane.xlu0 %328
  %v330 = vsel %vm52, %v246, 0.0
  %331 = vadd.xlane.f32.xlu0 %v330
  %v332 = vpop.xlane.xlu0 %331
  %v333 = vsel %vm52, %v247, 0.0
  %334 = vadd.xlane.f32.xlu0 %v333
  %v335 = vpop.xlane.xlu0 %334
  %v336 = vsel %vm52, %v248, 0.0
  %337 = vadd.xlane.f32.xlu0 %v336
  %v338 = vpop.xlane.xlu0 %337
  %v339 = vsel %vm52, %v249, 0.0
  %340 = vadd.xlane.f32.xlu0 %v339
  %v341 = vpop.xlane.xlu0 %340
  %v342 = vsel %vm52, %v250, 0.0
  %343 = vadd.xlane.f32.xlu0 %v342
  %v344 = vpop.xlane.xlu0 %343
  %v345 = vsel %vm52, %v251, 0.0
  %346 = vadd.xlane.f32.xlu0 %v345
  %v347 = vpop.xlane.xlu0 %346
  %v348 = vmul.f32 %v254, %v155
  %v349 = vmul.f32 %v257, %v155
  %v350 = vmul.f32 %v260, %v155
  %v351 = vmul.f32 %v263, %v155
  %v352 = vmul.f32 %v266, %v155
  %v353 = vmul.f32 %v269, %v155
  %v354 = vmul.f32 %v272, %v155
  %v355 = vmul.f32 %v275, %v155
  %v356 = vmul.f32 %v278, %v155
  %v357 = vmul.f32 %v281, %v155
  %v358 = vmul.f32 %v284, %v155
  %v359 = vmul.f32 %v287, %v155
  %v360 = vmul.f32 %v290, %v155
  %v361 = vmul.f32 %v293, %v155
  %v362 = vmul.f32 %v296, %v155
  %v363 = vmul.f32 %v299, %v155
  %v364 = vmul.f32 %v302, %v155
  %v365 = vmul.f32 %v305, %v155
  %v366 = vmul.f32 %v308, %v155
  %v367 = vmul.f32 %v311, %v155
  %v368 = vmul.f32 %v314, %v155
  %v369 = vmul.f32 %v317, %v155
  %v370 = vmul.f32 %v320, %v155
  %v371 = vmul.f32 %v323, %v155
  %v372 = vmul.f32 %v326, %v155
  %v373 = vmul.f32 %v329, %v155
  %v374 = vmul.f32 %v332, %v155
  %v375 = vmul.f32 %v335, %v155
  %v376 = vmul.f32 %v338, %v155
  %v377 = vmul.f32 %v341, %v155
  %v378 = vmul.f32 %v344, %v155
  %v379 = vmul.f32 %v347, %v155
  %v380 = vadd.f32 %v348, 1e-05
  %v381 = vadd.f32 %v349, 1e-05
  %v382 = vadd.f32 %v350, 1e-05
  %v383 = vadd.f32 %v351, 1e-05
  %v384 = vadd.f32 %v352, 1e-05
  %v385 = vadd.f32 %v353, 1e-05
  %v386 = vadd.f32 %v354, 1e-05
  %v387 = vadd.f32 %v355, 1e-05
  %v388 = vadd.f32 %v356, 1e-05
  %v389 = vadd.f32 %v357, 1e-05
  %v390 = vadd.f32 %v358, 1e-05
  %v391 = vadd.f32 %v359, 1e-05
  %v392 = vadd.f32 %v360, 1e-05
  %v393 = vadd.f32 %v361, 1e-05
  %v394 = vadd.f32 %v362, 1e-05
  %v395 = vadd.f32 %v363, 1e-05
  %v396 = vadd.f32 %v364, 1e-05
  %v397 = vadd.f32 %v365, 1e-05
  %v398 = vadd.f32 %v366, 1e-05
  %v399 = vadd.f32 %v367, 1e-05
  %v400 = vadd.f32 %v368, 1e-05
  %v401 = vadd.f32 %v369, 1e-05
  %v402 = vadd.f32 %v370, 1e-05
  %v403 = vadd.f32 %v371, 1e-05
  %v404 = vadd.f32 %v372, 1e-05
  %v405 = vadd.f32 %v373, 1e-05
  %v406 = vadd.f32 %v374, 1e-05
  %v407 = vadd.f32 %v375, 1e-05
  %v408 = vadd.f32 %v376, 1e-05
  %v409 = vadd.f32 %v377, 1e-05
  %v410 = vadd.f32 %v378, 1e-05
  %v411 = vadd.f32 %v379, 1e-05
  %v412 = vrsqrt.pop %v380
  %v413 = vmul.f32 %v412, %v380
  %v414 = vmul.f32 %v413, %v412
  %v415 = vmul.f32 0.5, %v414
  %v416 = vsub.f32 1.5, %v415
  %v417 = vmul.f32 %v412, %v416
  %vm418 = vweird.f32 %v380
  %vm419 = vweird.f32 %v412
  %vm420 = vmor %vm418, %vm419
  %v421 = vsel %vm420, %v412, %v417
  %v422 = vrsqrt.pop %v381
  %v423 = vmul.f32 %v422, %v381
  %v424 = vmul.f32 %v423, %v422
  %v425 = vmul.f32 0.5, %v424
  %v426 = vsub.f32 1.5, %v425
  %v427 = vmul.f32 %v422, %v426
  %vm428 = vweird.f32 %v381
  %vm429 = vweird.f32 %v422
  %vm430 = vmor %vm428, %vm429
  %v431 = vsel %vm430, %v422, %v427
  %v432 = vrsqrt.pop %v382
  %v433 = vmul.f32 %v432, %v382
  %v434 = vmul.f32 %v433, %v432
  %v435 = vmul.f32 0.5, %v434
  %v436 = vsub.f32 1.5, %v435
  %v437 = vmul.f32 %v432, %v436
  %vm438 = vweird.f32 %v382
  %vm439 = vweird.f32 %v432
  %vm440 = vmor %vm438, %vm439
  %v441 = vsel %vm440, %v432, %v437
  %v442 = vrsqrt.pop %v383
  %v443 = vmul.f32 %v442, %v383
  %v444 = vmul.f32 %v443, %v442
  %v445 = vmul.f32 0.5, %v444
  %v446 = vsub.f32 1.5, %v445
  %v447 = vmul.f32 %v442, %v446
  %vm448 = vweird.f32 %v383
  %vm449 = vweird.f32 %v442
  %vm450 = vmor %vm448, %vm449
  %v451 = vsel %vm450, %v442, %v447
  %v452 = vrsqrt.pop %v384
  %v453 = vmul.f32 %v452, %v384
  %v454 = vmul.f32 %v453, %v452
  %v455 = vmul.f32 0.5, %v454
  %v456 = vsub.f32 1.5, %v455
  %v457 = vmul.f32 %v452, %v456
  %vm458 = vweird.f32 %v384
  %vm459 = vweird.f32 %v452
  %vm460 = vmor %vm458, %vm459
  %v461 = vsel %vm460, %v452, %v457
  %v462 = vrsqrt.pop %v385
  %v463 = vmul.f32 %v462, %v385
  %v464 = vmul.f32 %v463, %v462
  %v465 = vmul.f32 0.5, %v464
  %v466 = vsub.f32 1.5, %v465
  %v467 = vmul.f32 %v462, %v466
  %vm468 = vweird.f32 %v385
  %vm469 = vweird.f32 %v462
  %vm470 = vmor %vm468, %vm469
  %v471 = vsel %vm470, %v462, %v467
  %v472 = vrsqrt.pop %v386
  %v473 = vmul.f32 %v472, %v386
  %v474 = vmul.f32 %v473, %v472
  %v475 = vmul.f32 0.5, %v474
  %v476 = vsub.f32 1.5, %v475
  %v477 = vmul.f32 %v472, %v476
  %vm478 = vweird.f32 %v386
  %vm479 = vweird.f32 %v472
  %vm480 = vmor %vm478, %vm479
  %v481 = vsel %vm480, %v472, %v477
  %v482 = vrsqrt.pop %v387
  %v483 = vmul.f32 %v482, %v387
  %v484 = vmul.f32 %v483, %v482
  %v485 = vmul.f32 0.5, %v484
  %v486 = vsub.f32 1.5, %v485
  %v487 = vmul.f32 %v482, %v486
  %vm488 = vweird.f32 %v387
  %vm489 = vweird.f32 %v482
  %vm490 = vmor %vm488, %vm489
  %v491 = vsel %vm490, %v482, %v487
  %v492 = vrsqrt.pop %v388
  %v493 = vmul.f32 %v492, %v388
  %v494 = vmul.f32 %v493, %v492
  %v495 = vmul.f32 0.5, %v494
  %v496 = vsub.f32 1.5, %v495
  %v497 = vmul.f32 %v492, %v496
  %vm498 = vweird.f32 %v388
  %vm499 = vweird.f32 %v492
  %vm500 = vmor %vm498, %vm499
  %v501 = vsel %vm500, %v492, %v497
  %v502 = vrsqrt.pop %v389
  %v503 = vmul.f32 %v502, %v389
  %v504 = vmul.f32 %v503, %v502
  %v505 = vmul.f32 0.5, %v504
  %v506 = vsub.f32 1.5, %v505
  %v507 = vmul.f32 %v502, %v506
  %vm508 = vweird.f32 %v389
  %vm509 = vweird.f32 %v502
  %vm510 = vmor %vm508, %vm509
  %v511 = vsel %vm510, %v502, %v507
  %v512 = vrsqrt.pop %v390
  %v513 = vmul.f32 %v512, %v390
  %v514 = vmul.f32 %v513, %v512
  %v515 = vmul.f32 0.5, %v514
  %v516 = vsub.f32 1.5, %v515
  %v517 = vmul.f32 %v512, %v516
  %vm518 = vweird.f32 %v390
  %vm519 = vweird.f32 %v512
  %vm520 = vmor %vm518, %vm519
  %v521 = vsel %vm520, %v512, %v517
  %v522 = vrsqrt.pop %v391
  %v523 = vmul.f32 %v522, %v391
  %v524 = vmul.f32 %v523, %v522
  %v525 = vmul.f32 0.5, %v524
  %v526 = vsub.f32 1.5, %v525
  %v527 = vmul.f32 %v522, %v526
  %vm528 = vweird.f32 %v391
  %vm529 = vweird.f32 %v522
  %vm530 = vmor %vm528, %vm529
  %v531 = vsel %vm530, %v522, %v527
  %v532 = vrsqrt.pop %v392
  %v533 = vmul.f32 %v532, %v392
  %v534 = vmul.f32 %v533, %v532
  %v535 = vmul.f32 0.5, %v534
  %v536 = vsub.f32 1.5, %v535
  %v537 = vmul.f32 %v532, %v536
  %vm538 = vweird.f32 %v392
  %vm539 = vweird.f32 %v532
  %vm540 = vmor %vm538, %vm539
  %v541 = vsel %vm540, %v532, %v537
  %v542 = vrsqrt.pop %v393
  %v543 = vmul.f32 %v542, %v393
  %v544 = vmul.f32 %v543, %v542
  %v545 = vmul.f32 0.5, %v544
  %v546 = vsub.f32 1.5, %v545
  %v547 = vmul.f32 %v542, %v546
  %vm548 = vweird.f32 %v393
  %vm549 = vweird.f32 %v542
  %vm550 = vmor %vm548, %vm549
  %v551 = vsel %vm550, %v542, %v547
  %v552 = vrsqrt.pop %v394
  %v553 = vmul.f32 %v552, %v394
  %v554 = vmul.f32 %v553, %v552
  %v555 = vmul.f32 0.5, %v554
  %v556 = vsub.f32 1.5, %v555
  %v557 = vmul.f32 %v552, %v556
  %vm558 = vweird.f32 %v394
  %vm559 = vweird.f32 %v552
  %vm560 = vmor %vm558, %vm559
  %v561 = vsel %vm560, %v552, %v557
  %v562 = vrsqrt.pop %v395
  %v563 = vmul.f32 %v562, %v395
  %v564 = vmul.f32 %v563, %v562
  %v565 = vmul.f32 0.5, %v564
  %v566 = vsub.f32 1.5, %v565
  %v567 = vmul.f32 %v562, %v566
  %vm568 = vweird.f32 %v395
  %vm569 = vweird.f32 %v562
  %vm570 = vmor %vm568, %vm569
  %v571 = vsel %vm570, %v562, %v567
  %v572 = vrsqrt.pop %v396
  %v573 = vmul.f32 %v572, %v396
  %v574 = vmul.f32 %v573, %v572
  %v575 = vmul.f32 0.5, %v574
  %v576 = vsub.f32 1.5, %v575
  %v577 = vmul.f32 %v572, %v576
  %vm578 = vweird.f32 %v396
  %vm579 = vweird.f32 %v572
  %vm580 = vmor %vm578, %vm579
  %v581 = vsel %vm580, %v572, %v577
  %v582 = vrsqrt.pop %v397
  %v583 = vmul.f32 %v582, %v397
  %v584 = vmul.f32 %v583, %v582
  %v585 = vmul.f32 0.5, %v584
  %v586 = vsub.f32 1.5, %v585
  %v587 = vmul.f32 %v582, %v586
  %vm588 = vweird.f32 %v397
  %vm589 = vweird.f32 %v582
  %vm590 = vmor %vm588, %vm589
  %v591 = vsel %vm590, %v582, %v587
  %v592 = vrsqrt.pop %v398
  %v593 = vmul.f32 %v592, %v398
  %v594 = vmul.f32 %v593, %v592
  %v595 = vmul.f32 0.5, %v594
  %v596 = vsub.f32 1.5, %v595
  %v597 = vmul.f32 %v592, %v596
  %vm598 = vweird.f32 %v398
  %vm599 = vweird.f32 %v592
  %vm600 = vmor %vm598, %vm599
  %v601 = vsel %vm600, %v592, %v597
  %v602 = vrsqrt.pop %v399
  %v603 = vmul.f32 %v602, %v399
  %v604 = vmul.f32 %v603, %v602
  %v605 = vmul.f32 0.5, %v604
  %v606 = vsub.f32 1.5, %v605
  %v607 = vmul.f32 %v602, %v606
  %vm608 = vweird.f32 %v399
  %vm609 = vweird.f32 %v602
  %vm610 = vmor %vm608, %vm609
  %v611 = vsel %vm610, %v602, %v607
  %v612 = vrsqrt.pop %v400
  %v613 = vmul.f32 %v612, %v400
  %v614 = vmul.f32 %v613, %v612
  %v615 = vmul.f32 0.5, %v614
  %v616 = vsub.f32 1.5, %v615
  %v617 = vmul.f32 %v612, %v616
  %vm618 = vweird.f32 %v400
  %vm619 = vweird.f32 %v612
  %vm620 = vmor %vm618, %vm619
  %v621 = vsel %vm620, %v612, %v617
  %v622 = vrsqrt.pop %v401
  %v623 = vmul.f32 %v622, %v401
  %v624 = vmul.f32 %v623, %v622
  %v625 = vmul.f32 0.5, %v624
  %v626 = vsub.f32 1.5, %v625
  %v627 = vmul.f32 %v622, %v626
  %vm628 = vweird.f32 %v401
  %vm629 = vweird.f32 %v622
  %vm630 = vmor %vm628, %vm629
  %v631 = vsel %vm630, %v622, %v627
  %v632 = vrsqrt.pop %v402
  %v633 = vmul.f32 %v632, %v402
  %v634 = vmul.f32 %v633, %v632
  %v635 = vmul.f32 0.5, %v634
  %v636 = vsub.f32 1.5, %v635
  %v637 = vmul.f32 %v632, %v636
  %vm638 = vweird.f32 %v402
  %vm639 = vweird.f32 %v632
  %vm640 = vmor %vm638, %vm639
  %v641 = vsel %vm640, %v632, %v637
  %v642 = vrsqrt.pop %v403
  %v643 = vmul.f32 %v642, %v403
  %v644 = vmul.f32 %v643, %v642
  %v645 = vmul.f32 0.5, %v644
  %v646 = vsub.f32 1.5, %v645
  %v647 = vmul.f32 %v642, %v646
  %vm648 = vweird.f32 %v403
  %vm649 = vweird.f32 %v642
  %vm650 = vmor %vm648, %vm649
  %v651 = vsel %vm650, %v642, %v647
  %v652 = vrsqrt.pop %v404
  %v653 = vmul.f32 %v652, %v404
  %v654 = vmul.f32 %v653, %v652
  %v655 = vmul.f32 0.5, %v654
  %v656 = vsub.f32 1.5, %v655
  %v657 = vmul.f32 %v652, %v656
  %vm658 = vweird.f32 %v404
  %vm659 = vweird.f32 %v652
  %vm660 = vmor %vm658, %vm659
  %v661 = vsel %vm660, %v652, %v657
  %v662 = vrsqrt.pop %v405
  %v663 = vmul.f32 %v662, %v405
  %v664 = vmul.f32 %v663, %v662
  %v665 = vmul.f32 0.5, %v664
  %v666 = vsub.f32 1.5, %v665
  %v667 = vmul.f32 %v662, %v666
  %vm668 = vweird.f32 %v405
  %vm669 = vweird.f32 %v662
  %vm670 = vmor %vm668, %vm669
  %v671 = vsel %vm670, %v662, %v667
  %v672 = vrsqrt.pop %v406
  %v673 = vmul.f32 %v672, %v406
  %v674 = vmul.f32 %v673, %v672
  %v675 = vmul.f32 0.5, %v674
  %v676 = vsub.f32 1.5, %v675
  %v677 = vmul.f32 %v672, %v676
  %vm678 = vweird.f32 %v406
  %vm679 = vweird.f32 %v672
  %vm680 = vmor %vm678, %vm679
  %v681 = vsel %vm680, %v672, %v677
  %v682 = vrsqrt.pop %v407
  %v683 = vmul.f32 %v682, %v407
  %v684 = vmul.f32 %v683, %v682
  %v685 = vmul.f32 0.5, %v684
  %v686 = vsub.f32 1.5, %v685
  %v687 = vmul.f32 %v682, %v686
  %vm688 = vweird.f32 %v407
  %vm689 = vweird.f32 %v682
  %vm690 = vmor %vm688, %vm689
  %v691 = vsel %vm690, %v682, %v687
  %v692 = vrsqrt.pop %v408
  %v693 = vmul.f32 %v692, %v408
  %v694 = vmul.f32 %v693, %v692
  %v695 = vmul.f32 0.5, %v694
  %v696 = vsub.f32 1.5, %v695
  %v697 = vmul.f32 %v692, %v696
  %vm698 = vweird.f32 %v408
  %vm699 = vweird.f32 %v692
  %vm700 = vmor %vm698, %vm699
  %v701 = vsel %vm700, %v692, %v697
  %v702 = vrsqrt.pop %v409
  %v703 = vmul.f32 %v702, %v409
  %v704 = vmul.f32 %v703, %v702
  %v705 = vmul.f32 0.5, %v704
  %v706 = vsub.f32 1.5, %v705
  %v707 = vmul.f32 %v702, %v706
  %vm708 = vweird.f32 %v409
  %vm709 = vweird.f32 %v702
  %vm710 = vmor %vm708, %vm709
  %v711 = vsel %vm710, %v702, %v707
  %v712 = vrsqrt.pop %v410
  %v713 = vmul.f32 %v712, %v410
  %v714 = vmul.f32 %v713, %v712
  %v715 = vmul.f32 0.5, %v714
  %v716 = vsub.f32 1.5, %v715
  %v717 = vmul.f32 %v712, %v716
  %vm718 = vweird.f32 %v410
  %vm719 = vweird.f32 %v712
  %vm720 = vmor %vm718, %vm719
  %v721 = vsel %vm720, %v712, %v717
  %v722 = vrsqrt.pop %v411
  %v723 = vmul.f32 %v722, %v411
  %v724 = vmul.f32 %v723, %v722
  %v725 = vmul.f32 0.5, %v724
  %v726 = vsub.f32 1.5, %v725
  %v727 = vmul.f32 %v722, %v726
  %vm728 = vweird.f32 %v411
  %vm729 = vweird.f32 %v722
  %vm730 = vmor %vm728, %vm729
  %v731 = vsel %vm730, %v722, %v727
  %v732 = vmul.f32 %v188, %v421
  %v733 = vmul.f32 %v189, %v431
  %v734 = vmul.f32 %v190, %v441
  %v735 = vmul.f32 %v191, %v451
  %v736 = vmul.f32 %v192, %v461
  %v737 = vmul.f32 %v193, %v471
  %v738 = vmul.f32 %v194, %v481
  %v739 = vmul.f32 %v195, %v491
  %v740 = vmul.f32 %v196, %v501
  %v741 = vmul.f32 %v197, %v511
  %v742 = vmul.f32 %v198, %v521
  %v743 = vmul.f32 %v199, %v531
  %v744 = vmul.f32 %v200, %v541
  %v745 = vmul.f32 %v201, %v551
  %v746 = vmul.f32 %v202, %v561
  %v747 = vmul.f32 %v203, %v571
  %v748 = vmul.f32 %v204, %v581
  %v749 = vmul.f32 %v205, %v591
  %v750 = vmul.f32 %v206, %v601
  %v751 = vmul.f32 %v207, %v611
  %v752 = vmul.f32 %v208, %v621
  %v753 = vmul.f32 %v209, %v631
  %v754 = vmul.f32 %v210, %v641
  %v755 = vmul.f32 %v211, %v651
  %v756 = vmul.f32 %v212, %v661
  %v757 = vmul.f32 %v213, %v671
  %v758 = vmul.f32 %v214, %v681
  %v759 = vmul.f32 %v215, %v691
  %v760 = vmul.f32 %v216, %v701
  %v761 = vmul.f32 %v217, %v711
  %v762 = vmul.f32 %v218, %v721
  %v763 = vmul.f32 %v219, %v731
  %v764 = vld [vmem:[%s1] sm:$0xff]
  %v765 = vld [vmem:[%s1 + $0x8] sm:$0xff]
  %v766 = vld [vmem:[%s1 + $0x10] sm:$0xff]
  %v767 = vld [vmem:[%s1 + $0x18] sm:$0xff]
  %v768 = vld [vmem:[%s2] sm:$0x1]
  %v770 = vperm.slane %v768, 0
  %v773 = vsel %vm52, %v732, 0
  %v776 = vsel %vm52, %v733, 0
  %v779 = vsel %vm52, %v734, 0
  %v782 = vsel %vm52, %v735, 0
  %v785 = vsel %vm52, %v736, 0
  %v788 = vsel %vm52, %v737, 0
  %v791 = vsel %vm52, %v738, 0
  %v794 = vsel %vm52, %v739, 0
  %v797 = vsel %vm52, %v740, 0
  %v800 = vsel %vm52, %v741, 0
  %v803 = vsel %vm52, %v742, 0
  %v806 = vsel %vm52, %v743, 0
  %v809 = vsel %vm52, %v744, 0
  %v812 = vsel %vm52, %v745, 0
  %v815 = vsel %vm52, %v746, 0
  %v818 = vsel %vm52, %v747, 0
  %v821 = vsel %vm52, %v748, 0
  %v824 = vsel %vm52, %v749, 0
  %v827 = vsel %vm52, %v750, 0
  %v830 = vsel %vm52, %v751, 0
  %v833 = vsel %vm52, %v752, 0
  %v836 = vsel %vm52, %v753, 0
  %v839 = vsel %vm52, %v754, 0
  %v842 = vsel %vm52, %v755, 0
  %v845 = vsel %vm52, %v756, 0
  %v848 = vsel %vm52, %v757, 0
  %v851 = vsel %vm52, %v758, 0
  %v854 = vsel %vm52, %v759, 0
  %v857 = vsel %vm52, %v760, 0
  %v860 = vsel %vm52, %v761, 0
  %v863 = vsel %vm52, %v762, 0
  %v866 = vsel %vm52, %v763, 0
  %868 = vmatpush.msra.mxu0 0.0
  %869 = vmatpush.msra.mxu0 0.0
  %870 = vmatpush.msra.mxu0 0.0
  %871 = vmatpush.msra.mxu0 0.0
  %872 = vmatpush.msra.mxu0 0.0
  %873 = vmatpush.msra.mxu0 0.0
  %874 = vmatpush.msra.mxu0 0.0
  %875 = vmatpush.msra.mxu0 0.0
  %876 = vmatpush.msra.mxu0 0.0
  %877 = vmatpush.msra.mxu0 0.0
  %878 = vmatpush.msra.mxu0 0.0
  %879 = vmatpush.msra.mxu0 0.0
  %880 = vmatpush.msra.mxu0 %v767
  %881 = vmatpush.msra.mxu0 %v766
  %882 = vmatpush.msra.mxu0 %v765
  %883 = vmatpush.msra.mxu0 %v764
  %884 = vmatmul.f32.gmra.mxu0 %v773
  %v885 = vpop.f32.mrf.mxu0
  %v886 = vadd.f32 %v770, %v885
  %887 = vmatmul.f32.gmra.mxu0 %v776
  %v888 = vpop.f32.mrf.mxu0
  %v889 = vadd.f32 %v770, %v888
  %890 = vmatmul.f32.gmra.mxu0 %v779
  %v891 = vpop.f32.mrf.mxu0
  %v892 = vadd.f32 %v770, %v891
  %893 = vmatmul.f32.gmra.mxu0 %v782
  %v894 = vpop.f32.mrf.mxu0
  %v895 = vadd.f32 %v770, %v894
  %896 = vmatmul.f32.gmra.mxu0 %v785
  %v897 = vpop.f32.mrf.mxu0
  %v898 = vadd.f32 %v770, %v897
  %899 = vmatmul.f32.gmra.mxu0 %v788
  %v900 = vpop.f32.mrf.mxu0
  %v901 = vadd.f32 %v770, %v900
  %902 = vmatmul.f32.gmra.mxu0 %v791
  %v903 = vpop.f32.mrf.mxu0
  %v904 = vadd.f32 %v770, %v903
  %905 = vmatmul.f32.gmra.mxu0 %v794
  %v906 = vpop.f32.mrf.mxu0
  %v907 = vadd.f32 %v770, %v906
  %908 = vmatmul.f32.gmra.mxu0 %v797
  %v909 = vpop.f32.mrf.mxu0
  %v910 = vadd.f32 %v770, %v909
  %911 = vmatmul.f32.gmra.mxu0 %v800
  %v912 = vpop.f32.mrf.mxu0
  %v913 = vadd.f32 %v770, %v912
  %914 = vmatmul.f32.gmra.mxu0 %v803
  %v915 = vpop.f32.mrf.mxu0
  %v916 = vadd.f32 %v770, %v915
  %917 = vmatmul.f32.gmra.mxu0 %v806
  %v918 = vpop.f32.mrf.mxu0
  %v919 = vadd.f32 %v770, %v918
  %920 = vmatmul.f32.gmra.mxu0 %v809
  %v921 = vpop.f32.mrf.mxu0
  %v922 = vadd.f32 %v770, %v921
  %923 = vmatmul.f32.gmra.mxu0 %v812
  %v924 = vpop.f32.mrf.mxu0
  %v925 = vadd.f32 %v770, %v924
  %926 = vmatmul.f32.gmra.mxu0 %v815
  %v927 = vpop.f32.mrf.mxu0
  %v928 = vadd.f32 %v770, %v927
  %929 = vmatmul.f32.gmra.mxu0 %v818
  %v930 = vpop.f32.mrf.mxu0
  %v931 = vadd.f32 %v770, %v930
  %932 = vmatmul.f32.gmra.mxu0 %v821
  %v933 = vpop.f32.mrf.mxu0
  %v934 = vadd.f32 %v770, %v933
  %935 = vmatmul.f32.gmra.mxu0 %v824
  %v936 = vpop.f32.mrf.mxu0
  %v937 = vadd.f32 %v770, %v936
  %938 = vmatmul.f32.gmra.mxu0 %v827
  %v939 = vpop.f32.mrf.mxu0
  %v940 = vadd.f32 %v770, %v939
  %941 = vmatmul.f32.gmra.mxu0 %v830
  %v942 = vpop.f32.mrf.mxu0
  %v943 = vadd.f32 %v770, %v942
  %944 = vmatmul.f32.gmra.mxu0 %v833
  %v945 = vpop.f32.mrf.mxu0
  %v946 = vadd.f32 %v770, %v945
  %947 = vmatmul.f32.gmra.mxu0 %v836
  %v948 = vpop.f32.mrf.mxu0
  %v949 = vadd.f32 %v770, %v948
  %950 = vmatmul.f32.gmra.mxu0 %v839
  %v951 = vpop.f32.mrf.mxu0
  %v952 = vadd.f32 %v770, %v951
  %953 = vmatmul.f32.gmra.mxu0 %v842
  %v954 = vpop.f32.mrf.mxu0
  %v955 = vadd.f32 %v770, %v954
  %956 = vmatmul.f32.gmra.mxu0 %v845
  %v957 = vpop.f32.mrf.mxu0
  %v958 = vadd.f32 %v770, %v957
  %959 = vmatmul.f32.gmra.mxu0 %v848
  %v960 = vpop.f32.mrf.mxu0
  %v961 = vadd.f32 %v770, %v960
  %962 = vmatmul.f32.gmra.mxu0 %v851
  %v963 = vpop.f32.mrf.mxu0
  %v964 = vadd.f32 %v770, %v963
  %965 = vmatmul.f32.gmra.mxu0 %v854
  %v966 = vpop.f32.mrf.mxu0
  %v967 = vadd.f32 %v770, %v966
  %968 = vmatmul.f32.gmra.mxu0 %v857
  %v969 = vpop.f32.mrf.mxu0
  %v970 = vadd.f32 %v770, %v969
  %971 = vmatmul.f32.gmra.mxu0 %v860
  %v972 = vpop.f32.mrf.mxu0
  %v973 = vadd.f32 %v770, %v972
  %974 = vmatmul.f32.gmra.mxu0 %v863
  %v975 = vpop.f32.mrf.mxu0
  %v976 = vadd.f32 %v770, %v975
  %977 = vmatmul.f32.gmra.mxu0 %v866
  %v978 = vpop.f32.mrf.mxu0
  %v979 = vadd.f32 %v770, %v978
  %980 = vdwg.mxu0
  %v981 = vmul.f32 %v886, 0.5
  %v982 = vmul.f32 %v889, 0.5
  %v983 = vmul.f32 %v892, 0.5
  %v984 = vmul.f32 %v895, 0.5
  %v985 = vmul.f32 %v898, 0.5
  %v986 = vmul.f32 %v901, 0.5
  %v987 = vmul.f32 %v904, 0.5
  %v988 = vmul.f32 %v907, 0.5
  %v989 = vmul.f32 %v910, 0.5
  %v990 = vmul.f32 %v913, 0.5
  %v991 = vmul.f32 %v916, 0.5
  %v992 = vmul.f32 %v919, 0.5
  %v993 = vmul.f32 %v922, 0.5
  %v994 = vmul.f32 %v925, 0.5
  %v995 = vmul.f32 %v928, 0.5
  %v996 = vmul.f32 %v931, 0.5
  %v997 = vmul.f32 %v934, 0.5
  %v998 = vmul.f32 %v937, 0.5
  %v999 = vmul.f32 %v940, 0.5
  %v1000 = vmul.f32 %v943, 0.5
  %v1001 = vmul.f32 %v946, 0.5
  %v1002 = vmul.f32 %v949, 0.5
  %v1003 = vmul.f32 %v952, 0.5
  %v1004 = vmul.f32 %v955, 0.5
  %v1005 = vmul.f32 %v958, 0.5
  %v1006 = vmul.f32 %v961, 0.5
  %v1007 = vmul.f32 %v964, 0.5
  %v1008 = vmul.f32 %v967, 0.5
  %v1009 = vmul.f32 %v970, 0.5
  %v1010 = vmul.f32 %v973, 0.5
  %v1011 = vmul.f32 %v976, 0.5
  %v1012 = vmul.f32 %v979, 0.5
  %v1013 = vmul.f32 %v886, 0.70710677
  %v1014 = vmul.f32 %v889, 0.70710677
  %v1015 = vmul.f32 %v892, 0.70710677
  %v1016 = vmul.f32 %v895, 0.70710677
  %v1017 = vmul.f32 %v898, 0.70710677
  %v1018 = vmul.f32 %v901, 0.70710677
  %v1019 = vmul.f32 %v904, 0.70710677
  %v1020 = vmul.f32 %v907, 0.70710677
  %v1021 = vmul.f32 %v910, 0.70710677
  %v1022 = vmul.f32 %v913, 0.70710677
  %v1023 = vmul.f32 %v916, 0.70710677
  %v1024 = vmul.f32 %v919, 0.70710677
  %v1025 = vmul.f32 %v922, 0.70710677
  %v1026 = vmul.f32 %v925, 0.70710677
  %v1027 = vmul.f32 %v928, 0.70710677
  %v1028 = vmul.f32 %v931, 0.70710677
  %v1029 = vmul.f32 %v934, 0.70710677
  %v1030 = vmul.f32 %v937, 0.70710677
  %v1031 = vmul.f32 %v940, 0.70710677
  %v1032 = vmul.f32 %v943, 0.70710677
  %v1033 = vmul.f32 %v946, 0.70710677
  %v1034 = vmul.f32 %v949, 0.70710677
  %v1035 = vmul.f32 %v952, 0.70710677
  %v1036 = vmul.f32 %v955, 0.70710677
  %v1037 = vmul.f32 %v958, 0.70710677
  %v1038 = vmul.f32 %v961, 0.70710677
  %v1039 = vmul.f32 %v964, 0.70710677
  %v1040 = vmul.f32 %v967, 0.70710677
  %v1041 = vmul.f32 %v970, 0.70710677
  %v1042 = vmul.f32 %v973, 0.70710677
  %v1043 = vmul.f32 %v976, 0.70710677
  %v1044 = vmul.f32 %v979, 0.70710677
  %v1045 = vmul.f32 %v1013, %v1013
  %v1046 = vmin.f32 16.0, %v1045
  %v1047 = vmul.f32 %v1046, 2.1237322e-06
  %v1048 = vadd.f32 %v1047, 0.00028619796
  %v1049 = vmul.f32 %v1046, %v1048
  %v1050 = vadd.f32 %v1049, 0.0036580483
  %v1051 = vmul.f32 %v1046, %v1050
  %v1052 = vadd.f32 %v1051, 0.05243302
  %v1053 = vmul.f32 %v1046, %v1052
  %v1054 = vadd.f32 %v1053, 0.18741608
  %v1055 = vmul.f32 %v1046, %v1054
  %v1056 = vadd.f32 %v1055, 1.1283791
  %v1057 = vmul.f32 %v1013, %v1056
  %v1058 = vmul.f32 %v1046, 3.8918573e-05
  %v1059 = vadd.f32 %v1058, 0.001143296
  %v1060 = vmul.f32 %v1046, %v1059
  %v1061 = vadd.f32 %v1060, 0.014752088
  %v1062 = vmul.f32 %v1046, %v1061
  %v1063 = vadd.f32 %v1062, 0.112945676
  %v1064 = vmul.f32 %v1046, %v1063
  %v1065 = vadd.f32 %v1064, 0.4994258
  %v1066 = vmul.f32 %v1046, %v1065
  %v1067 = vadd.f32 %v1066, 1.0
  %v1068 = vrcp.pop %v1067
  %v1069 = vmul.f32 %v1067, %v1068
  %v1070 = vsub.f32 1.0, %v1069
  %v1071 = vmul.f32 %v1068, %v1070
  %v1072 = vadd.f32 %v1068, %v1071
  %vm1073 = vweird.f32 %v1067
  %vm1074 = vweird.f32 %v1068
  %vm1075 = vmor %vm1073, %vm1074
  %v1076 = vsel %vm1075, %v1068, %v1072
  %v1077 = vand.u32 2147483647, %v1067
  %vm1078 = vcmp.eq.f32.partialorder %v1077, 8.507059e+37
  %v1079 = vand.u32 %v1067, 2147483648
  %v1080 = vor.u32 1.1754944e-38, %v1079
  %v1081 = vsel %vm1078, %v1080, %v1076
  %v1082 = vmul.f32 %v1057, %v1081
  %v1083 = vmin.f32 %v1082, 1.0
  %v1084 = vmax.f32 %v1083, -1.0
  %v1085 = vmul.f32 %v1014, %v1014
  %v1086 = vmin.f32 16.0, %v1085
  %v1087 = vmul.f32 %v1086, 2.1237322e-06
  %v1088 = vadd.f32 %v1087, 0.00028619796
  %v1089 = vmul.f32 %v1086, %v1088
  %v1090 = vadd.f32 %v1089, 0.0036580483
  %v1091 = vmul.f32 %v1086, %v1090
  %v1092 = vadd.f32 %v1091, 0.05243302
  %v1093 = vmul.f32 %v1086, %v1092
  %v1094 = vadd.f32 %v1093, 0.18741608
  %v1095 = vmul.f32 %v1086, %v1094
  %v1096 = vadd.f32 %v1095, 1.1283791
  %v1097 = vmul.f32 %v1014, %v1096
  %v1098 = vmul.f32 %v1086, 3.8918573e-05
  %v1099 = vadd.f32 %v1098, 0.001143296
  %v1100 = vmul.f32 %v1086, %v1099
  %v1101 = vadd.f32 %v1100, 0.014752088
  %v1102 = vmul.f32 %v1086, %v1101
  %v1103 = vadd.f32 %v1102, 0.112945676
  %v1104 = vmul.f32 %v1086, %v1103
  %v1105 = vadd.f32 %v1104, 0.4994258
  %v1106 = vmul.f32 %v1086, %v1105
  %v1107 = vadd.f32 %v1106, 1.0
  %v1108 = vrcp.pop %v1107
  %v1109 = vmul.f32 %v1107, %v1108
  %v1110 = vsub.f32 1.0, %v1109
  %v1111 = vmul.f32 %v1108, %v1110
  %v1112 = vadd.f32 %v1108, %v1111
  %vm1113 = vweird.f32 %v1107
  %vm1114 = vweird.f32 %v1108
  %vm1115 = vmor %vm1113, %vm1114
  %v1116 = vsel %vm1115, %v1108, %v1112
  %v1117 = vand.u32 2147483647, %v1107
  %vm1118 = vcmp.eq.f32.partialorder %v1117, 8.507059e+37
  %v1119 = vand.u32 %v1107, 2147483648
  %v1120 = vor.u32 1.1754944e-38, %v1119
  %v1121 = vsel %vm1118, %v1120, %v1116
  %v1122 = vmul.f32 %v1097, %v1121
  %v1123 = vmin.f32 %v1122, 1.0
  %v1124 = vmax.f32 %v1123, -1.0
  %v1125 = vmul.f32 %v1015, %v1015
  %v1126 = vmin.f32 16.0, %v1125
  %v1127 = vmul.f32 %v1126, 2.1237322e-06
  %v1128 = vadd.f32 %v1127, 0.00028619796
  %v1129 = vmul.f32 %v1126, %v1128
  %v1130 = vadd.f32 %v1129, 0.0036580483
  %v1131 = vmul.f32 %v1126, %v1130
  %v1132 = vadd.f32 %v1131, 0.05243302
  %v1133 = vmul.f32 %v1126, %v1132
  %v1134 = vadd.f32 %v1133, 0.18741608
  %v1135 = vmul.f32 %v1126, %v1134
  %v1136 = vadd.f32 %v1135, 1.1283791
  %v1137 = vmul.f32 %v1015, %v1136
  %v1138 = vmul.f32 %v1126, 3.8918573e-05
  %v1139 = vadd.f32 %v1138, 0.001143296
  %v1140 = vmul.f32 %v1126, %v1139
  %v1141 = vadd.f32 %v1140, 0.014752088
  %v1142 = vmul.f32 %v1126, %v1141
  %v1143 = vadd.f32 %v1142, 0.112945676
  %v1144 = vmul.f32 %v1126, %v1143
  %v1145 = vadd.f32 %v1144, 0.4994258
  %v1146 = vmul.f32 %v1126, %v1145
  %v1147 = vadd.f32 %v1146, 1.0
  %v1148 = vrcp.pop %v1147
  %v1149 = vmul.f32 %v1147, %v1148
  %v1150 = vsub.f32 1.0, %v1149
  %v1151 = vmul.f32 %v1148, %v1150
  %v1152 = vadd.f32 %v1148, %v1151
  %vm1153 = vweird.f32 %v1147
  %vm1154 = vweird.f32 %v1148
  %vm1155 = vmor %vm1153, %vm1154
  %v1156 = vsel %vm1155, %v1148, %v1152
  %v1157 = vand.u32 2147483647, %v1147
  %vm1158 = vcmp.eq.f32.partialorder %v1157, 8.507059e+37
  %v1159 = vand.u32 %v1147, 2147483648
  %v1160 = vor.u32 1.1754944e-38, %v1159
  %v1161 = vsel %vm1158, %v1160, %v1156
  %v1162 = vmul.f32 %v1137, %v1161
  %v1163 = vmin.f32 %v1162, 1.0
  %v1164 = vmax.f32 %v1163, -1.0
  %v1165 = vmul.f32 %v1016, %v1016
  %v1166 = vmin.f32 16.0, %v1165
  %v1167 = vmul.f32 %v1166, 2.1237322e-06
  %v1168 = vadd.f32 %v1167, 0.00028619796
  %v1169 = vmul.f32 %v1166, %v1168
  %v1170 = vadd.f32 %v1169, 0.0036580483
  %v1171 = vmul.f32 %v1166, %v1170
  %v1172 = vadd.f32 %v1171, 0.05243302
  %v1173 = vmul.f32 %v1166, %v1172
  %v1174 = vadd.f32 %v1173, 0.18741608
  %v1175 = vmul.f32 %v1166, %v1174
  %v1176 = vadd.f32 %v1175, 1.1283791
  %v1177 = vmul.f32 %v1016, %v1176
  %v1178 = vmul.f32 %v1166, 3.8918573e-05
  %v1179 = vadd.f32 %v1178, 0.001143296
  %v1180 = vmul.f32 %v1166, %v1179
  %v1181 = vadd.f32 %v1180, 0.014752088
  %v1182 = vmul.f32 %v1166, %v1181
  %v1183 = vadd.f32 %v1182, 0.112945676
  %v1184 = vmul.f32 %v1166, %v1183
  %v1185 = vadd.f32 %v1184, 0.4994258
  %v1186 = vmul.f32 %v1166, %v1185
  %v1187 = vadd.f32 %v1186, 1.0
  %v1188 = vrcp.pop %v1187
  %v1189 = vmul.f32 %v1187, %v1188
  %v1190 = vsub.f32 1.0, %v1189
  %v1191 = vmul.f32 %v1188, %v1190
  %v1192 = vadd.f32 %v1188, %v1191
  %vm1193 = vweird.f32 %v1187
  %vm1194 = vweird.f32 %v1188
  %vm1195 = vmor %vm1193, %vm1194
  %v1196 = vsel %vm1195, %v1188, %v1192
  %v1197 = vand.u32 2147483647, %v1187
  %vm1198 = vcmp.eq.f32.partialorder %v1197, 8.507059e+37
  %v1199 = vand.u32 %v1187, 2147483648
  %v1200 = vor.u32 1.1754944e-38, %v1199
  %v1201 = vsel %vm1198, %v1200, %v1196
  %v1202 = vmul.f32 %v1177, %v1201
  %v1203 = vmin.f32 %v1202, 1.0
  %v1204 = vmax.f32 %v1203, -1.0
  %v1205 = vmul.f32 %v1017, %v1017
  %v1206 = vmin.f32 16.0, %v1205
  %v1207 = vmul.f32 %v1206, 2.1237322e-06
  %v1208 = vadd.f32 %v1207, 0.00028619796
  %v1209 = vmul.f32 %v1206, %v1208
  %v1210 = vadd.f32 %v1209, 0.0036580483
  %v1211 = vmul.f32 %v1206, %v1210
  %v1212 = vadd.f32 %v1211, 0.05243302
  %v1213 = vmul.f32 %v1206, %v1212
  %v1214 = vadd.f32 %v1213, 0.18741608
  %v1215 = vmul.f32 %v1206, %v1214
  %v1216 = vadd.f32 %v1215, 1.1283791
  %v1217 = vmul.f32 %v1017, %v1216
  %v1218 = vmul.f32 %v1206, 3.8918573e-05
  %v1219 = vadd.f32 %v1218, 0.001143296
  %v1220 = vmul.f32 %v1206, %v1219
  %v1221 = vadd.f32 %v1220, 0.014752088
  %v1222 = vmul.f32 %v1206, %v1221
  %v1223 = vadd.f32 %v1222, 0.112945676
  %v1224 = vmul.f32 %v1206, %v1223
  %v1225 = vadd.f32 %v1224, 0.4994258
  %v1226 = vmul.f32 %v1206, %v1225
  %v1227 = vadd.f32 %v1226, 1.0
  %v1228 = vrcp.pop %v1227
  %v1229 = vmul.f32 %v1227, %v1228
  %v1230 = vsub.f32 1.0, %v1229
  %v1231 = vmul.f32 %v1228, %v1230
  %v1232 = vadd.f32 %v1228, %v1231
  %vm1233 = vweird.f32 %v1227
  %vm1234 = vweird.f32 %v1228
  %vm1235 = vmor %vm1233, %vm1234
  %v1236 = vsel %vm1235, %v1228, %v1232
  %v1237 = vand.u32 2147483647, %v1227
  %vm1238 = vcmp.eq.f32.partialorder %v1237, 8.507059e+37
  %v1239 = vand.u32 %v1227, 2147483648
  %v1240 = vor.u32 1.1754944e-38, %v1239
  %v1241 = vsel %vm1238, %v1240, %v1236
  %v1242 = vmul.f32 %v1217, %v1241
  %v1243 = vmin.f32 %v1242, 1.0
  %v1244 = vmax.f32 %v1243, -1.0
  %v1245 = vmul.f32 %v1018, %v1018
  %v1246 = vmin.f32 16.0, %v1245
  %v1247 = vmul.f32 %v1246, 2.1237322e-06
  %v1248 = vadd.f32 %v1247, 0.00028619796
  %v1249 = vmul.f32 %v1246, %v1248
  %v1250 = vadd.f32 %v1249, 0.0036580483
  %v1251 = vmul.f32 %v1246, %v1250
  %v1252 = vadd.f32 %v1251, 0.05243302
  %v1253 = vmul.f32 %v1246, %v1252
  %v1254 = vadd.f32 %v1253, 0.18741608
  %v1255 = vmul.f32 %v1246, %v1254
  %v1256 = vadd.f32 %v1255, 1.1283791
  %v1257 = vmul.f32 %v1018, %v1256
  %v1258 = vmul.f32 %v1246, 3.8918573e-05
  %v1259 = vadd.f32 %v1258, 0.001143296
  %v1260 = vmul.f32 %v1246, %v1259
  %v1261 = vadd.f32 %v1260, 0.014752088
  %v1262 = vmul.f32 %v1246, %v1261
  %v1263 = vadd.f32 %v1262, 0.112945676
  %v1264 = vmul.f32 %v1246, %v1263
  %v1265 = vadd.f32 %v1264, 0.4994258
  %v1266 = vmul.f32 %v1246, %v1265
  %v1267 = vadd.f32 %v1266, 1.0
  %v1268 = vrcp.pop %v1267
  %v1269 = vmul.f32 %v1267, %v1268
  %v1270 = vsub.f32 1.0, %v1269
  %v1271 = vmul.f32 %v1268, %v1270
  %v1272 = vadd.f32 %v1268, %v1271
  %vm1273 = vweird.f32 %v1267
  %vm1274 = vweird.f32 %v1268
  %vm1275 = vmor %vm1273, %vm1274
  %v1276 = vsel %vm1275, %v1268, %v1272
  %v1277 = vand.u32 2147483647, %v1267
  %vm1278 = vcmp.eq.f32.partialorder %v1277, 8.507059e+37
  %v1279 = vand.u32 %v1267, 2147483648
  %v1280 = vor.u32 1.1754944e-38, %v1279
  %v1281 = vsel %vm1278, %v1280, %v1276
  %v1282 = vmul.f32 %v1257, %v1281
  %v1283 = vmin.f32 %v1282, 1.0
  %v1284 = vmax.f32 %v1283, -1.0
  %v1285 = vmul.f32 %v1019, %v1019
  %v1286 = vmin.f32 16.0, %v1285
  %v1287 = vmul.f32 %v1286, 2.1237322e-06
  %v1288 = vadd.f32 %v1287, 0.00028619796
  %v1289 = vmul.f32 %v1286, %v1288
  %v1290 = vadd.f32 %v1289, 0.0036580483
  %v1291 = vmul.f32 %v1286, %v1290
  %v1292 = vadd.f32 %v1291, 0.05243302
  %v1293 = vmul.f32 %v1286, %v1292
  %v1294 = vadd.f32 %v1293, 0.18741608
  %v1295 = vmul.f32 %v1286, %v1294
  %v1296 = vadd.f32 %v1295, 1.1283791
  %v1297 = vmul.f32 %v1019, %v1296
  %v1298 = vmul.f32 %v1286, 3.8918573e-05
  %v1299 = vadd.f32 %v1298, 0.001143296
  %v1300 = vmul.f32 %v1286, %v1299
  %v1301 = vadd.f32 %v1300, 0.014752088
  %v1302 = vmul.f32 %v1286, %v1301
  %v1303 = vadd.f32 %v1302, 0.112945676
  %v1304 = vmul.f32 %v1286, %v1303
  %v1305 = vadd.f32 %v1304, 0.4994258
  %v1306 = vmul.f32 %v1286, %v1305
  %v1307 = vadd.f32 %v1306, 1.0
  %v1308 = vrcp.pop %v1307
  %v1309 = vmul.f32 %v1307, %v1308
  %v1310 = vsub.f32 1.0, %v1309
  %v1311 = vmul.f32 %v1308, %v1310
  %v1312 = vadd.f32 %v1308, %v1311
  %vm1313 = vweird.f32 %v1307
  %vm1314 = vweird.f32 %v1308
  %vm1315 = vmor %vm1313, %vm1314
  %v1316 = vsel %vm1315, %v1308, %v1312
  %v1317 = vand.u32 2147483647, %v1307
  %vm1318 = vcmp.eq.f32.partialorder %v1317, 8.507059e+37
  %v1319 = vand.u32 %v1307, 2147483648
  %v1320 = vor.u32 1.1754944e-38, %v1319
  %v1321 = vsel %vm1318, %v1320, %v1316
  %v1322 = vmul.f32 %v1297, %v1321
  %v1323 = vmin.f32 %v1322, 1.0
  %v1324 = vmax.f32 %v1323, -1.0
  %v1325 = vmul.f32 %v1020, %v1020
  %v1326 = vmin.f32 16.0, %v1325
  %v1327 = vmul.f32 %v1326, 2.1237322e-06
  %v1328 = vadd.f32 %v1327, 0.00028619796
  %v1329 = vmul.f32 %v1326, %v1328
  %v1330 = vadd.f32 %v1329, 0.0036580483
  %v1331 = vmul.f32 %v1326, %v1330
  %v1332 = vadd.f32 %v1331, 0.05243302
  %v1333 = vmul.f32 %v1326, %v1332
  %v1334 = vadd.f32 %v1333, 0.18741608
  %v1335 = vmul.f32 %v1326, %v1334
  %v1336 = vadd.f32 %v1335, 1.1283791
  %v1337 = vmul.f32 %v1020, %v1336
  %v1338 = vmul.f32 %v1326, 3.8918573e-05
  %v1339 = vadd.f32 %v1338, 0.001143296
  %v1340 = vmul.f32 %v1326, %v1339
  %v1341 = vadd.f32 %v1340, 0.014752088
  %v1342 = vmul.f32 %v1326, %v1341
  %v1343 = vadd.f32 %v1342, 0.112945676
  %v1344 = vmul.f32 %v1326, %v1343
  %v1345 = vadd.f32 %v1344, 0.4994258
  %v1346 = vmul.f32 %v1326, %v1345
  %v1347 = vadd.f32 %v1346, 1.0
  %v1348 = vrcp.pop %v1347
  %v1349 = vmul.f32 %v1347, %v1348
  %v1350 = vsub.f32 1.0, %v1349
  %v1351 = vmul.f32 %v1348, %v1350
  %v1352 = vadd.f32 %v1348, %v1351
  %vm1353 = vweird.f32 %v1347
  %vm1354 = vweird.f32 %v1348
  %vm1355 = vmor %vm1353, %vm1354
  %v1356 = vsel %vm1355, %v1348, %v1352
  %v1357 = vand.u32 2147483647, %v1347
  %vm1358 = vcmp.eq.f32.partialorder %v1357, 8.507059e+37
  %v1359 = vand.u32 %v1347, 2147483648
  %v1360 = vor.u32 1.1754944e-38, %v1359
  %v1361 = vsel %vm1358, %v1360, %v1356
  %v1362 = vmul.f32 %v1337, %v1361
  %v1363 = vmin.f32 %v1362, 1.0
  %v1364 = vmax.f32 %v1363, -1.0
  %v1365 = vmul.f32 %v1021, %v1021
  %v1366 = vmin.f32 16.0, %v1365
  %v1367 = vmul.f32 %v1366, 2.1237322e-06
  %v1368 = vadd.f32 %v1367, 0.00028619796
  %v1369 = vmul.f32 %v1366, %v1368
  %v1370 = vadd.f32 %v1369, 0.0036580483
  %v1371 = vmul.f32 %v1366, %v1370
  %v1372 = vadd.f32 %v1371, 0.05243302
  %v1373 = vmul.f32 %v1366, %v1372
  %v1374 = vadd.f32 %v1373, 0.18741608
  %v1375 = vmul.f32 %v1366, %v1374
  %v1376 = vadd.f32 %v1375, 1.1283791
  %v1377 = vmul.f32 %v1021, %v1376
  %v1378 = vmul.f32 %v1366, 3.8918573e-05
  %v1379 = vadd.f32 %v1378, 0.001143296
  %v1380 = vmul.f32 %v1366, %v1379
  %v1381 = vadd.f32 %v1380, 0.014752088
  %v1382 = vmul.f32 %v1366, %v1381
  %v1383 = vadd.f32 %v1382, 0.112945676
  %v1384 = vmul.f32 %v1366, %v1383
  %v1385 = vadd.f32 %v1384, 0.4994258
  %v1386 = vmul.f32 %v1366, %v1385
  %v1387 = vadd.f32 %v1386, 1.0
  %v1388 = vrcp.pop %v1387
  %v1389 = vmul.f32 %v1387, %v1388
  %v1390 = vsub.f32 1.0, %v1389
  %v1391 = vmul.f32 %v1388, %v1390
  %v1392 = vadd.f32 %v1388, %v1391
  %vm1393 = vweird.f32 %v1387
  %vm1394 = vweird.f32 %v1388
  %vm1395 = vmor %vm1393, %vm1394
  %v1396 = vsel %vm1395, %v1388, %v1392
  %v1397 = vand.u32 2147483647, %v1387
  %vm1398 = vcmp.eq.f32.partialorder %v1397, 8.507059e+37
  %v1399 = vand.u32 %v1387, 2147483648
  %v1400 = vor.u32 1.1754944e-38, %v1399
  %v1401 = vsel %vm1398, %v1400, %v1396
  %v1402 = vmul.f32 %v1377, %v1401
  %v1403 = vmin.f32 %v1402, 1.0
  %v1404 = vmax.f32 %v1403, -1.0
  %v1405 = vmul.f32 %v1022, %v1022
  %v1406 = vmin.f32 16.0, %v1405
  %v1407 = vmul.f32 %v1406, 2.1237322e-06
  %v1408 = vadd.f32 %v1407, 0.00028619796
  %v1409 = vmul.f32 %v1406, %v1408
  %v1410 = vadd.f32 %v1409, 0.0036580483
  %v1411 = vmul.f32 %v1406, %v1410
  %v1412 = vadd.f32 %v1411, 0.05243302
  %v1413 = vmul.f32 %v1406, %v1412
  %v1414 = vadd.f32 %v1413, 0.18741608
  %v1415 = vmul.f32 %v1406, %v1414
  %v1416 = vadd.f32 %v1415, 1.1283791
  %v1417 = vmul.f32 %v1022, %v1416
  %v1418 = vmul.f32 %v1406, 3.8918573e-05
  %v1419 = vadd.f32 %v1418, 0.001143296
  %v1420 = vmul.f32 %v1406, %v1419
  %v1421 = vadd.f32 %v1420, 0.014752088
  %v1422 = vmul.f32 %v1406, %v1421
  %v1423 = vadd.f32 %v1422, 0.112945676
  %v1424 = vmul.f32 %v1406, %v1423
  %v1425 = vadd.f32 %v1424, 0.4994258
  %v1426 = vmul.f32 %v1406, %v1425
  %v1427 = vadd.f32 %v1426, 1.0
  %v1428 = vrcp.pop %v1427
  %v1429 = vmul.f32 %v1427, %v1428
  %v1430 = vsub.f32 1.0, %v1429
  %v1431 = vmul.f32 %v1428, %v1430
  %v1432 = vadd.f32 %v1428, %v1431
  %vm1433 = vweird.f32 %v1427
  %vm1434 = vweird.f32 %v1428
  %vm1435 = vmor %vm1433, %vm1434
  %v1436 = vsel %vm1435, %v1428, %v1432
  %v1437 = vand.u32 2147483647, %v1427
  %vm1438 = vcmp.eq.f32.partialorder %v1437, 8.507059e+37
  %v1439 = vand.u32 %v1427, 2147483648
  %v1440 = vor.u32 1.1754944e-38, %v1439
  %v1441 = vsel %vm1438, %v1440, %v1436
  %v1442 = vmul.f32 %v1417, %v1441
  %v1443 = vmin.f32 %v1442, 1.0
  %v1444 = vmax.f32 %v1443, -1.0
  %v1445 = vmul.f32 %v1023, %v1023
  %v1446 = vmin.f32 16.0, %v1445
  %v1447 = vmul.f32 %v1446, 2.1237322e-06
  %v1448 = vadd.f32 %v1447, 0.00028619796
  %v1449 = vmul.f32 %v1446, %v1448
  %v1450 = vadd.f32 %v1449, 0.0036580483
  %v1451 = vmul.f32 %v1446, %v1450
  %v1452 = vadd.f32 %v1451, 0.05243302
  %v1453 = vmul.f32 %v1446, %v1452
  %v1454 = vadd.f32 %v1453, 0.18741608
  %v1455 = vmul.f32 %v1446, %v1454
  %v1456 = vadd.f32 %v1455, 1.1283791
  %v1457 = vmul.f32 %v1023, %v1456
  %v1458 = vmul.f32 %v1446, 3.8918573e-05
  %v1459 = vadd.f32 %v1458, 0.001143296
  %v1460 = vmul.f32 %v1446, %v1459
  %v1461 = vadd.f32 %v1460, 0.014752088
  %v1462 = vmul.f32 %v1446, %v1461
  %v1463 = vadd.f32 %v1462, 0.112945676
  %v1464 = vmul.f32 %v1446, %v1463
  %v1465 = vadd.f32 %v1464, 0.4994258
  %v1466 = vmul.f32 %v1446, %v1465
  %v1467 = vadd.f32 %v1466, 1.0
  %v1468 = vrcp.pop %v1467
  %v1469 = vmul.f32 %v1467, %v1468
  %v1470 = vsub.f32 1.0, %v1469
  %v1471 = vmul.f32 %v1468, %v1470
  %v1472 = vadd.f32 %v1468, %v1471
  %vm1473 = vweird.f32 %v1467
  %vm1474 = vweird.f32 %v1468
  %vm1475 = vmor %vm1473, %vm1474
  %v1476 = vsel %vm1475, %v1468, %v1472
  %v1477 = vand.u32 2147483647, %v1467
  %vm1478 = vcmp.eq.f32.partialorder %v1477, 8.507059e+37
  %v1479 = vand.u32 %v1467, 2147483648
  %v1480 = vor.u32 1.1754944e-38, %v1479
  %v1481 = vsel %vm1478, %v1480, %v1476
  %v1482 = vmul.f32 %v1457, %v1481
  %v1483 = vmin.f32 %v1482, 1.0
  %v1484 = vmax.f32 %v1483, -1.0
  %v1485 = vmul.f32 %v1024, %v1024
  %v1486 = vmin.f32 16.0, %v1485
  %v1487 = vmul.f32 %v1486, 2.1237322e-06
  %v1488 = vadd.f32 %v1487, 0.00028619796
  %v1489 = vmul.f32 %v1486, %v1488
  %v1490 = vadd.f32 %v1489, 0.0036580483
  %v1491 = vmul.f32 %v1486, %v1490
  %v1492 = vadd.f32 %v1491, 0.05243302
  %v1493 = vmul.f32 %v1486, %v1492
  %v1494 = vadd.f32 %v1493, 0.18741608
  %v1495 = vmul.f32 %v1486, %v1494
  %v1496 = vadd.f32 %v1495, 1.1283791
  %v1497 = vmul.f32 %v1024, %v1496
  %v1498 = vmul.f32 %v1486, 3.8918573e-05
  %v1499 = vadd.f32 %v1498, 0.001143296
  %v1500 = vmul.f32 %v1486, %v1499
  %v1501 = vadd.f32 %v1500, 0.014752088
  %v1502 = vmul.f32 %v1486, %v1501
  %v1503 = vadd.f32 %v1502, 0.112945676
  %v1504 = vmul.f32 %v1486, %v1503
  %v1505 = vadd.f32 %v1504, 0.4994258
  %v1506 = vmul.f32 %v1486, %v1505
  %v1507 = vadd.f32 %v1506, 1.0
  %v1508 = vrcp.pop %v1507
  %v1509 = vmul.f32 %v1507, %v1508
  %v1510 = vsub.f32 1.0, %v1509
  %v1511 = vmul.f32 %v1508, %v1510
  %v1512 = vadd.f32 %v1508, %v1511
  %vm1513 = vweird.f32 %v1507
  %vm1514 = vweird.f32 %v1508
  %vm1515 = vmor %vm1513, %vm1514
  %v1516 = vsel %vm1515, %v1508, %v1512
  %v1517 = vand.u32 2147483647, %v1507
  %vm1518 = vcmp.eq.f32.partialorder %v1517, 8.507059e+37
  %v1519 = vand.u32 %v1507, 2147483648
  %v1520 = vor.u32 1.1754944e-38, %v1519
  %v1521 = vsel %vm1518, %v1520, %v1516
  %v1522 = vmul.f32 %v1497, %v1521
  %v1523 = vmin.f32 %v1522, 1.0
  %v1524 = vmax.f32 %v1523, -1.0
  %v1525 = vmul.f32 %v1025, %v1025
  %v1526 = vmin.f32 16.0, %v1525
  %v1527 = vmul.f32 %v1526, 2.1237322e-06
  %v1528 = vadd.f32 %v1527, 0.00028619796
  %v1529 = vmul.f32 %v1526, %v1528
  %v1530 = vadd.f32 %v1529, 0.0036580483
  %v1531 = vmul.f32 %v1526, %v1530
  %v1532 = vadd.f32 %v1531, 0.05243302
  %v1533 = vmul.f32 %v1526, %v1532
  %v1534 = vadd.f32 %v1533, 0.18741608
  %v1535 = vmul.f32 %v1526, %v1534
  %v1536 = vadd.f32 %v1535, 1.1283791
  %v1537 = vmul.f32 %v1025, %v1536
  %v1538 = vmul.f32 %v1526, 3.8918573e-05
  %v1539 = vadd.f32 %v1538, 0.001143296
  %v1540 = vmul.f32 %v1526, %v1539
  %v1541 = vadd.f32 %v1540, 0.014752088
  %v1542 = vmul.f32 %v1526, %v1541
  %v1543 = vadd.f32 %v1542, 0.112945676
  %v1544 = vmul.f32 %v1526, %v1543
  %v1545 = vadd.f32 %v1544, 0.4994258
  %v1546 = vmul.f32 %v1526, %v1545
  %v1547 = vadd.f32 %v1546, 1.0
  %v1548 = vrcp.pop %v1547
  %v1549 = vmul.f32 %v1547, %v1548
  %v1550 = vsub.f32 1.0, %v1549
  %v1551 = vmul.f32 %v1548, %v1550
  %v1552 = vadd.f32 %v1548, %v1551
  %vm1553 = vweird.f32 %v1547
  %vm1554 = vweird.f32 %v1548
  %vm1555 = vmor %vm1553, %vm1554
  %v1556 = vsel %vm1555, %v1548, %v1552
  %v1557 = vand.u32 2147483647, %v1547
  %vm1558 = vcmp.eq.f32.partialorder %v1557, 8.507059e+37
  %v1559 = vand.u32 %v1547, 2147483648
  %v1560 = vor.u32 1.1754944e-38, %v1559
  %v1561 = vsel %vm1558, %v1560, %v1556
  %v1562 = vmul.f32 %v1537, %v1561
  %v1563 = vmin.f32 %v1562, 1.0
  %v1564 = vmax.f32 %v1563, -1.0
  %v1565 = vmul.f32 %v1026, %v1026
  %v1566 = vmin.f32 16.0, %v1565
  %v1567 = vmul.f32 %v1566, 2.1237322e-06
  %v1568 = vadd.f32 %v1567, 0.00028619796
  %v1569 = vmul.f32 %v1566, %v1568
  %v1570 = vadd.f32 %v1569, 0.0036580483
  %v1571 = vmul.f32 %v1566, %v1570
  %v1572 = vadd.f32 %v1571, 0.05243302
  %v1573 = vmul.f32 %v1566, %v1572
  %v1574 = vadd.f32 %v1573, 0.18741608
  %v1575 = vmul.f32 %v1566, %v1574
  %v1576 = vadd.f32 %v1575, 1.1283791
  %v1577 = vmul.f32 %v1026, %v1576
  %v1578 = vmul.f32 %v1566, 3.8918573e-05
  %v1579 = vadd.f32 %v1578, 0.001143296
  %v1580 = vmul.f32 %v1566, %v1579
  %v1581 = vadd.f32 %v1580, 0.014752088
  %v1582 = vmul.f32 %v1566, %v1581
  %v1583 = vadd.f32 %v1582, 0.112945676
  %v1584 = vmul.f32 %v1566, %v1583
  %v1585 = vadd.f32 %v1584, 0.4994258
  %v1586 = vmul.f32 %v1566, %v1585
  %v1587 = vadd.f32 %v1586, 1.0
  %v1588 = vrcp.pop %v1587
  %v1589 = vmul.f32 %v1587, %v1588
  %v1590 = vsub.f32 1.0, %v1589
  %v1591 = vmul.f32 %v1588, %v1590
  %v1592 = vadd.f32 %v1588, %v1591
  %vm1593 = vweird.f32 %v1587
  %vm1594 = vweird.f32 %v1588
  %vm1595 = vmor %vm1593, %vm1594
  %v1596 = vsel %vm1595, %v1588, %v1592
  %v1597 = vand.u32 2147483647, %v1587
  %vm1598 = vcmp.eq.f32.partialorder %v1597, 8.507059e+37
  %v1599 = vand.u32 %v1587, 2147483648
  %v1600 = vor.u32 1.1754944e-38, %v1599
  %v1601 = vsel %vm1598, %v1600, %v1596
  %v1602 = vmul.f32 %v1577, %v1601
  %v1603 = vmin.f32 %v1602, 1.0
  %v1604 = vmax.f32 %v1603, -1.0
  %v1605 = vmul.f32 %v1027, %v1027
  %v1606 = vmin.f32 16.0, %v1605
  %v1607 = vmul.f32 %v1606, 2.1237322e-06
  %v1608 = vadd.f32 %v1607, 0.00028619796
  %v1609 = vmul.f32 %v1606, %v1608
  %v1610 = vadd.f32 %v1609, 0.0036580483
  %v1611 = vmul.f32 %v1606, %v1610
  %v1612 = vadd.f32 %v1611, 0.05243302
  %v1613 = vmul.f32 %v1606, %v1612
  %v1614 = vadd.f32 %v1613, 0.18741608
  %v1615 = vmul.f32 %v1606, %v1614
  %v1616 = vadd.f32 %v1615, 1.1283791
  %v1617 = vmul.f32 %v1027, %v1616
  %v1618 = vmul.f32 %v1606, 3.8918573e-05
  %v1619 = vadd.f32 %v1618, 0.001143296
  %v1620 = vmul.f32 %v1606, %v1619
  %v1621 = vadd.f32 %v1620, 0.014752088
  %v1622 = vmul.f32 %v1606, %v1621
  %v1623 = vadd.f32 %v1622, 0.112945676
  %v1624 = vmul.f32 %v1606, %v1623
  %v1625 = vadd.f32 %v1624, 0.4994258
  %v1626 = vmul.f32 %v1606, %v1625
  %v1627 = vadd.f32 %v1626, 1.0
  %v1628 = vrcp.pop %v1627
  %v1629 = vmul.f32 %v1627, %v1628
  %v1630 = vsub.f32 1.0, %v1629
  %v1631 = vmul.f32 %v1628, %v1630
  %v1632 = vadd.f32 %v1628, %v1631
  %vm1633 = vweird.f32 %v1627
  %vm1634 = vweird.f32 %v1628
  %vm1635 = vmor %vm1633, %vm1634
  %v1636 = vsel %vm1635, %v1628, %v1632
  %v1637 = vand.u32 2147483647, %v1627
  %vm1638 = vcmp.eq.f32.partialorder %v1637, 8.507059e+37
  %v1639 = vand.u32 %v1627, 2147483648
  %v1640 = vor.u32 1.1754944e-38, %v1639
  %v1641 = vsel %vm1638, %v1640, %v1636
  %v1642 = vmul.f32 %v1617, %v1641
  %v1643 = vmin.f32 %v1642, 1.0
  %v1644 = vmax.f32 %v1643, -1.0
  %v1645 = vmul.f32 %v1028, %v1028
  %v1646 = vmin.f32 16.0, %v1645
  %v1647 = vmul.f32 %v1646, 2.1237322e-06
  %v1648 = vadd.f32 %v1647, 0.00028619796
  %v1649 = vmul.f32 %v1646, %v1648
  %v1650 = vadd.f32 %v1649, 0.0036580483
  %v1651 = vmul.f32 %v1646, %v1650
  %v1652 = vadd.f32 %v1651, 0.05243302
  %v1653 = vmul.f32 %v1646, %v1652
  %v1654 = vadd.f32 %v1653, 0.18741608
  %v1655 = vmul.f32 %v1646, %v1654
  %v1656 = vadd.f32 %v1655, 1.1283791
  %v1657 = vmul.f32 %v1028, %v1656
  %v1658 = vmul.f32 %v1646, 3.8918573e-05
  %v1659 = vadd.f32 %v1658, 0.001143296
  %v1660 = vmul.f32 %v1646, %v1659
  %v1661 = vadd.f32 %v1660, 0.014752088
  %v1662 = vmul.f32 %v1646, %v1661
  %v1663 = vadd.f32 %v1662, 0.112945676
  %v1664 = vmul.f32 %v1646, %v1663
  %v1665 = vadd.f32 %v1664, 0.4994258
  %v1666 = vmul.f32 %v1646, %v1665
  %v1667 = vadd.f32 %v1666, 1.0
  %v1668 = vrcp.pop %v1667
  %v1669 = vmul.f32 %v1667, %v1668
  %v1670 = vsub.f32 1.0, %v1669
  %v1671 = vmul.f32 %v1668, %v1670
  %v1672 = vadd.f32 %v1668, %v1671
  %vm1673 = vweird.f32 %v1667
  %vm1674 = vweird.f32 %v1668
  %vm1675 = vmor %vm1673, %vm1674
  %v1676 = vsel %vm1675, %v1668, %v1672
  %v1677 = vand.u32 2147483647, %v1667
  %vm1678 = vcmp.eq.f32.partialorder %v1677, 8.507059e+37
  %v1679 = vand.u32 %v1667, 2147483648
  %v1680 = vor.u32 1.1754944e-38, %v1679
  %v1681 = vsel %vm1678, %v1680, %v1676
  %v1682 = vmul.f32 %v1657, %v1681
  %v1683 = vmin.f32 %v1682, 1.0
  %v1684 = vmax.f32 %v1683, -1.0
  %v1685 = vmul.f32 %v1029, %v1029
  %v1686 = vmin.f32 16.0, %v1685
  %v1687 = vmul.f32 %v1686, 2.1237322e-06
  %v1688 = vadd.f32 %v1687, 0.00028619796
  %v1689 = vmul.f32 %v1686, %v1688
  %v1690 = vadd.f32 %v1689, 0.0036580483
  %v1691 = vmul.f32 %v1686, %v1690
  %v1692 = vadd.f32 %v1691, 0.05243302
  %v1693 = vmul.f32 %v1686, %v1692
  %v1694 = vadd.f32 %v1693, 0.18741608
  %v1695 = vmul.f32 %v1686, %v1694
  %v1696 = vadd.f32 %v1695, 1.1283791
  %v1697 = vmul.f32 %v1029, %v1696
  %v1698 = vmul.f32 %v1686, 3.8918573e-05
  %v1699 = vadd.f32 %v1698, 0.001143296
  %v1700 = vmul.f32 %v1686, %v1699
  %v1701 = vadd.f32 %v1700, 0.014752088
  %v1702 = vmul.f32 %v1686, %v1701
  %v1703 = vadd.f32 %v1702, 0.112945676
  %v1704 = vmul.f32 %v1686, %v1703
  %v1705 = vadd.f32 %v1704, 0.4994258
  %v1706 = vmul.f32 %v1686, %v1705
  %v1707 = vadd.f32 %v1706, 1.0
  %v1708 = vrcp.pop %v1707
  %v1709 = vmul.f32 %v1707, %v1708
  %v1710 = vsub.f32 1.0, %v1709
  %v1711 = vmul.f32 %v1708, %v1710
  %v1712 = vadd.f32 %v1708, %v1711
  %vm1713 = vweird.f32 %v1707
  %vm1714 = vweird.f32 %v1708
  %vm1715 = vmor %vm1713, %vm1714
  %v1716 = vsel %vm1715, %v1708, %v1712
  %v1717 = vand.u32 2147483647, %v1707
  %vm1718 = vcmp.eq.f32.partialorder %v1717, 8.507059e+37
  %v1719 = vand.u32 %v1707, 2147483648
  %v1720 = vor.u32 1.1754944e-38, %v1719
  %v1721 = vsel %vm1718, %v1720, %v1716
  %v1722 = vmul.f32 %v1697, %v1721
  %v1723 = vmin.f32 %v1722, 1.0
  %v1724 = vmax.f32 %v1723, -1.0
  %v1725 = vmul.f32 %v1030, %v1030
  %v1726 = vmin.f32 16.0, %v1725
  %v1727 = vmul.f32 %v1726, 2.1237322e-06
  %v1728 = vadd.f32 %v1727, 0.00028619796
  %v1729 = vmul.f32 %v1726, %v1728
  %v1730 = vadd.f32 %v1729, 0.0036580483
  %v1731 = vmul.f32 %v1726, %v1730
  %v1732 = vadd.f32 %v1731, 0.05243302
  %v1733 = vmul.f32 %v1726, %v1732
  %v1734 = vadd.f32 %v1733, 0.18741608
  %v1735 = vmul.f32 %v1726, %v1734
  %v1736 = vadd.f32 %v1735, 1.1283791
  %v1737 = vmul.f32 %v1030, %v1736
  %v1738 = vmul.f32 %v1726, 3.8918573e-05
  %v1739 = vadd.f32 %v1738, 0.001143296
  %v1740 = vmul.f32 %v1726, %v1739
  %v1741 = vadd.f32 %v1740, 0.014752088
  %v1742 = vmul.f32 %v1726, %v1741
  %v1743 = vadd.f32 %v1742, 0.112945676
  %v1744 = vmul.f32 %v1726, %v1743
  %v1745 = vadd.f32 %v1744, 0.4994258
  %v1746 = vmul.f32 %v1726, %v1745
  %v1747 = vadd.f32 %v1746, 1.0
  %v1748 = vrcp.pop %v1747
  %v1749 = vmul.f32 %v1747, %v1748
  %v1750 = vsub.f32 1.0, %v1749
  %v1751 = vmul.f32 %v1748, %v1750
  %v1752 = vadd.f32 %v1748, %v1751
  %vm1753 = vweird.f32 %v1747
  %vm1754 = vweird.f32 %v1748
  %vm1755 = vmor %vm1753, %vm1754
  %v1756 = vsel %vm1755, %v1748, %v1752
  %v1757 = vand.u32 2147483647, %v1747
  %vm1758 = vcmp.eq.f32.partialorder %v1757, 8.507059e+37
  %v1759 = vand.u32 %v1747, 2147483648
  %v1760 = vor.u32 1.1754944e-38, %v1759
  %v1761 = vsel %vm1758, %v1760, %v1756
  %v1762 = vmul.f32 %v1737, %v1761
  %v1763 = vmin.f32 %v1762, 1.0
  %v1764 = vmax.f32 %v1763, -1.0
  %v1765 = vmul.f32 %v1031, %v1031
  %v1766 = vmin.f32 16.0, %v1765
  %v1767 = vmul.f32 %v1766, 2.1237322e-06
  %v1768 = vadd.f32 %v1767, 0.00028619796
  %v1769 = vmul.f32 %v1766, %v1768
  %v1770 = vadd.f32 %v1769, 0.0036580483
  %v1771 = vmul.f32 %v1766, %v1770
  %v1772 = vadd.f32 %v1771, 0.05243302
  %v1773 = vmul.f32 %v1766, %v1772
  %v1774 = vadd.f32 %v1773, 0.18741608
  %v1775 = vmul.f32 %v1766, %v1774
  %v1776 = vadd.f32 %v1775, 1.1283791
  %v1777 = vmul.f32 %v1031, %v1776
  %v1778 = vmul.f32 %v1766, 3.8918573e-05
  %v1779 = vadd.f32 %v1778, 0.001143296
  %v1780 = vmul.f32 %v1766, %v1779
  %v1781 = vadd.f32 %v1780, 0.014752088
  %v1782 = vmul.f32 %v1766, %v1781
  %v1783 = vadd.f32 %v1782, 0.112945676
  %v1784 = vmul.f32 %v1766, %v1783
  %v1785 = vadd.f32 %v1784, 0.4994258
  %v1786 = vmul.f32 %v1766, %v1785
  %v1787 = vadd.f32 %v1786, 1.0
  %v1788 = vrcp.pop %v1787
  %v1789 = vmul.f32 %v1787, %v1788
  %v1790 = vsub.f32 1.0, %v1789
  %v1791 = vmul.f32 %v1788, %v1790
  %v1792 = vadd.f32 %v1788, %v1791
  %vm1793 = vweird.f32 %v1787
  %vm1794 = vweird.f32 %v1788
  %vm1795 = vmor %vm1793, %vm1794
  %v1796 = vsel %vm1795, %v1788, %v1792
  %v1797 = vand.u32 2147483647, %v1787
  %vm1798 = vcmp.eq.f32.partialorder %v1797, 8.507059e+37
  %v1799 = vand.u32 %v1787, 2147483648
  %v1800 = vor.u32 1.1754944e-38, %v1799
  %v1801 = vsel %vm1798, %v1800, %v1796
  %v1802 = vmul.f32 %v1777, %v1801
  %v1803 = vmin.f32 %v1802, 1.0
  %v1804 = vmax.f32 %v1803, -1.0
  %v1805 = vmul.f32 %v1032, %v1032
  %v1806 = vmin.f32 16.0, %v1805
  %v1807 = vmul.f32 %v1806, 2.1237322e-06
  %v1808 = vadd.f32 %v1807, 0.00028619796
  %v1809 = vmul.f32 %v1806, %v1808
  %v1810 = vadd.f32 %v1809, 0.0036580483
  %v1811 = vmul.f32 %v1806, %v1810
  %v1812 = vadd.f32 %v1811, 0.05243302
  %v1813 = vmul.f32 %v1806, %v1812
  %v1814 = vadd.f32 %v1813, 0.18741608
  %v1815 = vmul.f32 %v1806, %v1814
  %v1816 = vadd.f32 %v1815, 1.1283791
  %v1817 = vmul.f32 %v1032, %v1816
  %v1818 = vmul.f32 %v1806, 3.8918573e-05
  %v1819 = vadd.f32 %v1818, 0.001143296
  %v1820 = vmul.f32 %v1806, %v1819
  %v1821 = vadd.f32 %v1820, 0.014752088
  %v1822 = vmul.f32 %v1806, %v1821
  %v1823 = vadd.f32 %v1822, 0.112945676
  %v1824 = vmul.f32 %v1806, %v1823
  %v1825 = vadd.f32 %v1824, 0.4994258
  %v1826 = vmul.f32 %v1806, %v1825
  %v1827 = vadd.f32 %v1826, 1.0
  %v1828 = vrcp.pop %v1827
  %v1829 = vmul.f32 %v1827, %v1828
  %v1830 = vsub.f32 1.0, %v1829
  %v1831 = vmul.f32 %v1828, %v1830
  %v1832 = vadd.f32 %v1828, %v1831
  %vm1833 = vweird.f32 %v1827
  %vm1834 = vweird.f32 %v1828
  %vm1835 = vmor %vm1833, %vm1834
  %v1836 = vsel %vm1835, %v1828, %v1832
  %v1837 = vand.u32 2147483647, %v1827
  %vm1838 = vcmp.eq.f32.partialorder %v1837, 8.507059e+37
  %v1839 = vand.u32 %v1827, 2147483648
  %v1840 = vor.u32 1.1754944e-38, %v1839
  %v1841 = vsel %vm1838, %v1840, %v1836
  %v1842 = vmul.f32 %v1817, %v1841
  %v1843 = vmin.f32 %v1842, 1.0
  %v1844 = vmax.f32 %v1843, -1.0
  %v1845 = vmul.f32 %v1033, %v1033
  %v1846 = vmin.f32 16.0, %v1845
  %v1847 = vmul.f32 %v1846, 2.1237322e-06
  %v1848 = vadd.f32 %v1847, 0.00028619796
  %v1849 = vmul.f32 %v1846, %v1848
  %v1850 = vadd.f32 %v1849, 0.0036580483
  %v1851 = vmul.f32 %v1846, %v1850
  %v1852 = vadd.f32 %v1851, 0.05243302
  %v1853 = vmul.f32 %v1846, %v1852
  %v1854 = vadd.f32 %v1853, 0.18741608
  %v1855 = vmul.f32 %v1846, %v1854
  %v1856 = vadd.f32 %v1855, 1.1283791
  %v1857 = vmul.f32 %v1033, %v1856
  %v1858 = vmul.f32 %v1846, 3.8918573e-05
  %v1859 = vadd.f32 %v1858, 0.001143296
  %v1860 = vmul.f32 %v1846, %v1859
  %v1861 = vadd.f32 %v1860, 0.014752088
  %v1862 = vmul.f32 %v1846, %v1861
  %v1863 = vadd.f32 %v1862, 0.112945676
  %v1864 = vmul.f32 %v1846, %v1863
  %v1865 = vadd.f32 %v1864, 0.4994258
  %v1866 = vmul.f32 %v1846, %v1865
  %v1867 = vadd.f32 %v1866, 1.0
  %v1868 = vrcp.pop %v1867
  %v1869 = vmul.f32 %v1867, %v1868
  %v1870 = vsub.f32 1.0, %v1869
  %v1871 = vmul.f32 %v1868, %v1870
  %v1872 = vadd.f32 %v1868, %v1871
  %vm1873 = vweird.f32 %v1867
  %vm1874 = vweird.f32 %v1868
  %vm1875 = vmor %vm1873, %vm1874
  %v1876 = vsel %vm1875, %v1868, %v1872
  %v1877 = vand.u32 2147483647, %v1867
  %vm1878 = vcmp.eq.f32.partialorder %v1877, 8.507059e+37
  %v1879 = vand.u32 %v1867, 2147483648
  %v1880 = vor.u32 1.1754944e-38, %v1879
  %v1881 = vsel %vm1878, %v1880, %v1876
  %v1882 = vmul.f32 %v1857, %v1881
  %v1883 = vmin.f32 %v1882, 1.0
  %v1884 = vmax.f32 %v1883, -1.0
  %v1885 = vmul.f32 %v1034, %v1034
  %v1886 = vmin.f32 16.0, %v1885
  %v1887 = vmul.f32 %v1886, 2.1237322e-06
  %v1888 = vadd.f32 %v1887, 0.00028619796
  %v1889 = vmul.f32 %v1886, %v1888
  %v1890 = vadd.f32 %v1889, 0.0036580483
  %v1891 = vmul.f32 %v1886, %v1890
  %v1892 = vadd.f32 %v1891, 0.05243302
  %v1893 = vmul.f32 %v1886, %v1892
  %v1894 = vadd.f32 %v1893, 0.18741608
  %v1895 = vmul.f32 %v1886, %v1894
  %v1896 = vadd.f32 %v1895, 1.1283791
  %v1897 = vmul.f32 %v1034, %v1896
  %v1898 = vmul.f32 %v1886, 3.8918573e-05
  %v1899 = vadd.f32 %v1898, 0.001143296
  %v1900 = vmul.f32 %v1886, %v1899
  %v1901 = vadd.f32 %v1900, 0.014752088
  %v1902 = vmul.f32 %v1886, %v1901
  %v1903 = vadd.f32 %v1902, 0.112945676
  %v1904 = vmul.f32 %v1886, %v1903
  %v1905 = vadd.f32 %v1904, 0.4994258
  %v1906 = vmul.f32 %v1886, %v1905
  %v1907 = vadd.f32 %v1906, 1.0
  %v1908 = vrcp.pop %v1907
  %v1909 = vmul.f32 %v1907, %v1908
  %v1910 = vsub.f32 1.0, %v1909
  %v1911 = vmul.f32 %v1908, %v1910
  %v1912 = vadd.f32 %v1908, %v1911
  %vm1913 = vweird.f32 %v1907
  %vm1914 = vweird.f32 %v1908
  %vm1915 = vmor %vm1913, %vm1914
  %v1916 = vsel %vm1915, %v1908, %v1912
  %v1917 = vand.u32 2147483647, %v1907
  %vm1918 = vcmp.eq.f32.partialorder %v1917, 8.507059e+37
  %v1919 = vand.u32 %v1907, 2147483648
  %v1920 = vor.u32 1.1754944e-38, %v1919
  %v1921 = vsel %vm1918, %v1920, %v1916
  %v1922 = vmul.f32 %v1897, %v1921
  %v1923 = vmin.f32 %v1922, 1.0
  %v1924 = vmax.f32 %v1923, -1.0
  %v1925 = vmul.f32 %v1035, %v1035
  %v1926 = vmin.f32 16.0, %v1925
  %v1927 = vmul.f32 %v1926, 2.1237322e-06
  %v1928 = vadd.f32 %v1927, 0.00028619796
  %v1929 = vmul.f32 %v1926, %v1928
  %v1930 = vadd.f32 %v1929, 0.0036580483
  %v1931 = vmul.f32 %v1926, %v1930
  %v1932 = vadd.f32 %v1931, 0.05243302
  %v1933 = vmul.f32 %v1926, %v1932
  %v1934 = vadd.f32 %v1933, 0.18741608
  %v1935 = vmul.f32 %v1926, %v1934
  %v1936 = vadd.f32 %v1935, 1.1283791
  %v1937 = vmul.f32 %v1035, %v1936
  %v1938 = vmul.f32 %v1926, 3.8918573e-05
  %v1939 = vadd.f32 %v1938, 0.001143296
  %v1940 = vmul.f32 %v1926, %v1939
  %v1941 = vadd.f32 %v1940, 0.014752088
  %v1942 = vmul.f32 %v1926, %v1941
  %v1943 = vadd.f32 %v1942, 0.112945676
  %v1944 = vmul.f32 %v1926, %v1943
  %v1945 = vadd.f32 %v1944, 0.4994258
  %v1946 = vmul.f32 %v1926, %v1945
  %v1947 = vadd.f32 %v1946, 1.0
  %v1948 = vrcp.pop %v1947
  %v1949 = vmul.f32 %v1947, %v1948
  %v1950 = vsub.f32 1.0, %v1949
  %v1951 = vmul.f32 %v1948, %v1950
  %v1952 = vadd.f32 %v1948, %v1951
  %vm1953 = vweird.f32 %v1947
  %vm1954 = vweird.f32 %v1948
  %vm1955 = vmor %vm1953, %vm1954
  %v1956 = vsel %vm1955, %v1948, %v1952
  %v1957 = vand.u32 2147483647, %v1947
  %vm1958 = vcmp.eq.f32.partialorder %v1957, 8.507059e+37
  %v1959 = vand.u32 %v1947, 2147483648
  %v1960 = vor.u32 1.1754944e-38, %v1959
  %v1961 = vsel %vm1958, %v1960, %v1956
  %v1962 = vmul.f32 %v1937, %v1961
  %v1963 = vmin.f32 %v1962, 1.0
  %v1964 = vmax.f32 %v1963, -1.0
  %v1965 = vmul.f32 %v1036, %v1036
  %v1966 = vmin.f32 16.0, %v1965
  %v1967 = vmul.f32 %v1966, 2.1237322e-06
  %v1968 = vadd.f32 %v1967, 0.00028619796
  %v1969 = vmul.f32 %v1966, %v1968
  %v1970 = vadd.f32 %v1969, 0.0036580483
  %v1971 = vmul.f32 %v1966, %v1970
  %v1972 = vadd.f32 %v1971, 0.05243302
  %v1973 = vmul.f32 %v1966, %v1972
  %v1974 = vadd.f32 %v1973, 0.18741608
  %v1975 = vmul.f32 %v1966, %v1974
  %v1976 = vadd.f32 %v1975, 1.1283791
  %v1977 = vmul.f32 %v1036, %v1976
  %v1978 = vmul.f32 %v1966, 3.8918573e-05
  %v1979 = vadd.f32 %v1978, 0.001143296
  %v1980 = vmul.f32 %v1966, %v1979
  %v1981 = vadd.f32 %v1980, 0.014752088
  %v1982 = vmul.f32 %v1966, %v1981
  %v1983 = vadd.f32 %v1982, 0.112945676
  %v1984 = vmul.f32 %v1966, %v1983
  %v1985 = vadd.f32 %v1984, 0.4994258
  %v1986 = vmul.f32 %v1966, %v1985
  %v1987 = vadd.f32 %v1986, 1.0
  %v1988 = vrcp.pop %v1987
  %v1989 = vmul.f32 %v1987, %v1988
  %v1990 = vsub.f32 1.0, %v1989
  %v1991 = vmul.f32 %v1988, %v1990
  %v1992 = vadd.f32 %v1988, %v1991
  %vm1993 = vweird.f32 %v1987
  %vm1994 = vweird.f32 %v1988
  %vm1995 = vmor %vm1993, %vm1994
  %v1996 = vsel %vm1995, %v1988, %v1992
  %v1997 = vand.u32 2147483647, %v1987
  %vm1998 = vcmp.eq.f32.partialorder %v1997, 8.507059e+37
  %v1999 = vand.u32 %v1987, 2147483648
  %v2000 = vor.u32 1.1754944e-38, %v1999
  %v2001 = vsel %vm1998, %v2000, %v1996
  %v2002 = vmul.f32 %v1977, %v2001
  %v2003 = vmin.f32 %v2002, 1.0
  %v2004 = vmax.f32 %v2003, -1.0
  %v2005 = vmul.f32 %v1037, %v1037
  %v2006 = vmin.f32 16.0, %v2005
  %v2007 = vmul.f32 %v2006, 2.1237322e-06
  %v2008 = vadd.f32 %v2007, 0.00028619796
  %v2009 = vmul.f32 %v2006, %v2008
  %v2010 = vadd.f32 %v2009, 0.0036580483
  %v2011 = vmul.f32 %v2006, %v2010
  %v2012 = vadd.f32 %v2011, 0.05243302
  %v2013 = vmul.f32 %v2006, %v2012
  %v2014 = vadd.f32 %v2013, 0.18741608
  %v2015 = vmul.f32 %v2006, %v2014
  %v2016 = vadd.f32 %v2015, 1.1283791
  %v2017 = vmul.f32 %v1037, %v2016
  %v2018 = vmul.f32 %v2006, 3.8918573e-05
  %v2019 = vadd.f32 %v2018, 0.001143296
  %v2020 = vmul.f32 %v2006, %v2019
  %v2021 = vadd.f32 %v2020, 0.014752088
  %v2022 = vmul.f32 %v2006, %v2021
  %v2023 = vadd.f32 %v2022, 0.112945676
  %v2024 = vmul.f32 %v2006, %v2023
  %v2025 = vadd.f32 %v2024, 0.4994258
  %v2026 = vmul.f32 %v2006, %v2025
  %v2027 = vadd.f32 %v2026, 1.0
  %v2028 = vrcp.pop %v2027
  %v2029 = vmul.f32 %v2027, %v2028
  %v2030 = vsub.f32 1.0, %v2029
  %v2031 = vmul.f32 %v2028, %v2030
  %v2032 = vadd.f32 %v2028, %v2031
  %vm2033 = vweird.f32 %v2027
  %vm2034 = vweird.f32 %v2028
  %vm2035 = vmor %vm2033, %vm2034
  %v2036 = vsel %vm2035, %v2028, %v2032
  %v2037 = vand.u32 2147483647, %v2027
  %vm2038 = vcmp.eq.f32.partialorder %v2037, 8.507059e+37
  %v2039 = vand.u32 %v2027, 2147483648
  %v2040 = vor.u32 1.1754944e-38, %v2039
  %v2041 = vsel %vm2038, %v2040, %v2036
  %v2042 = vmul.f32 %v2017, %v2041
  %v2043 = vmin.f32 %v2042, 1.0
  %v2044 = vmax.f32 %v2043, -1.0
  %v2045 = vmul.f32 %v1038, %v1038
  %v2046 = vmin.f32 16.0, %v2045
  %v2047 = vmul.f32 %v2046, 2.1237322e-06
  %v2048 = vadd.f32 %v2047, 0.00028619796
  %v2049 = vmul.f32 %v2046, %v2048
  %v2050 = vadd.f32 %v2049, 0.0036580483
  %v2051 = vmul.f32 %v2046, %v2050
  %v2052 = vadd.f32 %v2051, 0.05243302
  %v2053 = vmul.f32 %v2046, %v2052
  %v2054 = vadd.f32 %v2053, 0.18741608
  %v2055 = vmul.f32 %v2046, %v2054
  %v2056 = vadd.f32 %v2055, 1.1283791
  %v2057 = vmul.f32 %v1038, %v2056
  %v2058 = vmul.f32 %v2046, 3.8918573e-05
  %v2059 = vadd.f32 %v2058, 0.001143296
  %v2060 = vmul.f32 %v2046, %v2059
  %v2061 = vadd.f32 %v2060, 0.014752088
  %v2062 = vmul.f32 %v2046, %v2061
  %v2063 = vadd.f32 %v2062, 0.112945676
  %v2064 = vmul.f32 %v2046, %v2063
  %v2065 = vadd.f32 %v2064, 0.4994258
  %v2066 = vmul.f32 %v2046, %v2065
  %v2067 = vadd.f32 %v2066, 1.0
  %v2068 = vrcp.pop %v2067
  %v2069 = vmul.f32 %v2067, %v2068
  %v2070 = vsub.f32 1.0, %v2069
  %v2071 = vmul.f32 %v2068, %v2070
  %v2072 = vadd.f32 %v2068, %v2071
  %vm2073 = vweird.f32 %v2067
  %vm2074 = vweird.f32 %v2068
  %vm2075 = vmor %vm2073, %vm2074
  %v2076 = vsel %vm2075, %v2068, %v2072
  %v2077 = vand.u32 2147483647, %v2067
  %vm2078 = vcmp.eq.f32.partialorder %v2077, 8.507059e+37
  %v2079 = vand.u32 %v2067, 2147483648
  %v2080 = vor.u32 1.1754944e-38, %v2079
  %v2081 = vsel %vm2078, %v2080, %v2076
  %v2082 = vmul.f32 %v2057, %v2081
  %v2083 = vmin.f32 %v2082, 1.0
  %v2084 = vmax.f32 %v2083, -1.0
  %v2085 = vmul.f32 %v1039, %v1039
  %v2086 = vmin.f32 16.0, %v2085
  %v2087 = vmul.f32 %v2086, 2.1237322e-06
  %v2088 = vadd.f32 %v2087, 0.00028619796
  %v2089 = vmul.f32 %v2086, %v2088
  %v2090 = vadd.f32 %v2089, 0.0036580483
  %v2091 = vmul.f32 %v2086, %v2090
  %v2092 = vadd.f32 %v2091, 0.05243302
  %v2093 = vmul.f32 %v2086, %v2092
  %v2094 = vadd.f32 %v2093, 0.18741608
  %v2095 = vmul.f32 %v2086, %v2094
  %v2096 = vadd.f32 %v2095, 1.1283791
  %v2097 = vmul.f32 %v1039, %v2096
  %v2098 = vmul.f32 %v2086, 3.8918573e-05
  %v2099 = vadd.f32 %v2098, 0.001143296
  %v2100 = vmul.f32 %v2086, %v2099
  %v2101 = vadd.f32 %v2100, 0.014752088
  %v2102 = vmul.f32 %v2086, %v2101
  %v2103 = vadd.f32 %v2102, 0.112945676
  %v2104 = vmul.f32 %v2086, %v2103
  %v2105 = vadd.f32 %v2104, 0.4994258
  %v2106 = vmul.f32 %v2086, %v2105
  %v2107 = vadd.f32 %v2106, 1.0
  %v2108 = vrcp.pop %v2107
  %v2109 = vmul.f32 %v2107, %v2108
  %v2110 = vsub.f32 1.0, %v2109
  %v2111 = vmul.f32 %v2108, %v2110
  %v2112 = vadd.f32 %v2108, %v2111
  %vm2113 = vweird.f32 %v2107
  %vm2114 = vweird.f32 %v2108
  %vm2115 = vmor %vm2113, %vm2114
  %v2116 = vsel %vm2115, %v2108, %v2112
  %v2117 = vand.u32 2147483647, %v2107
  %vm2118 = vcmp.eq.f32.partialorder %v2117, 8.507059e+37
  %v2119 = vand.u32 %v2107, 2147483648
  %v2120 = vor.u32 1.1754944e-38, %v2119
  %v2121 = vsel %vm2118, %v2120, %v2116
  %v2122 = vmul.f32 %v2097, %v2121
  %v2123 = vmin.f32 %v2122, 1.0
  %v2124 = vmax.f32 %v2123, -1.0
  %v2125 = vmul.f32 %v1040, %v1040
  %v2126 = vmin.f32 16.0, %v2125
  %v2127 = vmul.f32 %v2126, 2.1237322e-06
  %v2128 = vadd.f32 %v2127, 0.00028619796
  %v2129 = vmul.f32 %v2126, %v2128
  %v2130 = vadd.f32 %v2129, 0.0036580483
  %v2131 = vmul.f32 %v2126, %v2130
  %v2132 = vadd.f32 %v2131, 0.05243302
  %v2133 = vmul.f32 %v2126, %v2132
  %v2134 = vadd.f32 %v2133, 0.18741608
  %v2135 = vmul.f32 %v2126, %v2134
  %v2136 = vadd.f32 %v2135, 1.1283791
  %v2137 = vmul.f32 %v1040, %v2136
  %v2138 = vmul.f32 %v2126, 3.8918573e-05
  %v2139 = vadd.f32 %v2138, 0.001143296
  %v2140 = vmul.f32 %v2126, %v2139
  %v2141 = vadd.f32 %v2140, 0.014752088
  %v2142 = vmul.f32 %v2126, %v2141
  %v2143 = vadd.f32 %v2142, 0.112945676
  %v2144 = vmul.f32 %v2126, %v2143
  %v2145 = vadd.f32 %v2144, 0.4994258
  %v2146 = vmul.f32 %v2126, %v2145
  %v2147 = vadd.f32 %v2146, 1.0
  %v2148 = vrcp.pop %v2147
  %v2149 = vmul.f32 %v2147, %v2148
  %v2150 = vsub.f32 1.0, %v2149
  %v2151 = vmul.f32 %v2148, %v2150
  %v2152 = vadd.f32 %v2148, %v2151
  %vm2153 = vweird.f32 %v2147
  %vm2154 = vweird.f32 %v2148
  %vm2155 = vmor %vm2153, %vm2154
  %v2156 = vsel %vm2155, %v2148, %v2152
  %v2157 = vand.u32 2147483647, %v2147
  %vm2158 = vcmp.eq.f32.partialorder %v2157, 8.507059e+37
  %v2159 = vand.u32 %v2147, 2147483648
  %v2160 = vor.u32 1.1754944e-38, %v2159
  %v2161 = vsel %vm2158, %v2160, %v2156
  %v2162 = vmul.f32 %v2137, %v2161
  %v2163 = vmin.f32 %v2162, 1.0
  %v2164 = vmax.f32 %v2163, -1.0
  %v2165 = vmul.f32 %v1041, %v1041
  %v2166 = vmin.f32 16.0, %v2165
  %v2167 = vmul.f32 %v2166, 2.1237322e-06
  %v2168 = vadd.f32 %v2167, 0.00028619796
  %v2169 = vmul.f32 %v2166, %v2168
  %v2170 = vadd.f32 %v2169, 0.0036580483
  %v2171 = vmul.f32 %v2166, %v2170
  %v2172 = vadd.f32 %v2171, 0.05243302
  %v2173 = vmul.f32 %v2166, %v2172
  %v2174 = vadd.f32 %v2173, 0.18741608
  %v2175 = vmul.f32 %v2166, %v2174
  %v2176 = vadd.f32 %v2175, 1.1283791
  %v2177 = vmul.f32 %v1041, %v2176
  %v2178 = vmul.f32 %v2166, 3.8918573e-05
  %v2179 = vadd.f32 %v2178, 0.001143296
  %v2180 = vmul.f32 %v2166, %v2179
  %v2181 = vadd.f32 %v2180, 0.014752088
  %v2182 = vmul.f32 %v2166, %v2181
  %v2183 = vadd.f32 %v2182, 0.112945676
  %v2184 = vmul.f32 %v2166, %v2183
  %v2185 = vadd.f32 %v2184, 0.4994258
  %v2186 = vmul.f32 %v2166, %v2185
  %v2187 = vadd.f32 %v2186, 1.0
  %v2188 = vrcp.pop %v2187
  %v2189 = vmul.f32 %v2187, %v2188
  %v2190 = vsub.f32 1.0, %v2189
  %v2191 = vmul.f32 %v2188, %v2190
  %v2192 = vadd.f32 %v2188, %v2191
  %vm2193 = vweird.f32 %v2187
  %vm2194 = vweird.f32 %v2188
  %vm2195 = vmor %vm2193, %vm2194
  %v2196 = vsel %vm2195, %v2188, %v2192
  %v2197 = vand.u32 2147483647, %v2187
  %vm2198 = vcmp.eq.f32.partialorder %v2197, 8.507059e+37
  %v2199 = vand.u32 %v2187, 2147483648
  %v2200 = vor.u32 1.1754944e-38, %v2199
  %v2201 = vsel %vm2198, %v2200, %v2196
  %v2202 = vmul.f32 %v2177, %v2201
  %v2203 = vmin.f32 %v2202, 1.0
  %v2204 = vmax.f32 %v2203, -1.0
  %v2205 = vmul.f32 %v1042, %v1042
  %v2206 = vmin.f32 16.0, %v2205
  %v2207 = vmul.f32 %v2206, 2.1237322e-06
  %v2208 = vadd.f32 %v2207, 0.00028619796
  %v2209 = vmul.f32 %v2206, %v2208
  %v2210 = vadd.f32 %v2209, 0.0036580483
  %v2211 = vmul.f32 %v2206, %v2210
  %v2212 = vadd.f32 %v2211, 0.05243302
  %v2213 = vmul.f32 %v2206, %v2212
  %v2214 = vadd.f32 %v2213, 0.18741608
  %v2215 = vmul.f32 %v2206, %v2214
  %v2216 = vadd.f32 %v2215, 1.1283791
  %v2217 = vmul.f32 %v1042, %v2216
  %v2218 = vmul.f32 %v2206, 3.8918573e-05
  %v2219 = vadd.f32 %v2218, 0.001143296
  %v2220 = vmul.f32 %v2206, %v2219
  %v2221 = vadd.f32 %v2220, 0.014752088
  %v2222 = vmul.f32 %v2206, %v2221
  %v2223 = vadd.f32 %v2222, 0.112945676
  %v2224 = vmul.f32 %v2206, %v2223
  %v2225 = vadd.f32 %v2224, 0.4994258
  %v2226 = vmul.f32 %v2206, %v2225
  %v2227 = vadd.f32 %v2226, 1.0
  %v2228 = vrcp.pop %v2227
  %v2229 = vmul.f32 %v2227, %v2228
  %v2230 = vsub.f32 1.0, %v2229
  %v2231 = vmul.f32 %v2228, %v2230
  %v2232 = vadd.f32 %v2228, %v2231
  %vm2233 = vweird.f32 %v2227
  %vm2234 = vweird.f32 %v2228
  %vm2235 = vmor %vm2233, %vm2234
  %v2236 = vsel %vm2235, %v2228, %v2232
  %v2237 = vand.u32 2147483647, %v2227
  %vm2238 = vcmp.eq.f32.partialorder %v2237, 8.507059e+37
  %v2239 = vand.u32 %v2227, 2147483648
  %v2240 = vor.u32 1.1754944e-38, %v2239
  %v2241 = vsel %vm2238, %v2240, %v2236
  %v2242 = vmul.f32 %v2217, %v2241
  %v2243 = vmin.f32 %v2242, 1.0
  %v2244 = vmax.f32 %v2243, -1.0
  %v2245 = vmul.f32 %v1043, %v1043
  %v2246 = vmin.f32 16.0, %v2245
  %v2247 = vmul.f32 %v2246, 2.1237322e-06
  %v2248 = vadd.f32 %v2247, 0.00028619796
  %v2249 = vmul.f32 %v2246, %v2248
  %v2250 = vadd.f32 %v2249, 0.0036580483
  %v2251 = vmul.f32 %v2246, %v2250
  %v2252 = vadd.f32 %v2251, 0.05243302
  %v2253 = vmul.f32 %v2246, %v2252
  %v2254 = vadd.f32 %v2253, 0.18741608
  %v2255 = vmul.f32 %v2246, %v2254
  %v2256 = vadd.f32 %v2255, 1.1283791
  %v2257 = vmul.f32 %v1043, %v2256
  %v2258 = vmul.f32 %v2246, 3.8918573e-05
  %v2259 = vadd.f32 %v2258, 0.001143296
  %v2260 = vmul.f32 %v2246, %v2259
  %v2261 = vadd.f32 %v2260, 0.014752088
  %v2262 = vmul.f32 %v2246, %v2261
  %v2263 = vadd.f32 %v2262, 0.112945676
  %v2264 = vmul.f32 %v2246, %v2263
  %v2265 = vadd.f32 %v2264, 0.4994258
  %v2266 = vmul.f32 %v2246, %v2265
  %v2267 = vadd.f32 %v2266, 1.0
  %v2268 = vrcp.pop %v2267
  %v2269 = vmul.f32 %v2267, %v2268
  %v2270 = vsub.f32 1.0, %v2269
  %v2271 = vmul.f32 %v2268, %v2270
  %v2272 = vadd.f32 %v2268, %v2271
  %vm2273 = vweird.f32 %v2267
  %vm2274 = vweird.f32 %v2268
  %vm2275 = vmor %vm2273, %vm2274
  %v2276 = vsel %vm2275, %v2268, %v2272
  %v2277 = vand.u32 2147483647, %v2267
  %vm2278 = vcmp.eq.f32.partialorder %v2277, 8.507059e+37
  %v2279 = vand.u32 %v2267, 2147483648
  %v2280 = vor.u32 1.1754944e-38, %v2279
  %v2281 = vsel %vm2278, %v2280, %v2276
  %v2282 = vmul.f32 %v2257, %v2281
  %v2283 = vmin.f32 %v2282, 1.0
  %v2284 = vmax.f32 %v2283, -1.0
  %v2285 = vmul.f32 %v1044, %v1044
  %v2286 = vmin.f32 16.0, %v2285
  %v2287 = vmul.f32 %v2286, 2.1237322e-06
  %v2288 = vadd.f32 %v2287, 0.00028619796
  %v2289 = vmul.f32 %v2286, %v2288
  %v2290 = vadd.f32 %v2289, 0.0036580483
  %v2291 = vmul.f32 %v2286, %v2290
  %v2292 = vadd.f32 %v2291, 0.05243302
  %v2293 = vmul.f32 %v2286, %v2292
  %v2294 = vadd.f32 %v2293, 0.18741608
  %v2295 = vmul.f32 %v2286, %v2294
  %v2296 = vadd.f32 %v2295, 1.1283791
  %v2297 = vmul.f32 %v1044, %v2296
  %v2298 = vmul.f32 %v2286, 3.8918573e-05
  %v2299 = vadd.f32 %v2298, 0.001143296
  %v2300 = vmul.f32 %v2286, %v2299
  %v2301 = vadd.f32 %v2300, 0.014752088
  %v2302 = vmul.f32 %v2286, %v2301
  %v2303 = vadd.f32 %v2302, 0.112945676
  %v2304 = vmul.f32 %v2286, %v2303
  %v2305 = vadd.f32 %v2304, 0.4994258
  %v2306 = vmul.f32 %v2286, %v2305
  %v2307 = vadd.f32 %v2306, 1.0
  %v2308 = vrcp.pop %v2307
  %v2309 = vmul.f32 %v2307, %v2308
  %v2310 = vsub.f32 1.0, %v2309
  %v2311 = vmul.f32 %v2308, %v2310
  %v2312 = vadd.f32 %v2308, %v2311
  %vm2313 = vweird.f32 %v2307
  %vm2314 = vweird.f32 %v2308
  %vm2315 = vmor %vm2313, %vm2314
  %v2316 = vsel %vm2315, %v2308, %v2312
  %v2317 = vand.u32 2147483647, %v2307
  %vm2318 = vcmp.eq.f32.partialorder %v2317, 8.507059e+37
  %v2319 = vand.u32 %v2307, 2147483648
  %v2320 = vor.u32 1.1754944e-38, %v2319
  %v2321 = vsel %vm2318, %v2320, %v2316
  %v2322 = vmul.f32 %v2297, %v2321
  %v2323 = vmin.f32 %v2322, 1.0
  %v2324 = vmax.f32 %v2323, -1.0
  %v2325 = vadd.f32 %v1084, 1.0
  %v2326 = vadd.f32 %v1124, 1.0
  %v2327 = vadd.f32 %v1164, 1.0
  %v2328 = vadd.f32 %v1204, 1.0
  %v2329 = vadd.f32 %v1244, 1.0
  %v2330 = vadd.f32 %v1284, 1.0
  %v2331 = vadd.f32 %v1324, 1.0
  %v2332 = vadd.f32 %v1364, 1.0
  %v2333 = vadd.f32 %v1404, 1.0
  %v2334 = vadd.f32 %v1444, 1.0
  %v2335 = vadd.f32 %v1484, 1.0
  %v2336 = vadd.f32 %v1524, 1.0
  %v2337 = vadd.f32 %v1564, 1.0
  %v2338 = vadd.f32 %v1604, 1.0
  %v2339 = vadd.f32 %v1644, 1.0
  %v2340 = vadd.f32 %v1684, 1.0
  %v2341 = vadd.f32 %v1724, 1.0
  %v2342 = vadd.f32 %v1764, 1.0
  %v2343 = vadd.f32 %v1804, 1.0
  %v2344 = vadd.f32 %v1844, 1.0
  %v2345 = vadd.f32 %v1884, 1.0
  %v2346 = vadd.f32 %v1924, 1.0
  %v2347 = vadd.f32 %v1964, 1.0
  %v2348 = vadd.f32 %v2004, 1.0
  %v2349 = vadd.f32 %v2044, 1.0
  %v2350 = vadd.f32 %v2084, 1.0
  %v2351 = vadd.f32 %v2124, 1.0
  %v2352 = vadd.f32 %v2164, 1.0
  %v2353 = vadd.f32 %v2204, 1.0
  %v2354 = vadd.f32 %v2244, 1.0
  %v2355 = vadd.f32 %v2284, 1.0
  %v2356 = vadd.f32 %v2324, 1.0
  %v2357 = vmul.f32 %v981, %v2325
  %v2358 = vmul.f32 %v982, %v2326
  %v2359 = vmul.f32 %v983, %v2327
  %v2360 = vmul.f32 %v984, %v2328
  %v2361 = vmul.f32 %v985, %v2329
  %v2362 = vmul.f32 %v986, %v2330
  %v2363 = vmul.f32 %v987, %v2331
  %v2364 = vmul.f32 %v988, %v2332
  %v2365 = vmul.f32 %v989, %v2333
  %v2366 = vmul.f32 %v990, %v2334
  %v2367 = vmul.f32 %v991, %v2335
  %v2368 = vmul.f32 %v992, %v2336
  %v2369 = vmul.f32 %v993, %v2337
  %v2370 = vmul.f32 %v994, %v2338
  %v2371 = vmul.f32 %v995, %v2339
  %v2372 = vmul.f32 %v996, %v2340
  %v2373 = vmul.f32 %v997, %v2341
  %v2374 = vmul.f32 %v998, %v2342
  %v2375 = vmul.f32 %v999, %v2343
  %v2376 = vmul.f32 %v1000, %v2344
  %v2377 = vmul.f32 %v1001, %v2345
  %v2378 = vmul.f32 %v1002, %v2346
  %v2379 = vmul.f32 %v1003, %v2347
  %v2380 = vmul.f32 %v1004, %v2348
  %v2381 = vmul.f32 %v1005, %v2349
  %v2382 = vmul.f32 %v1006, %v2350
  %v2383 = vmul.f32 %v1007, %v2351
  %v2384 = vmul.f32 %v1008, %v2352
  %v2385 = vmul.f32 %v1009, %v2353
  %v2386 = vmul.f32 %v1010, %v2354
  %v2387 = vmul.f32 %v1011, %v2355
  %v2388 = vmul.f32 %v1012, %v2356
  %v2389 = vld [vmem:[%s3] sm:$0xff]
  %v2390 = vld [vmem:[%s3 + $0x8] sm:$0xff]
  %v2391 = vld [vmem:[%s3 + $0x10] sm:$0xff]
  %v2392 = vld [vmem:[%s3 + $0x18] sm:$0xff]
  %v2393 = vld [vmem:[%s4] sm:$0x1]
  %v2395 = vperm.slane %v2393, 0
  %v2398 = vsel %vm52, %v2357, 0
  %v2401 = vsel %vm52, %v2358, 0
  %v2404 = vsel %vm52, %v2359, 0
  %v2407 = vsel %vm52, %v2360, 0
  %v2410 = vsel %vm52, %v2361, 0
  %v2413 = vsel %vm52, %v2362, 0
  %v2416 = vsel %vm52, %v2363, 0
  %v2419 = vsel %vm52, %v2364, 0
  %v2422 = vsel %vm52, %v2365, 0
  %v2425 = vsel %vm52, %v2366, 0
  %v2428 = vsel %vm52, %v2367, 0
  %v2431 = vsel %vm52, %v2368, 0
  %v2434 = vsel %vm52, %v2369, 0
  %v2437 = vsel %vm52, %v2370, 0
  %v2440 = vsel %vm52, %v2371, 0
  %v2443 = vsel %vm52, %v2372, 0
  %v2446 = vsel %vm52, %v2373, 0
  %v2449 = vsel %vm52, %v2374, 0
  %v2452 = vsel %vm52, %v2375, 0
  %v2455 = vsel %vm52, %v2376, 0
  %v2458 = vsel %vm52, %v2377, 0
  %v2461 = vsel %vm52, %v2378, 0
  %v2464 = vsel %vm52, %v2379, 0
  %v2467 = vsel %vm52, %v2380, 0
  %v2470 = vsel %vm52, %v2381, 0
  %v2473 = vsel %vm52, %v2382, 0
  %v2476 = vsel %vm52, %v2383, 0
  %v2479 = vsel %vm52, %v2384, 0
  %v2482 = vsel %vm52, %v2385, 0
  %v2485 = vsel %vm52, %v2386, 0
  %v2488 = vsel %vm52, %v2387, 0
  %v2491 = vsel %vm52, %v2388, 0
  %2493 = vmatpush.msra.mxu0 0.0
  %2494 = vmatpush.msra.mxu0 0.0
  %2495 = vmatpush.msra.mxu0 0.0
  %2496 = vmatpush.msra.mxu0 0.0
  %2497 = vmatpush.msra.mxu0 0.0
  %2498 = vmatpush.msra.mxu0 0.0
  %2499 = vmatpush.msra.mxu0 0.0
  %2500 = vmatpush.msra.mxu0 0.0
  %2501 = vmatpush.msra.mxu0 0.0
  %2502 = vmatpush.msra.mxu0 0.0
  %2503 = vmatpush.msra.mxu0 0.0
  %2504 = vmatpush.msra.mxu0 0.0
  %2505 = vmatpush.msra.mxu0 %v2392
  %2506 = vmatpush.msra.mxu0 %v2391
  %2507 = vmatpush.msra.mxu0 %v2390
  %2508 = vmatpush.msra.mxu0 %v2389
  %2509 = vmatmul.f32.gmra.mxu0 %v2398
  %v2510 = vpop.f32.mrf.mxu0
  %v2511 = vadd.f32 %v2395, %v2510
  %2512 = vmatmul.f32.gmra.mxu0 %v2401
  %v2513 = vpop.f32.mrf.mxu0
  %v2514 = vadd.f32 %v2395, %v2513
  %2515 = vmatmul.f32.gmra.mxu0 %v2404
  %v2516 = vpop.f32.mrf.mxu0
  %v2517 = vadd.f32 %v2395, %v2516
  %2518 = vmatmul.f32.gmra.mxu0 %v2407
  %v2519 = vpop.f32.mrf.mxu0
  %v2520 = vadd.f32 %v2395, %v2519
  %2521 = vmatmul.f32.gmra.mxu0 %v2410
  %v2522 = vpop.f32.mrf.mxu0
  %v2523 = vadd.f32 %v2395, %v2522
  %2524 = vmatmul.f32.gmra.mxu0 %v2413
  %v2525 = vpop.f32.mrf.mxu0
  %v2526 = vadd.f32 %v2395, %v2525
  %2527 = vmatmul.f32.gmra.mxu0 %v2416
  %v2528 = vpop.f32.mrf.mxu0
  %v2529 = vadd.f32 %v2395, %v2528
  %2530 = vmatmul.f32.gmra.mxu0 %v2419
  %v2531 = vpop.f32.mrf.mxu0
  %v2532 = vadd.f32 %v2395, %v2531
  %2533 = vmatmul.f32.gmra.mxu0 %v2422
  %v2534 = vpop.f32.mrf.mxu0
  %v2535 = vadd.f32 %v2395, %v2534
  %2536 = vmatmul.f32.gmra.mxu0 %v2425
  %v2537 = vpop.f32.mrf.mxu0
  %v2538 = vadd.f32 %v2395, %v2537
  %2539 = vmatmul.f32.gmra.mxu0 %v2428
  %v2540 = vpop.f32.mrf.mxu0
  %v2541 = vadd.f32 %v2395, %v2540
  %2542 = vmatmul.f32.gmra.mxu0 %v2431
  %v2543 = vpop.f32.mrf.mxu0
  %v2544 = vadd.f32 %v2395, %v2543
  %2545 = vmatmul.f32.gmra.mxu0 %v2434
  %v2546 = vpop.f32.mrf.mxu0
  %v2547 = vadd.f32 %v2395, %v2546
  %2548 = vmatmul.f32.gmra.mxu0 %v2437
  %v2549 = vpop.f32.mrf.mxu0
  %v2550 = vadd.f32 %v2395, %v2549
  %2551 = vmatmul.f32.gmra.mxu0 %v2440
  %v2552 = vpop.f32.mrf.mxu0
  %v2553 = vadd.f32 %v2395, %v2552
  %2554 = vmatmul.f32.gmra.mxu0 %v2443
  %v2555 = vpop.f32.mrf.mxu0
  %v2556 = vadd.f32 %v2395, %v2555
  %2557 = vmatmul.f32.gmra.mxu0 %v2446
  %v2558 = vpop.f32.mrf.mxu0
  %v2559 = vadd.f32 %v2395, %v2558
  %2560 = vmatmul.f32.gmra.mxu0 %v2449
  %v2561 = vpop.f32.mrf.mxu0
  %v2562 = vadd.f32 %v2395, %v2561
  %2563 = vmatmul.f32.gmra.mxu0 %v2452
  %v2564 = vpop.f32.mrf.mxu0
  %v2565 = vadd.f32 %v2395, %v2564
  %2566 = vmatmul.f32.gmra.mxu0 %v2455
  %v2567 = vpop.f32.mrf.mxu0
  %v2568 = vadd.f32 %v2395, %v2567
  %2569 = vmatmul.f32.gmra.mxu0 %v2458
  %v2570 = vpop.f32.mrf.mxu0
  %v2571 = vadd.f32 %v2395, %v2570
  %2572 = vmatmul.f32.gmra.mxu0 %v2461
  %v2573 = vpop.f32.mrf.mxu0
  %v2574 = vadd.f32 %v2395, %v2573
  %2575 = vmatmul.f32.gmra.mxu0 %v2464
  %v2576 = vpop.f32.mrf.mxu0
  %v2577 = vadd.f32 %v2395, %v2576
  %2578 = vmatmul.f32.gmra.mxu0 %v2467
  %v2579 = vpop.f32.mrf.mxu0
  %v2580 = vadd.f32 %v2395, %v2579
  %2581 = vmatmul.f32.gmra.mxu0 %v2470
  %v2582 = vpop.f32.mrf.mxu0
  %v2583 = vadd.f32 %v2395, %v2582
  %2584 = vmatmul.f32.gmra.mxu0 %v2473
  %v2585 = vpop.f32.mrf.mxu0
  %v2586 = vadd.f32 %v2395, %v2585
  %2587 = vmatmul.f32.gmra.mxu0 %v2476
  %v2588 = vpop.f32.mrf.mxu0
  %v2589 = vadd.f32 %v2395, %v2588
  %2590 = vmatmul.f32.gmra.mxu0 %v2479
  %v2591 = vpop.f32.mrf.mxu0
  %v2592 = vadd.f32 %v2395, %v2591
  %2593 = vmatmul.f32.gmra.mxu0 %v2482
  %v2594 = vpop.f32.mrf.mxu0
  %v2595 = vadd.f32 %v2395, %v2594
  %2596 = vmatmul.f32.gmra.mxu0 %v2485
  %v2597 = vpop.f32.mrf.mxu0
  %v2598 = vadd.f32 %v2395, %v2597
  %2599 = vmatmul.f32.gmra.mxu0 %v2488
  %v2600 = vpop.f32.mrf.mxu0
  %v2601 = vadd.f32 %v2395, %v2600
  %2602 = vmatmul.f32.gmra.mxu0 %v2491
  %v2603 = vpop.f32.mrf.mxu0
  %v2604 = vadd.f32 %v2395, %v2603
  %2605 = vdwg.mxu0
  %v2606 = vlaneseq
  %v2607 = vand.u32 %v2606, 127
  %vm2608 = vcmp.eq.s32.totalorder %v2607, 3
  %vm2609 = vcmp.ge.s32.totalorder %v2607, 4
  %vm2610 = vcmp.lt.s32.totalorder %v2607, 7
  %vm2611 = vmand %vm2609, %vm2610
  %vm2612 = vcmp.ge.s32.totalorder %v2607, 7
  %vm2613 = vcmp.lt.s32.totalorder %v2607, 11
  %vm2614 = vmand %vm2612, %vm2613
  %v2615 = vxor.u32 %v2511, 2147483648
  %v2616 = vxor.u32 %v2514, 2147483648
  %v2617 = vxor.u32 %v2517, 2147483648
  %v2618 = vxor.u32 %v2520, 2147483648
  %v2619 = vxor.u32 %v2523, 2147483648
  %v2620 = vxor.u32 %v2526, 2147483648
  %v2621 = vxor.u32 %v2529, 2147483648
  %v2622 = vxor.u32 %v2532, 2147483648
  %v2623 = vxor.u32 %v2535, 2147483648
  %v2624 = vxor.u32 %v2538, 2147483648
  %v2625 = vxor.u32 %v2541, 2147483648
  %v2626 = vxor.u32 %v2544, 2147483648
  %v2627 = vxor.u32 %v2547, 2147483648
  %v2628 = vxor.u32 %v2550, 2147483648
  %v2629 = vxor.u32 %v2553, 2147483648
  %v2630 = vxor.u32 %v2556, 2147483648
  %v2631 = vxor.u32 %v2559, 2147483648
  %v2632 = vxor.u32 %v2562, 2147483648
  %v2633 = vxor.u32 %v2565, 2147483648
  %v2634 = vxor.u32 %v2568, 2147483648
  %v2635 = vxor.u32 %v2571, 2147483648
  %v2636 = vxor.u32 %v2574, 2147483648
  %v2637 = vxor.u32 %v2577, 2147483648
  %v2638 = vxor.u32 %v2580, 2147483648
  %v2639 = vxor.u32 %v2583, 2147483648
  %v2640 = vxor.u32 %v2586, 2147483648
  %v2641 = vxor.u32 %v2589, 2147483648
  %v2642 = vxor.u32 %v2592, 2147483648
  %v2643 = vxor.u32 %v2595, 2147483648
  %v2644 = vxor.u32 %v2598, 2147483648
  %v2645 = vxor.u32 %v2601, 2147483648
  %v2646 = vxor.u32 %v2604, 2147483648
  %v2647 = vmul.f32 %v2615, 1.442695
  %v2648 = vpow.pop %v2647
  %v2649 = vmul.f32 %v2616, 1.442695
  %v2650 = vpow.pop %v2649
  %v2651 = vmul.f32 %v2617, 1.442695
  %v2652 = vpow.pop %v2651
  %v2653 = vmul.f32 %v2618, 1.442695
  %v2654 = vpow.pop %v2653
  %v2655 = vmul.f32 %v2619, 1.442695
  %v2656 = vpow.pop %v2655
  %v2657 = vmul.f32 %v2620, 1.442695
  %v2658 = vpow.pop %v2657
  %v2659 = vmul.f32 %v2621, 1.442695
  %v2660 = vpow.pop %v2659
  %v2661 = vmul.f32 %v2622, 1.442695
  %v2662 = vpow.pop %v2661
  %v2663 = vmul.f32 %v2623, 1.442695
  %v2664 = vpow.pop %v2663
  %v2665 = vmul.f32 %v2624, 1.442695
  %v2666 = vpow.pop %v2665
  %v2667 = vmul.f32 %v2625, 1.442695
  %v2668 = vpow.pop %v2667
  %v2669 = vmul.f32 %v2626, 1.442695
  %v2670 = vpow.pop %v2669
  %v2671 = vmul.f32 %v2627, 1.442695
  %v2672 = vpow.pop %v2671
  %v2673 = vmul.f32 %v2628, 1.442695
  %v2674 = vpow.pop %v2673
  %v2675 = vmul.f32 %v2629, 1.442695
  %v2676 = vpow.pop %v2675
  %v2677 = vmul.f32 %v2630, 1.442695
  %v2678 = vpow.pop %v2677
  %v2679 = vmul.f32 %v2631, 1.442695
  %v2680 = vpow.pop %v2679
  %v2681 = vmul.f32 %v2632, 1.442695
  %v2682 = vpow.pop %v2681
  %v2683 = vmul.f32 %v2633, 1.442695
  %v2684 = vpow.pop %v2683
  %v2685 = vmul.f32 %v2634, 1.442695
  %v2686 = vpow.pop %v2685
  %v2687 = vmul.f32 %v2635, 1.442695
  %v2688 = vpow.pop %v2687
  %v2689 = vmul.f32 %v2636, 1.442695
  %v2690 = vpow.pop %v2689
  %v2691 = vmul.f32 %v2637, 1.442695
  %v2692 = vpow.pop %v2691
  %v2693 = vmul.f32 %v2638, 1.442695
  %v2694 = vpow.pop %v2693
  %v2695 = vmul.f32 %v2639, 1.442695
  %v2696 = vpow.pop %v2695
  %v2697 = vmul.f32 %v2640, 1.442695
  %v2698 = vpow.pop %v2697
  %v2699 = vmul.f32 %v2641, 1.442695
  %v2700 = vpow.pop %v2699
  %v2701 = vmul.f32 %v2642, 1.442695
  %v2702 = vpow.pop %v2701
  %v2703 = vmul.f32 %v2643, 1.442695
  %v2704 = vpow.pop %v2703
  %v2705 = vmul.f32 %v2644, 1.442695
  %v2706 = vpow.pop %v2705
  %v2707 = vmul.f32 %v2645, 1.442695
  %v2708 = vpow.pop %v2707
  %v2709 = vmul.f32 %v2646, 1.442695
  %v2710 = vpow.pop %v2709
  %v2711 = vadd.f32 %v2648, 1.0
  %v2712 = vadd.f32 %v2650, 1.0
  %v2713 = vadd.f32 %v2652, 1.0
  %v2714 = vadd.f32 %v2654, 1.0
  %v2715 = vadd.f32 %v2656, 1.0
  %v2716 = vadd.f32 %v2658, 1.0
  %v2717 = vadd.f32 %v2660, 1.0
  %v2718 = vadd.f32 %v2662, 1.0
  %v2719 = vadd.f32 %v2664, 1.0
  %v2720 = vadd.f32 %v2666, 1.0
  %v2721 = vadd.f32 %v2668, 1.0
  %v2722 = vadd.f32 %v2670, 1.0
  %v2723 = vadd.f32 %v2672, 1.0
  %v2724 = vadd.f32 %v2674, 1.0
  %v2725 = vadd.f32 %v2676, 1.0
  %v2726 = vadd.f32 %v2678, 1.0
  %v2727 = vadd.f32 %v2680, 1.0
  %v2728 = vadd.f32 %v2682, 1.0
  %v2729 = vadd.f32 %v2684, 1.0
  %v2730 = vadd.f32 %v2686, 1.0
  %v2731 = vadd.f32 %v2688, 1.0
  %v2732 = vadd.f32 %v2690, 1.0
  %v2733 = vadd.f32 %v2692, 1.0
  %v2734 = vadd.f32 %v2694, 1.0
  %v2735 = vadd.f32 %v2696, 1.0
  %v2736 = vadd.f32 %v2698, 1.0
  %v2737 = vadd.f32 %v2700, 1.0
  %v2738 = vadd.f32 %v2702, 1.0
  %v2739 = vadd.f32 %v2704, 1.0
  %v2740 = vadd.f32 %v2706, 1.0
  %v2741 = vadd.f32 %v2708, 1.0
  %v2742 = vadd.f32 %v2710, 1.0
  %v2743 = vrcp.pop %v2711
  %v2744 = vmul.f32 %v2711, %v2743
  %v2745 = vsub.f32 1.0, %v2744
  %v2746 = vmul.f32 %v2743, %v2745
  %v2747 = vadd.f32 %v2743, %v2746
  %vm2748 = vweird.f32 %v2711
  %vm2749 = vweird.f32 %v2743
  %vm2750 = vmor %vm2748, %vm2749
  %v2751 = vsel %vm2750, %v2743, %v2747
  %v2752 = vand.u32 2147483647, %v2711
  %vm2753 = vcmp.eq.f32.partialorder %v2752, 8.507059e+37
  %v2754 = vand.u32 %v2711, 2147483648
  %v2755 = vor.u32 1.1754944e-38, %v2754
  %v2756 = vsel %vm2753, %v2755, %v2751
  %v2757 = vmul.f32 1.0, %v2756
  %v2758 = vrcp.pop %v2712
  %v2759 = vmul.f32 %v2712, %v2758
  %v2760 = vsub.f32 1.0, %v2759
  %v2761 = vmul.f32 %v2758, %v2760
  %v2762 = vadd.f32 %v2758, %v2761
  %vm2763 = vweird.f32 %v2712
  %vm2764 = vweird.f32 %v2758
  %vm2765 = vmor %vm2763, %vm2764
  %v2766 = vsel %vm2765, %v2758, %v2762
  %v2767 = vand.u32 2147483647, %v2712
  %vm2768 = vcmp.eq.f32.partialorder %v2767, 8.507059e+37
  %v2769 = vand.u32 %v2712, 2147483648
  %v2770 = vor.u32 1.1754944e-38, %v2769
  %v2771 = vsel %vm2768, %v2770, %v2766
  %v2772 = vmul.f32 1.0, %v2771
  %v2773 = vrcp.pop %v2713
  %v2774 = vmul.f32 %v2713, %v2773
  %v2775 = vsub.f32 1.0, %v2774
  %v2776 = vmul.f32 %v2773, %v2775
  %v2777 = vadd.f32 %v2773, %v2776
  %vm2778 = vweird.f32 %v2713
  %vm2779 = vweird.f32 %v2773
  %vm2780 = vmor %vm2778, %vm2779
  %v2781 = vsel %vm2780, %v2773, %v2777
  %v2782 = vand.u32 2147483647, %v2713
  %vm2783 = vcmp.eq.f32.partialorder %v2782, 8.507059e+37
  %v2784 = vand.u32 %v2713, 2147483648
  %v2785 = vor.u32 1.1754944e-38, %v2784
  %v2786 = vsel %vm2783, %v2785, %v2781
  %v2787 = vmul.f32 1.0, %v2786
  %v2788 = vrcp.pop %v2714
  %v2789 = vmul.f32 %v2714, %v2788
  %v2790 = vsub.f32 1.0, %v2789
  %v2791 = vmul.f32 %v2788, %v2790
  %v2792 = vadd.f32 %v2788, %v2791
  %vm2793 = vweird.f32 %v2714
  %vm2794 = vweird.f32 %v2788
  %vm2795 = vmor %vm2793, %vm2794
  %v2796 = vsel %vm2795, %v2788, %v2792
  %v2797 = vand.u32 2147483647, %v2714
  %vm2798 = vcmp.eq.f32.partialorder %v2797, 8.507059e+37
  %v2799 = vand.u32 %v2714, 2147483648
  %v2800 = vor.u32 1.1754944e-38, %v2799
  %v2801 = vsel %vm2798, %v2800, %v2796
  %v2802 = vmul.f32 1.0, %v2801
  %v2803 = vrcp.pop %v2715
  %v2804 = vmul.f32 %v2715, %v2803
  %v2805 = vsub.f32 1.0, %v2804
  %v2806 = vmul.f32 %v2803, %v2805
  %v2807 = vadd.f32 %v2803, %v2806
  %vm2808 = vweird.f32 %v2715
  %vm2809 = vweird.f32 %v2803
  %vm2810 = vmor %vm2808, %vm2809
  %v2811 = vsel %vm2810, %v2803, %v2807
  %v2812 = vand.u32 2147483647, %v2715
  %vm2813 = vcmp.eq.f32.partialorder %v2812, 8.507059e+37
  %v2814 = vand.u32 %v2715, 2147483648
  %v2815 = vor.u32 1.1754944e-38, %v2814
  %v2816 = vsel %vm2813, %v2815, %v2811
  %v2817 = vmul.f32 1.0, %v2816
  %v2818 = vrcp.pop %v2716
  %v2819 = vmul.f32 %v2716, %v2818
  %v2820 = vsub.f32 1.0, %v2819
  %v2821 = vmul.f32 %v2818, %v2820
  %v2822 = vadd.f32 %v2818, %v2821
  %vm2823 = vweird.f32 %v2716
  %vm2824 = vweird.f32 %v2818
  %vm2825 = vmor %vm2823, %vm2824
  %v2826 = vsel %vm2825, %v2818, %v2822
  %v2827 = vand.u32 2147483647, %v2716
  %vm2828 = vcmp.eq.f32.partialorder %v2827, 8.507059e+37
  %v2829 = vand.u32 %v2716, 2147483648
  %v2830 = vor.u32 1.1754944e-38, %v2829
  %v2831 = vsel %vm2828, %v2830, %v2826
  %v2832 = vmul.f32 1.0, %v2831
  %v2833 = vrcp.pop %v2717
  %v2834 = vmul.f32 %v2717, %v2833
  %v2835 = vsub.f32 1.0, %v2834
  %v2836 = vmul.f32 %v2833, %v2835
  %v2837 = vadd.f32 %v2833, %v2836
  %vm2838 = vweird.f32 %v2717
  %vm2839 = vweird.f32 %v2833
  %vm2840 = vmor %vm2838, %vm2839
  %v2841 = vsel %vm2840, %v2833, %v2837
  %v2842 = vand.u32 2147483647, %v2717
  %vm2843 = vcmp.eq.f32.partialorder %v2842, 8.507059e+37
  %v2844 = vand.u32 %v2717, 2147483648
  %v2845 = vor.u32 1.1754944e-38, %v2844
  %v2846 = vsel %vm2843, %v2845, %v2841
  %v2847 = vmul.f32 1.0, %v2846
  %v2848 = vrcp.pop %v2718
  %v2849 = vmul.f32 %v2718, %v2848
  %v2850 = vsub.f32 1.0, %v2849
  %v2851 = vmul.f32 %v2848, %v2850
  %v2852 = vadd.f32 %v2848, %v2851
  %vm2853 = vweird.f32 %v2718
  %vm2854 = vweird.f32 %v2848
  %vm2855 = vmor %vm2853, %vm2854
  %v2856 = vsel %vm2855, %v2848, %v2852
  %v2857 = vand.u32 2147483647, %v2718
  %vm2858 = vcmp.eq.f32.partialorder %v2857, 8.507059e+37
  %v2859 = vand.u32 %v2718, 2147483648
  %v2860 = vor.u32 1.1754944e-38, %v2859
  %v2861 = vsel %vm2858, %v2860, %v2856
  %v2862 = vmul.f32 1.0, %v2861
  %v2863 = vrcp.pop %v2719
  %v2864 = vmul.f32 %v2719, %v2863
  %v2865 = vsub.f32 1.0, %v2864
  %v2866 = vmul.f32 %v2863, %v2865
  %v2867 = vadd.f32 %v2863, %v2866
  %vm2868 = vweird.f32 %v2719
  %vm2869 = vweird.f32 %v2863
  %vm2870 = vmor %vm2868, %vm2869
  %v2871 = vsel %vm2870, %v2863, %v2867
  %v2872 = vand.u32 2147483647, %v2719
  %vm2873 = vcmp.eq.f32.partialorder %v2872, 8.507059e+37
  %v2874 = vand.u32 %v2719, 2147483648
  %v2875 = vor.u32 1.1754944e-38, %v2874
  %v2876 = vsel %vm2873, %v2875, %v2871
  %v2877 = vmul.f32 1.0, %v2876
  %v2878 = vrcp.pop %v2720
  %v2879 = vmul.f32 %v2720, %v2878
  %v2880 = vsub.f32 1.0, %v2879
  %v2881 = vmul.f32 %v2878, %v2880
  %v2882 = vadd.f32 %v2878, %v2881
  %vm2883 = vweird.f32 %v2720
  %vm2884 = vweird.f32 %v2878
  %vm2885 = vmor %vm2883, %vm2884
  %v2886 = vsel %vm2885, %v2878, %v2882
  %v2887 = vand.u32 2147483647, %v2720
  %vm2888 = vcmp.eq.f32.partialorder %v2887, 8.507059e+37
  %v2889 = vand.u32 %v2720, 2147483648
  %v2890 = vor.u32 1.1754944e-38, %v2889
  %v2891 = vsel %vm2888, %v2890, %v2886
  %v2892 = vmul.f32 1.0, %v2891
  %v2893 = vrcp.pop %v2721
  %v2894 = vmul.f32 %v2721, %v2893
  %v2895 = vsub.f32 1.0, %v2894
  %v2896 = vmul.f32 %v2893, %v2895
  %v2897 = vadd.f32 %v2893, %v2896
  %vm2898 = vweird.f32 %v2721
  %vm2899 = vweird.f32 %v2893
  %vm2900 = vmor %vm2898, %vm2899
  %v2901 = vsel %vm2900, %v2893, %v2897
  %v2902 = vand.u32 2147483647, %v2721
  %vm2903 = vcmp.eq.f32.partialorder %v2902, 8.507059e+37
  %v2904 = vand.u32 %v2721, 2147483648
  %v2905 = vor.u32 1.1754944e-38, %v2904
  %v2906 = vsel %vm2903, %v2905, %v2901
  %v2907 = vmul.f32 1.0, %v2906
  %v2908 = vrcp.pop %v2722
  %v2909 = vmul.f32 %v2722, %v2908
  %v2910 = vsub.f32 1.0, %v2909
  %v2911 = vmul.f32 %v2908, %v2910
  %v2912 = vadd.f32 %v2908, %v2911
  %vm2913 = vweird.f32 %v2722
  %vm2914 = vweird.f32 %v2908
  %vm2915 = vmor %vm2913, %vm2914
  %v2916 = vsel %vm2915, %v2908, %v2912
  %v2917 = vand.u32 2147483647, %v2722
  %vm2918 = vcmp.eq.f32.partialorder %v2917, 8.507059e+37
  %v2919 = vand.u32 %v2722, 2147483648
  %v2920 = vor.u32 1.1754944e-38, %v2919
  %v2921 = vsel %vm2918, %v2920, %v2916
  %v2922 = vmul.f32 1.0, %v2921
  %v2923 = vrcp.pop %v2723
  %v2924 = vmul.f32 %v2723, %v2923
  %v2925 = vsub.f32 1.0, %v2924
  %v2926 = vmul.f32 %v2923, %v2925
  %v2927 = vadd.f32 %v2923, %v2926
  %vm2928 = vweird.f32 %v2723
  %vm2929 = vweird.f32 %v2923
  %vm2930 = vmor %vm2928, %vm2929
  %v2931 = vsel %vm2930, %v2923, %v2927
  %v2932 = vand.u32 2147483647, %v2723
  %vm2933 = vcmp.eq.f32.partialorder %v2932, 8.507059e+37
  %v2934 = vand.u32 %v2723, 2147483648
  %v2935 = vor.u32 1.1754944e-38, %v2934
  %v2936 = vsel %vm2933, %v2935, %v2931
  %v2937 = vmul.f32 1.0, %v2936
  %v2938 = vrcp.pop %v2724
  %v2939 = vmul.f32 %v2724, %v2938
  %v2940 = vsub.f32 1.0, %v2939
  %v2941 = vmul.f32 %v2938, %v2940
  %v2942 = vadd.f32 %v2938, %v2941
  %vm2943 = vweird.f32 %v2724
  %vm2944 = vweird.f32 %v2938
  %vm2945 = vmor %vm2943, %vm2944
  %v2946 = vsel %vm2945, %v2938, %v2942
  %v2947 = vand.u32 2147483647, %v2724
  %vm2948 = vcmp.eq.f32.partialorder %v2947, 8.507059e+37
  %v2949 = vand.u32 %v2724, 2147483648
  %v2950 = vor.u32 1.1754944e-38, %v2949
  %v2951 = vsel %vm2948, %v2950, %v2946
  %v2952 = vmul.f32 1.0, %v2951
  %v2953 = vrcp.pop %v2725
  %v2954 = vmul.f32 %v2725, %v2953
  %v2955 = vsub.f32 1.0, %v2954
  %v2956 = vmul.f32 %v2953, %v2955
  %v2957 = vadd.f32 %v2953, %v2956
  %vm2958 = vweird.f32 %v2725
  %vm2959 = vweird.f32 %v2953
  %vm2960 = vmor %vm2958, %vm2959
  %v2961 = vsel %vm2960, %v2953, %v2957
  %v2962 = vand.u32 2147483647, %v2725
  %vm2963 = vcmp.eq.f32.partialorder %v2962, 8.507059e+37
  %v2964 = vand.u32 %v2725, 2147483648
  %v2965 = vor.u32 1.1754944e-38, %v2964
  %v2966 = vsel %vm2963, %v2965, %v2961
  %v2967 = vmul.f32 1.0, %v2966
  %v2968 = vrcp.pop %v2726
  %v2969 = vmul.f32 %v2726, %v2968
  %v2970 = vsub.f32 1.0, %v2969
  %v2971 = vmul.f32 %v2968, %v2970
  %v2972 = vadd.f32 %v2968, %v2971
  %vm2973 = vweird.f32 %v2726
  %vm2974 = vweird.f32 %v2968
  %vm2975 = vmor %vm2973, %vm2974
  %v2976 = vsel %vm2975, %v2968, %v2972
  %v2977 = vand.u32 2147483647, %v2726
  %vm2978 = vcmp.eq.f32.partialorder %v2977, 8.507059e+37
  %v2979 = vand.u32 %v2726, 2147483648
  %v2980 = vor.u32 1.1754944e-38, %v2979
  %v2981 = vsel %vm2978, %v2980, %v2976
  %v2982 = vmul.f32 1.0, %v2981
  %v2983 = vrcp.pop %v2727
  %v2984 = vmul.f32 %v2727, %v2983
  %v2985 = vsub.f32 1.0, %v2984
  %v2986 = vmul.f32 %v2983, %v2985
  %v2987 = vadd.f32 %v2983, %v2986
  %vm2988 = vweird.f32 %v2727
  %vm2989 = vweird.f32 %v2983
  %vm2990 = vmor %vm2988, %vm2989
  %v2991 = vsel %vm2990, %v2983, %v2987
  %v2992 = vand.u32 2147483647, %v2727
  %vm2993 = vcmp.eq.f32.partialorder %v2992, 8.507059e+37
  %v2994 = vand.u32 %v2727, 2147483648
  %v2995 = vor.u32 1.1754944e-38, %v2994
  %v2996 = vsel %vm2993, %v2995, %v2991
  %v2997 = vmul.f32 1.0, %v2996
  %v2998 = vrcp.pop %v2728
  %v2999 = vmul.f32 %v2728, %v2998
  %v3000 = vsub.f32 1.0, %v2999
  %v3001 = vmul.f32 %v2998, %v3000
  %v3002 = vadd.f32 %v2998, %v3001
  %vm3003 = vweird.f32 %v2728
  %vm3004 = vweird.f32 %v2998
  %vm3005 = vmor %vm3003, %vm3004
  %v3006 = vsel %vm3005, %v2998, %v3002
  %v3007 = vand.u32 2147483647, %v2728
  %vm3008 = vcmp.eq.f32.partialorder %v3007, 8.507059e+37
  %v3009 = vand.u32 %v2728, 2147483648
  %v3010 = vor.u32 1.1754944e-38, %v3009
  %v3011 = vsel %vm3008, %v3010, %v3006
  %v3012 = vmul.f32 1.0, %v3011
  %v3013 = vrcp.pop %v2729
  %v3014 = vmul.f32 %v2729, %v3013
  %v3015 = vsub.f32 1.0, %v3014
  %v3016 = vmul.f32 %v3013, %v3015
  %v3017 = vadd.f32 %v3013, %v3016
  %vm3018 = vweird.f32 %v2729
  %vm3019 = vweird.f32 %v3013
  %vm3020 = vmor %vm3018, %vm3019
  %v3021 = vsel %vm3020, %v3013, %v3017
  %v3022 = vand.u32 2147483647, %v2729
  %vm3023 = vcmp.eq.f32.partialorder %v3022, 8.507059e+37
  %v3024 = vand.u32 %v2729, 2147483648
  %v3025 = vor.u32 1.1754944e-38, %v3024
  %v3026 = vsel %vm3023, %v3025, %v3021
  %v3027 = vmul.f32 1.0, %v3026
  %v3028 = vrcp.pop %v2730
  %v3029 = vmul.f32 %v2730, %v3028
  %v3030 = vsub.f32 1.0, %v3029
  %v3031 = vmul.f32 %v3028, %v3030
  %v3032 = vadd.f32 %v3028, %v3031
  %vm3033 = vweird.f32 %v2730
  %vm3034 = vweird.f32 %v3028
  %vm3035 = vmor %vm3033, %vm3034
  %v3036 = vsel %vm3035, %v3028, %v3032
  %v3037 = vand.u32 2147483647, %v2730
  %vm3038 = vcmp.eq.f32.partialorder %v3037, 8.507059e+37
  %v3039 = vand.u32 %v2730, 2147483648
  %v3040 = vor.u32 1.1754944e-38, %v3039
  %v3041 = vsel %vm3038, %v3040, %v3036
  %v3042 = vmul.f32 1.0, %v3041
  %v3043 = vrcp.pop %v2731
  %v3044 = vmul.f32 %v2731, %v3043
  %v3045 = vsub.f32 1.0, %v3044
  %v3046 = vmul.f32 %v3043, %v3045
  %v3047 = vadd.f32 %v3043, %v3046
  %vm3048 = vweird.f32 %v2731
  %vm3049 = vweird.f32 %v3043
  %vm3050 = vmor %vm3048, %vm3049
  %v3051 = vsel %vm3050, %v3043, %v3047
  %v3052 = vand.u32 2147483647, %v2731
  %vm3053 = vcmp.eq.f32.partialorder %v3052, 8.507059e+37
  %v3054 = vand.u32 %v2731, 2147483648
  %v3055 = vor.u32 1.1754944e-38, %v3054
  %v3056 = vsel %vm3053, %v3055, %v3051
  %v3057 = vmul.f32 1.0, %v3056
  %v3058 = vrcp.pop %v2732
  %v3059 = vmul.f32 %v2732, %v3058
  %v3060 = vsub.f32 1.0, %v3059
  %v3061 = vmul.f32 %v3058, %v3060
  %v3062 = vadd.f32 %v3058, %v3061
  %vm3063 = vweird.f32 %v2732
  %vm3064 = vweird.f32 %v3058
  %vm3065 = vmor %vm3063, %vm3064
  %v3066 = vsel %vm3065, %v3058, %v3062
  %v3067 = vand.u32 2147483647, %v2732
  %vm3068 = vcmp.eq.f32.partialorder %v3067, 8.507059e+37
  %v3069 = vand.u32 %v2732, 2147483648
  %v3070 = vor.u32 1.1754944e-38, %v3069
  %v3071 = vsel %vm3068, %v3070, %v3066
  %v3072 = vmul.f32 1.0, %v3071
  %v3073 = vrcp.pop %v2733
  %v3074 = vmul.f32 %v2733, %v3073
  %v3075 = vsub.f32 1.0, %v3074
  %v3076 = vmul.f32 %v3073, %v3075
  %v3077 = vadd.f32 %v3073, %v3076
  %vm3078 = vweird.f32 %v2733
  %vm3079 = vweird.f32 %v3073
  %vm3080 = vmor %vm3078, %vm3079
  %v3081 = vsel %vm3080, %v3073, %v3077
  %v3082 = vand.u32 2147483647, %v2733
  %vm3083 = vcmp.eq.f32.partialorder %v3082, 8.507059e+37
  %v3084 = vand.u32 %v2733, 2147483648
  %v3085 = vor.u32 1.1754944e-38, %v3084
  %v3086 = vsel %vm3083, %v3085, %v3081
  %v3087 = vmul.f32 1.0, %v3086
  %v3088 = vrcp.pop %v2734
  %v3089 = vmul.f32 %v2734, %v3088
  %v3090 = vsub.f32 1.0, %v3089
  %v3091 = vmul.f32 %v3088, %v3090
  %v3092 = vadd.f32 %v3088, %v3091
  %vm3093 = vweird.f32 %v2734
  %vm3094 = vweird.f32 %v3088
  %vm3095 = vmor %vm3093, %vm3094
  %v3096 = vsel %vm3095, %v3088, %v3092
  %v3097 = vand.u32 2147483647, %v2734
  %vm3098 = vcmp.eq.f32.partialorder %v3097, 8.507059e+37
  %v3099 = vand.u32 %v2734, 2147483648
  %v3100 = vor.u32 1.1754944e-38, %v3099
  %v3101 = vsel %vm3098, %v3100, %v3096
  %v3102 = vmul.f32 1.0, %v3101
  %v3103 = vrcp.pop %v2735
  %v3104 = vmul.f32 %v2735, %v3103
  %v3105 = vsub.f32 1.0, %v3104
  %v3106 = vmul.f32 %v3103, %v3105
  %v3107 = vadd.f32 %v3103, %v3106
  %vm3108 = vweird.f32 %v2735
  %vm3109 = vweird.f32 %v3103
  %vm3110 = vmor %vm3108, %vm3109
  %v3111 = vsel %vm3110, %v3103, %v3107
  %v3112 = vand.u32 2147483647, %v2735
  %vm3113 = vcmp.eq.f32.partialorder %v3112, 8.507059e+37
  %v3114 = vand.u32 %v2735, 2147483648
  %v3115 = vor.u32 1.1754944e-38, %v3114
  %v3116 = vsel %vm3113, %v3115, %v3111
  %v3117 = vmul.f32 1.0, %v3116
  %v3118 = vrcp.pop %v2736
  %v3119 = vmul.f32 %v2736, %v3118
  %v3120 = vsub.f32 1.0, %v3119
  %v3121 = vmul.f32 %v3118, %v3120
  %v3122 = vadd.f32 %v3118, %v3121
  %vm3123 = vweird.f32 %v2736
  %vm3124 = vweird.f32 %v3118
  %vm3125 = vmor %vm3123, %vm3124
  %v3126 = vsel %vm3125, %v3118, %v3122
  %v3127 = vand.u32 2147483647, %v2736
  %vm3128 = vcmp.eq.f32.partialorder %v3127, 8.507059e+37
  %v3129 = vand.u32 %v2736, 2147483648
  %v3130 = vor.u32 1.1754944e-38, %v3129
  %v3131 = vsel %vm3128, %v3130, %v3126
  %v3132 = vmul.f32 1.0, %v3131
  %v3133 = vrcp.pop %v2737
  %v3134 = vmul.f32 %v2737, %v3133
  %v3135 = vsub.f32 1.0, %v3134
  %v3136 = vmul.f32 %v3133, %v3135
  %v3137 = vadd.f32 %v3133, %v3136
  %vm3138 = vweird.f32 %v2737
  %vm3139 = vweird.f32 %v3133
  %vm3140 = vmor %vm3138, %vm3139
  %v3141 = vsel %vm3140, %v3133, %v3137
  %v3142 = vand.u32 2147483647, %v2737
  %vm3143 = vcmp.eq.f32.partialorder %v3142, 8.507059e+37
  %v3144 = vand.u32 %v2737, 2147483648
  %v3145 = vor.u32 1.1754944e-38, %v3144
  %v3146 = vsel %vm3143, %v3145, %v3141
  %v3147 = vmul.f32 1.0, %v3146
  %v3148 = vrcp.pop %v2738
  %v3149 = vmul.f32 %v2738, %v3148
  %v3150 = vsub.f32 1.0, %v3149
  %v3151 = vmul.f32 %v3148, %v3150
  %v3152 = vadd.f32 %v3148, %v3151
  %vm3153 = vweird.f32 %v2738
  %vm3154 = vweird.f32 %v3148
  %vm3155 = vmor %vm3153, %vm3154
  %v3156 = vsel %vm3155, %v3148, %v3152
  %v3157 = vand.u32 2147483647, %v2738
  %vm3158 = vcmp.eq.f32.partialorder %v3157, 8.507059e+37
  %v3159 = vand.u32 %v2738, 2147483648
  %v3160 = vor.u32 1.1754944e-38, %v3159
  %v3161 = vsel %vm3158, %v3160, %v3156
  %v3162 = vmul.f32 1.0, %v3161
  %v3163 = vrcp.pop %v2739
  %v3164 = vmul.f32 %v2739, %v3163
  %v3165 = vsub.f32 1.0, %v3164
  %v3166 = vmul.f32 %v3163, %v3165
  %v3167 = vadd.f32 %v3163, %v3166
  %vm3168 = vweird.f32 %v2739
  %vm3169 = vweird.f32 %v3163
  %vm3170 = vmor %vm3168, %vm3169
  %v3171 = vsel %vm3170, %v3163, %v3167
  %v3172 = vand.u32 2147483647, %v2739
  %vm3173 = vcmp.eq.f32.partialorder %v3172, 8.507059e+37
  %v3174 = vand.u32 %v2739, 2147483648
  %v3175 = vor.u32 1.1754944e-38, %v3174
  %v3176 = vsel %vm3173, %v3175, %v3171
  %v3177 = vmul.f32 1.0, %v3176
  %v3178 = vrcp.pop %v2740
  %v3179 = vmul.f32 %v2740, %v3178
  %v3180 = vsub.f32 1.0, %v3179
  %v3181 = vmul.f32 %v3178, %v3180
  %v3182 = vadd.f32 %v3178, %v3181
  %vm3183 = vweird.f32 %v2740
  %vm3184 = vweird.f32 %v3178
  %vm3185 = vmor %vm3183, %vm3184
  %v3186 = vsel %vm3185, %v3178, %v3182
  %v3187 = vand.u32 2147483647, %v2740
  %vm3188 = vcmp.eq.f32.partialorder %v3187, 8.507059e+37
  %v3189 = vand.u32 %v2740, 2147483648
  %v3190 = vor.u32 1.1754944e-38, %v3189
  %v3191 = vsel %vm3188, %v3190, %v3186
  %v3192 = vmul.f32 1.0, %v3191
  %v3193 = vrcp.pop %v2741
  %v3194 = vmul.f32 %v2741, %v3193
  %v3195 = vsub.f32 1.0, %v3194
  %v3196 = vmul.f32 %v3193, %v3195
  %v3197 = vadd.f32 %v3193, %v3196
  %vm3198 = vweird.f32 %v2741
  %vm3199 = vweird.f32 %v3193
  %vm3200 = vmor %vm3198, %vm3199
  %v3201 = vsel %vm3200, %v3193, %v3197
  %v3202 = vand.u32 2147483647, %v2741
  %vm3203 = vcmp.eq.f32.partialorder %v3202, 8.507059e+37
  %v3204 = vand.u32 %v2741, 2147483648
  %v3205 = vor.u32 1.1754944e-38, %v3204
  %v3206 = vsel %vm3203, %v3205, %v3201
  %v3207 = vmul.f32 1.0, %v3206
  %v3208 = vrcp.pop %v2742
  %v3209 = vmul.f32 %v2742, %v3208
  %v3210 = vsub.f32 1.0, %v3209
  %v3211 = vmul.f32 %v3208, %v3210
  %v3212 = vadd.f32 %v3208, %v3211
  %vm3213 = vweird.f32 %v2742
  %vm3214 = vweird.f32 %v3208
  %vm3215 = vmor %vm3213, %vm3214
  %v3216 = vsel %vm3215, %v3208, %v3212
  %v3217 = vand.u32 2147483647, %v2742
  %vm3218 = vcmp.eq.f32.partialorder %v3217, 8.507059e+37
  %v3219 = vand.u32 %v2742, 2147483648
  %v3220 = vor.u32 1.1754944e-38, %v3219
  %v3221 = vsel %vm3218, %v3220, %v3216
  %v3222 = vmul.f32 1.0, %v3221
  %v3223 = vsel %vm2608, %v2757, %v2511
  %v3224 = vsel %vm2608, %v2772, %v2514
  %v3225 = vsel %vm2608, %v2787, %v2517
  %v3226 = vsel %vm2608, %v2802, %v2520
  %v3227 = vsel %vm2608, %v2817, %v2523
  %v3228 = vsel %vm2608, %v2832, %v2526
  %v3229 = vsel %vm2608, %v2847, %v2529
  %v3230 = vsel %vm2608, %v2862, %v2532
  %v3231 = vsel %vm2608, %v2877, %v2535
  %v3232 = vsel %vm2608, %v2892, %v2538
  %v3233 = vsel %vm2608, %v2907, %v2541
  %v3234 = vsel %vm2608, %v2922, %v2544
  %v3235 = vsel %vm2608, %v2937, %v2547
  %v3236 = vsel %vm2608, %v2952, %v2550
  %v3237 = vsel %vm2608, %v2967, %v2553
  %v3238 = vsel %vm2608, %v2982, %v2556
  %v3239 = vsel %vm2608, %v2997, %v2559
  %v3240 = vsel %vm2608, %v3012, %v2562
  %v3241 = vsel %vm2608, %v3027, %v2565
  %v3242 = vsel %vm2608, %v3042, %v2568
  %v3243 = vsel %vm2608, %v3057, %v2571
  %v3244 = vsel %vm2608, %v3072, %v2574
  %v3245 = vsel %vm2608, %v3087, %v2577
  %v3246 = vsel %vm2608, %v3102, %v2580
  %v3247 = vsel %vm2608, %v3117, %v2583
  %v3248 = vsel %vm2608, %v3132, %v2586
  %v3249 = vsel %vm2608, %v3147, %v2589
  %v3250 = vsel %vm2608, %v3162, %v2592
  %v3251 = vsel %vm2608, %v3177, %v2595
  %v3252 = vsel %vm2608, %v3192, %v2598
  %v3253 = vsel %vm2608, %v3207, %v2601
  %v3254 = vsel %vm2608, %v3222, %v2604
  %v3255 = vmax.f32 %v2511, 0.0
  %v3256 = vmax.f32 %v2514, 0.0
  %v3257 = vmax.f32 %v2517, 0.0
  %v3258 = vmax.f32 %v2520, 0.0
  %v3259 = vmax.f32 %v2523, 0.0
  %v3260 = vmax.f32 %v2526, 0.0
  %v3261 = vmax.f32 %v2529, 0.0
  %v3262 = vmax.f32 %v2532, 0.0
  %v3263 = vmax.f32 %v2535, 0.0
  %v3264 = vmax.f32 %v2538, 0.0
  %v3265 = vmax.f32 %v2541, 0.0
  %v3266 = vmax.f32 %v2544, 0.0
  %v3267 = vmax.f32 %v2547, 0.0
  %v3268 = vmax.f32 %v2550, 0.0
  %v3269 = vmax.f32 %v2553, 0.0
  %v3270 = vmax.f32 %v2556, 0.0
  %v3271 = vmax.f32 %v2559, 0.0
  %v3272 = vmax.f32 %v2562, 0.0
  %v3273 = vmax.f32 %v2565, 0.0
  %v3274 = vmax.f32 %v2568, 0.0
  %v3275 = vmax.f32 %v2571, 0.0
  %v3276 = vmax.f32 %v2574, 0.0
  %v3277 = vmax.f32 %v2577, 0.0
  %v3278 = vmax.f32 %v2580, 0.0
  %v3279 = vmax.f32 %v2583, 0.0
  %v3280 = vmax.f32 %v2586, 0.0
  %v3281 = vmax.f32 %v2589, 0.0
  %v3282 = vmax.f32 %v2592, 0.0
  %v3283 = vmax.f32 %v2595, 0.0
  %v3284 = vmax.f32 %v2598, 0.0
  %v3285 = vmax.f32 %v2601, 0.0
  %v3286 = vmax.f32 %v2604, 0.0
  %v3287 = vsel %vm2611, %v3255, %v3223
  %v3288 = vsel %vm2611, %v3256, %v3224
  %v3289 = vsel %vm2611, %v3257, %v3225
  %v3290 = vsel %vm2611, %v3258, %v3226
  %v3291 = vsel %vm2611, %v3259, %v3227
  %v3292 = vsel %vm2611, %v3260, %v3228
  %v3293 = vsel %vm2611, %v3261, %v3229
  %v3294 = vsel %vm2611, %v3262, %v3230
  %v3295 = vsel %vm2611, %v3263, %v3231
  %v3296 = vsel %vm2611, %v3264, %v3232
  %v3297 = vsel %vm2611, %v3265, %v3233
  %v3298 = vsel %vm2611, %v3266, %v3234
  %v3299 = vsel %vm2611, %v3267, %v3235
  %v3300 = vsel %vm2611, %v3268, %v3236
  %v3301 = vsel %vm2611, %v3269, %v3237
  %v3302 = vsel %vm2611, %v3270, %v3238
  %v3303 = vsel %vm2611, %v3271, %v3239
  %v3304 = vsel %vm2611, %v3272, %v3240
  %v3305 = vsel %vm2611, %v3273, %v3241
  %v3306 = vsel %vm2611, %v3274, %v3242
  %v3307 = vsel %vm2611, %v3275, %v3243
  %v3308 = vsel %vm2611, %v3276, %v3244
  %v3309 = vsel %vm2611, %v3277, %v3245
  %v3310 = vsel %vm2611, %v3278, %v3246
  %v3311 = vsel %vm2611, %v3279, %v3247
  %v3312 = vsel %vm2611, %v3280, %v3248
  %v3313 = vsel %vm2611, %v3281, %v3249
  %v3314 = vsel %vm2611, %v3282, %v3250
  %v3315 = vsel %vm2611, %v3283, %v3251
  %v3316 = vsel %vm2611, %v3284, %v3252
  %v3317 = vsel %vm2611, %v3285, %v3253
  %v3318 = vsel %vm2611, %v3286, %v3254
  %v3319 = vmul.f32 %v2511, %v2511
  %v3320 = vmul.f32 %v2514, %v2514
  %v3321 = vmul.f32 %v2517, %v2517
  %v3322 = vmul.f32 %v2520, %v2520
  %v3323 = vmul.f32 %v2523, %v2523
  %v3324 = vmul.f32 %v2526, %v2526
  %v3325 = vmul.f32 %v2529, %v2529
  %v3326 = vmul.f32 %v2532, %v2532
  %v3327 = vmul.f32 %v2535, %v2535
  %v3328 = vmul.f32 %v2538, %v2538
  %v3329 = vmul.f32 %v2541, %v2541
  %v3330 = vmul.f32 %v2544, %v2544
  %v3331 = vmul.f32 %v2547, %v2547
  %v3332 = vmul.f32 %v2550, %v2550
  %v3333 = vmul.f32 %v2553, %v2553
  %v3334 = vmul.f32 %v2556, %v2556
  %v3335 = vmul.f32 %v2559, %v2559
  %v3336 = vmul.f32 %v2562, %v2562
  %v3337 = vmul.f32 %v2565, %v2565
  %v3338 = vmul.f32 %v2568, %v2568
  %v3339 = vmul.f32 %v2571, %v2571
  %v3340 = vmul.f32 %v2574, %v2574
  %v3341 = vmul.f32 %v2577, %v2577
  %v3342 = vmul.f32 %v2580, %v2580
  %v3343 = vmul.f32 %v2583, %v2583
  %v3344 = vmul.f32 %v2586, %v2586
  %v3345 = vmul.f32 %v2589, %v2589
  %v3346 = vmul.f32 %v2592, %v2592
  %v3347 = vmul.f32 %v2595, %v2595
  %v3348 = vmul.f32 %v2598, %v2598
  %v3349 = vmul.f32 %v2601, %v2601
  %v3350 = vmul.f32 %v2604, %v2604
  %v3351 = vsel %vm2614, %v3319, 0.0
  %v3352 = vsel %vm2614, %v3320, 0.0
  %v3353 = vsel %vm2614, %v3321, 0.0
  %v3354 = vsel %vm2614, %v3322, 0.0
  %v3355 = vsel %vm2614, %v3323, 0.0
  %v3356 = vsel %vm2614, %v3324, 0.0
  %v3357 = vsel %vm2614, %v3325, 0.0
  %v3358 = vsel %vm2614, %v3326, 0.0
  %v3359 = vsel %vm2614, %v3327, 0.0
  %v3360 = vsel %vm2614, %v3328, 0.0
  %v3361 = vsel %vm2614, %v3329, 0.0
  %v3362 = vsel %vm2614, %v3330, 0.0
  %v3363 = vsel %vm2614, %v3331, 0.0
  %v3364 = vsel %vm2614, %v3332, 0.0
  %v3365 = vsel %vm2614, %v3333, 0.0
  %v3366 = vsel %vm2614, %v3334, 0.0
  %v3367 = vsel %vm2614, %v3335, 0.0
  %v3368 = vsel %vm2614, %v3336, 0.0
  %v3369 = vsel %vm2614, %v3337, 0.0
  %v3370 = vsel %vm2614, %v3338, 0.0
  %v3371 = vsel %vm2614, %v3339, 0.0
  %v3372 = vsel %vm2614, %v3340, 0.0
  %v3373 = vsel %vm2614, %v3341, 0.0
  %v3374 = vsel %vm2614, %v3342, 0.0
  %v3375 = vsel %vm2614, %v3343, 0.0
  %v3376 = vsel %vm2614, %v3344, 0.0
  %v3377 = vsel %vm2614, %v3345, 0.0
  %v3378 = vsel %vm2614, %v3346, 0.0
  %v3379 = vsel %vm2614, %v3347, 0.0
  %v3380 = vsel %vm2614, %v3348, 0.0
  %v3381 = vsel %vm2614, %v3349, 0.0
  %v3382 = vsel %vm2614, %v3350, 0.0
  %vm3383 = vcmask 89088
  %v3384 = vsel %vm3383, %v3351, 0.0
  %3385 = vadd.xlane.f32.xlu0 %v3384
  %v3386 = vpop.xlane.xlu0 %3385
  %v3387 = vsel %vm3383, %v3352, 0.0
  %3388 = vadd.xlane.f32.xlu0 %v3387
  %v3389 = vpop.xlane.xlu0 %3388
  %v3390 = vsel %vm3383, %v3353, 0.0
  %3391 = vadd.xlane.f32.xlu0 %v3390
  %v3392 = vpop.xlane.xlu0 %3391
  %v3393 = vsel %vm3383, %v3354, 0.0
  %3394 = vadd.xlane.f32.xlu0 %v3393
  %v3395 = vpop.xlane.xlu0 %3394
  %v3396 = vsel %vm3383, %v3355, 0.0
  %3397 = vadd.xlane.f32.xlu0 %v3396
  %v3398 = vpop.xlane.xlu0 %3397
  %v3399 = vsel %vm3383, %v3356, 0.0
  %3400 = vadd.xlane.f32.xlu0 %v3399
  %v3401 = vpop.xlane.xlu0 %3400
  %v3402 = vsel %vm3383, %v3357, 0.0
  %3403 = vadd.xlane.f32.xlu0 %v3402
  %v3404 = vpop.xlane.xlu0 %3403
  %v3405 = vsel %vm3383, %v3358, 0.0
  %3406 = vadd.xlane.f32.xlu0 %v3405
  %v3407 = vpop.xlane.xlu0 %3406
  %v3408 = vsel %vm3383, %v3359, 0.0
  %3409 = vadd.xlane.f32.xlu0 %v3408
  %v3410 = vpop.xlane.xlu0 %3409
  %v3411 = vsel %vm3383, %v3360, 0.0
  %3412 = vadd.xlane.f32.xlu0 %v3411
  %v3413 = vpop.xlane.xlu0 %3412
  %v3414 = vsel %vm3383, %v3361, 0.0
  %3415 = vadd.xlane.f32.xlu0 %v3414
  %v3416 = vpop.xlane.xlu0 %3415
  %v3417 = vsel %vm3383, %v3362, 0.0
  %3418 = vadd.xlane.f32.xlu0 %v3417
  %v3419 = vpop.xlane.xlu0 %3418
  %v3420 = vsel %vm3383, %v3363, 0.0
  %3421 = vadd.xlane.f32.xlu0 %v3420
  %v3422 = vpop.xlane.xlu0 %3421
  %v3423 = vsel %vm3383, %v3364, 0.0
  %3424 = vadd.xlane.f32.xlu0 %v3423
  %v3425 = vpop.xlane.xlu0 %3424
  %v3426 = vsel %vm3383, %v3365, 0.0
  %3427 = vadd.xlane.f32.xlu0 %v3426
  %v3428 = vpop.xlane.xlu0 %3427
  %v3429 = vsel %vm3383, %v3366, 0.0
  %3430 = vadd.xlane.f32.xlu0 %v3429
  %v3431 = vpop.xlane.xlu0 %3430
  %v3432 = vsel %vm3383, %v3367, 0.0
  %3433 = vadd.xlane.f32.xlu0 %v3432
  %v3434 = vpop.xlane.xlu0 %3433
  %v3435 = vsel %vm3383, %v3368, 0.0
  %3436 = vadd.xlane.f32.xlu0 %v3435
  %v3437 = vpop.xlane.xlu0 %3436
  %v3438 = vsel %vm3383, %v3369, 0.0
  %3439 = vadd.xlane.f32.xlu0 %v3438
  %v3440 = vpop.xlane.xlu0 %3439
  %v3441 = vsel %vm3383, %v3370, 0.0
  %3442 = vadd.xlane.f32.xlu0 %v3441
  %v3443 = vpop.xlane.xlu0 %3442
  %v3444 = vsel %vm3383, %v3371, 0.0
  %3445 = vadd.xlane.f32.xlu0 %v3444
  %v3446 = vpop.xlane.xlu0 %3445
  %v3447 = vsel %vm3383, %v3372, 0.0
  %3448 = vadd.xlane.f32.xlu0 %v3447
  %v3449 = vpop.xlane.xlu0 %3448
  %v3450 = vsel %vm3383, %v3373, 0.0
  %3451 = vadd.xlane.f32.xlu0 %v3450
  %v3452 = vpop.xlane.xlu0 %3451
  %v3453 = vsel %vm3383, %v3374, 0.0
  %3454 = vadd.xlane.f32.xlu0 %v3453
  %v3455 = vpop.xlane.xlu0 %3454
  %v3456 = vsel %vm3383, %v3375, 0.0
  %3457 = vadd.xlane.f32.xlu0 %v3456
  %v3458 = vpop.xlane.xlu0 %3457
  %v3459 = vsel %vm3383, %v3376, 0.0
  %3460 = vadd.xlane.f32.xlu0 %v3459
  %v3461 = vpop.xlane.xlu0 %3460
  %v3462 = vsel %vm3383, %v3377, 0.0
  %3463 = vadd.xlane.f32.xlu0 %v3462
  %v3464 = vpop.xlane.xlu0 %3463
  %v3465 = vsel %vm3383, %v3378, 0.0
  %3466 = vadd.xlane.f32.xlu0 %v3465
  %v3467 = vpop.xlane.xlu0 %3466
  %v3468 = vsel %vm3383, %v3379, 0.0
  %3469 = vadd.xlane.f32.xlu0 %v3468
  %v3470 = vpop.xlane.xlu0 %3469
  %v3471 = vsel %vm3383, %v3380, 0.0
  %3472 = vadd.xlane.f32.xlu0 %v3471
  %v3473 = vpop.xlane.xlu0 %3472
  %v3474 = vsel %vm3383, %v3381, 0.0
  %3475 = vadd.xlane.f32.xlu0 %v3474
  %v3476 = vpop.xlane.xlu0 %3475
  %v3477 = vsel %vm3383, %v3382, 0.0
  %3478 = vadd.xlane.f32.xlu0 %v3477
  %v3479 = vpop.xlane.xlu0 %3478
  %v3480 = vmax.f32 %v3386, 1e-24
  %v3481 = vmax.f32 %v3389, 1e-24
  %v3482 = vmax.f32 %v3392, 1e-24
  %v3483 = vmax.f32 %v3395, 1e-24
  %v3484 = vmax.f32 %v3398, 1e-24
  %v3485 = vmax.f32 %v3401, 1e-24
  %v3486 = vmax.f32 %v3404, 1e-24
  %v3487 = vmax.f32 %v3407, 1e-24
  %v3488 = vmax.f32 %v3410, 1e-24
  %v3489 = vmax.f32 %v3413, 1e-24
  %v3490 = vmax.f32 %v3416, 1e-24
  %v3491 = vmax.f32 %v3419, 1e-24
  %v3492 = vmax.f32 %v3422, 1e-24
  %v3493 = vmax.f32 %v3425, 1e-24
  %v3494 = vmax.f32 %v3428, 1e-24
  %v3495 = vmax.f32 %v3431, 1e-24
  %v3496 = vmax.f32 %v3434, 1e-24
  %v3497 = vmax.f32 %v3437, 1e-24
  %v3498 = vmax.f32 %v3440, 1e-24
  %v3499 = vmax.f32 %v3443, 1e-24
  %v3500 = vmax.f32 %v3446, 1e-24
  %v3501 = vmax.f32 %v3449, 1e-24
  %v3502 = vmax.f32 %v3452, 1e-24
  %v3503 = vmax.f32 %v3455, 1e-24
  %v3504 = vmax.f32 %v3458, 1e-24
  %v3505 = vmax.f32 %v3461, 1e-24
  %v3506 = vmax.f32 %v3464, 1e-24
  %v3507 = vmax.f32 %v3467, 1e-24
  %v3508 = vmax.f32 %v3470, 1e-24
  %v3509 = vmax.f32 %v3473, 1e-24
  %v3510 = vmax.f32 %v3476, 1e-24
  %v3511 = vmax.f32 %v3479, 1e-24
  %v3512 = vrsqrt.pop %v3480
  %v3513 = vmul.f32 %v3512, %v3480
  %v3514 = vmul.f32 %v3513, %v3512
  %v3515 = vmul.f32 0.5, %v3514
  %v3516 = vsub.f32 1.5, %v3515
  %v3517 = vmul.f32 %v3512, %v3516
  %vm3518 = vweird.f32 %v3480
  %vm3519 = vweird.f32 %v3512
  %vm3520 = vmor %vm3518, %vm3519
  %v3521 = vsel %vm3520, %v3512, %v3517
  %v3522 = vrsqrt.pop %v3481
  %v3523 = vmul.f32 %v3522, %v3481
  %v3524 = vmul.f32 %v3523, %v3522
  %v3525 = vmul.f32 0.5, %v3524
  %v3526 = vsub.f32 1.5, %v3525
  %v3527 = vmul.f32 %v3522, %v3526
  %vm3528 = vweird.f32 %v3481
  %vm3529 = vweird.f32 %v3522
  %vm3530 = vmor %vm3528, %vm3529
  %v3531 = vsel %vm3530, %v3522, %v3527
  %v3532 = vrsqrt.pop %v3482
  %v3533 = vmul.f32 %v3532, %v3482
  %v3534 = vmul.f32 %v3533, %v3532
  %v3535 = vmul.f32 0.5, %v3534
  %v3536 = vsub.f32 1.5, %v3535
  %v3537 = vmul.f32 %v3532, %v3536
  %vm3538 = vweird.f32 %v3482
  %vm3539 = vweird.f32 %v3532
  %vm3540 = vmor %vm3538, %vm3539
  %v3541 = vsel %vm3540, %v3532, %v3537
  %v3542 = vrsqrt.pop %v3483
  %v3543 = vmul.f32 %v3542, %v3483
  %v3544 = vmul.f32 %v3543, %v3542
  %v3545 = vmul.f32 0.5, %v3544
  %v3546 = vsub.f32 1.5, %v3545
  %v3547 = vmul.f32 %v3542, %v3546
  %vm3548 = vweird.f32 %v3483
  %vm3549 = vweird.f32 %v3542
  %vm3550 = vmor %vm3548, %vm3549
  %v3551 = vsel %vm3550, %v3542, %v3547
  %v3552 = vrsqrt.pop %v3484
  %v3553 = vmul.f32 %v3552, %v3484
  %v3554 = vmul.f32 %v3553, %v3552
  %v3555 = vmul.f32 0.5, %v3554
  %v3556 = vsub.f32 1.5, %v3555
  %v3557 = vmul.f32 %v3552, %v3556
  %vm3558 = vweird.f32 %v3484
  %vm3559 = vweird.f32 %v3552
  %vm3560 = vmor %vm3558, %vm3559
  %v3561 = vsel %vm3560, %v3552, %v3557
  %v3562 = vrsqrt.pop %v3485
  %v3563 = vmul.f32 %v3562, %v3485
  %v3564 = vmul.f32 %v3563, %v3562
  %v3565 = vmul.f32 0.5, %v3564
  %v3566 = vsub.f32 1.5, %v3565
  %v3567 = vmul.f32 %v3562, %v3566
  %vm3568 = vweird.f32 %v3485
  %vm3569 = vweird.f32 %v3562
  %vm3570 = vmor %vm3568, %vm3569
  %v3571 = vsel %vm3570, %v3562, %v3567
  %v3572 = vrsqrt.pop %v3486
  %v3573 = vmul.f32 %v3572, %v3486
  %v3574 = vmul.f32 %v3573, %v3572
  %v3575 = vmul.f32 0.5, %v3574
  %v3576 = vsub.f32 1.5, %v3575
  %v3577 = vmul.f32 %v3572, %v3576
  %vm3578 = vweird.f32 %v3486
  %vm3579 = vweird.f32 %v3572
  %vm3580 = vmor %vm3578, %vm3579
  %v3581 = vsel %vm3580, %v3572, %v3577
  %v3582 = vrsqrt.pop %v3487
  %v3583 = vmul.f32 %v3582, %v3487
  %v3584 = vmul.f32 %v3583, %v3582
  %v3585 = vmul.f32 0.5, %v3584
  %v3586 = vsub.f32 1.5, %v3585
  %v3587 = vmul.f32 %v3582, %v3586
  %vm3588 = vweird.f32 %v3487
  %vm3589 = vweird.f32 %v3582
  %vm3590 = vmor %vm3588, %vm3589
  %v3591 = vsel %vm3590, %v3582, %v3587
  %v3592 = vrsqrt.pop %v3488
  %v3593 = vmul.f32 %v3592, %v3488
  %v3594 = vmul.f32 %v3593, %v3592
  %v3595 = vmul.f32 0.5, %v3594
  %v3596 = vsub.f32 1.5, %v3595
  %v3597 = vmul.f32 %v3592, %v3596
  %vm3598 = vweird.f32 %v3488
  %vm3599 = vweird.f32 %v3592
  %vm3600 = vmor %vm3598, %vm3599
  %v3601 = vsel %vm3600, %v3592, %v3597
  %v3602 = vrsqrt.pop %v3489
  %v3603 = vmul.f32 %v3602, %v3489
  %v3604 = vmul.f32 %v3603, %v3602
  %v3605 = vmul.f32 0.5, %v3604
  %v3606 = vsub.f32 1.5, %v3605
  %v3607 = vmul.f32 %v3602, %v3606
  %vm3608 = vweird.f32 %v3489
  %vm3609 = vweird.f32 %v3602
  %vm3610 = vmor %vm3608, %vm3609
  %v3611 = vsel %vm3610, %v3602, %v3607
  %v3612 = vrsqrt.pop %v3490
  %v3613 = vmul.f32 %v3612, %v3490
  %v3614 = vmul.f32 %v3613, %v3612
  %v3615 = vmul.f32 0.5, %v3614
  %v3616 = vsub.f32 1.5, %v3615
  %v3617 = vmul.f32 %v3612, %v3616
  %vm3618 = vweird.f32 %v3490
  %vm3619 = vweird.f32 %v3612
  %vm3620 = vmor %vm3618, %vm3619
  %v3621 = vsel %vm3620, %v3612, %v3617
  %v3622 = vrsqrt.pop %v3491
  %v3623 = vmul.f32 %v3622, %v3491
  %v3624 = vmul.f32 %v3623, %v3622
  %v3625 = vmul.f32 0.5, %v3624
  %v3626 = vsub.f32 1.5, %v3625
  %v3627 = vmul.f32 %v3622, %v3626
  %vm3628 = vweird.f32 %v3491
  %vm3629 = vweird.f32 %v3622
  %vm3630 = vmor %vm3628, %vm3629
  %v3631 = vsel %vm3630, %v3622, %v3627
  %v3632 = vrsqrt.pop %v3492
  %v3633 = vmul.f32 %v3632, %v3492
  %v3634 = vmul.f32 %v3633, %v3632
  %v3635 = vmul.f32 0.5, %v3634
  %v3636 = vsub.f32 1.5, %v3635
  %v3637 = vmul.f32 %v3632, %v3636
  %vm3638 = vweird.f32 %v3492
  %vm3639 = vweird.f32 %v3632
  %vm3640 = vmor %vm3638, %vm3639
  %v3641 = vsel %vm3640, %v3632, %v3637
  %v3642 = vrsqrt.pop %v3493
  %v3643 = vmul.f32 %v3642, %v3493
  %v3644 = vmul.f32 %v3643, %v3642
  %v3645 = vmul.f32 0.5, %v3644
  %v3646 = vsub.f32 1.5, %v3645
  %v3647 = vmul.f32 %v3642, %v3646
  %vm3648 = vweird.f32 %v3493
  %vm3649 = vweird.f32 %v3642
  %vm3650 = vmor %vm3648, %vm3649
  %v3651 = vsel %vm3650, %v3642, %v3647
  %v3652 = vrsqrt.pop %v3494
  %v3653 = vmul.f32 %v3652, %v3494
  %v3654 = vmul.f32 %v3653, %v3652
  %v3655 = vmul.f32 0.5, %v3654
  %v3656 = vsub.f32 1.5, %v3655
  %v3657 = vmul.f32 %v3652, %v3656
  %vm3658 = vweird.f32 %v3494
  %vm3659 = vweird.f32 %v3652
  %vm3660 = vmor %vm3658, %vm3659
  %v3661 = vsel %vm3660, %v3652, %v3657
  %v3662 = vrsqrt.pop %v3495
  %v3663 = vmul.f32 %v3662, %v3495
  %v3664 = vmul.f32 %v3663, %v3662
  %v3665 = vmul.f32 0.5, %v3664
  %v3666 = vsub.f32 1.5, %v3665
  %v3667 = vmul.f32 %v3662, %v3666
  %vm3668 = vweird.f32 %v3495
  %vm3669 = vweird.f32 %v3662
  %vm3670 = vmor %vm3668, %vm3669
  %v3671 = vsel %vm3670, %v3662, %v3667
  %v3672 = vrsqrt.pop %v3496
  %v3673 = vmul.f32 %v3672, %v3496
  %v3674 = vmul.f32 %v3673, %v3672
  %v3675 = vmul.f32 0.5, %v3674
  %v3676 = vsub.f32 1.5, %v3675
  %v3677 = vmul.f32 %v3672, %v3676
  %vm3678 = vweird.f32 %v3496
  %vm3679 = vweird.f32 %v3672
  %vm3680 = vmor %vm3678, %vm3679
  %v3681 = vsel %vm3680, %v3672, %v3677
  %v3682 = vrsqrt.pop %v3497
  %v3683 = vmul.f32 %v3682, %v3497
  %v3684 = vmul.f32 %v3683, %v3682
  %v3685 = vmul.f32 0.5, %v3684
  %v3686 = vsub.f32 1.5, %v3685
  %v3687 = vmul.f32 %v3682, %v3686
  %vm3688 = vweird.f32 %v3497
  %vm3689 = vweird.f32 %v3682
  %vm3690 = vmor %vm3688, %vm3689
  %v3691 = vsel %vm3690, %v3682, %v3687
  %v3692 = vrsqrt.pop %v3498
  %v3693 = vmul.f32 %v3692, %v3498
  %v3694 = vmul.f32 %v3693, %v3692
  %v3695 = vmul.f32 0.5, %v3694
  %v3696 = vsub.f32 1.5, %v3695
  %v3697 = vmul.f32 %v3692, %v3696
  %vm3698 = vweird.f32 %v3498
  %vm3699 = vweird.f32 %v3692
  %vm3700 = vmor %vm3698, %vm3699
  %v3701 = vsel %vm3700, %v3692, %v3697
  %v3702 = vrsqrt.pop %v3499
  %v3703 = vmul.f32 %v3702, %v3499
  %v3704 = vmul.f32 %v3703, %v3702
  %v3705 = vmul.f32 0.5, %v3704
  %v3706 = vsub.f32 1.5, %v3705
  %v3707 = vmul.f32 %v3702, %v3706
  %vm3708 = vweird.f32 %v3499
  %vm3709 = vweird.f32 %v3702
  %vm3710 = vmor %vm3708, %vm3709
  %v3711 = vsel %vm3710, %v3702, %v3707
  %v3712 = vrsqrt.pop %v3500
  %v3713 = vmul.f32 %v3712, %v3500
  %v3714 = vmul.f32 %v3713, %v3712
  %v3715 = vmul.f32 0.5, %v3714
  %v3716 = vsub.f32 1.5, %v3715
  %v3717 = vmul.f32 %v3712, %v3716
  %vm3718 = vweird.f32 %v3500
  %vm3719 = vweird.f32 %v3712
  %vm3720 = vmor %vm3718, %vm3719
  %v3721 = vsel %vm3720, %v3712, %v3717
  %v3722 = vrsqrt.pop %v3501
  %v3723 = vmul.f32 %v3722, %v3501
  %v3724 = vmul.f32 %v3723, %v3722
  %v3725 = vmul.f32 0.5, %v3724
  %v3726 = vsub.f32 1.5, %v3725
  %v3727 = vmul.f32 %v3722, %v3726
  %vm3728 = vweird.f32 %v3501
  %vm3729 = vweird.f32 %v3722
  %vm3730 = vmor %vm3728, %vm3729
  %v3731 = vsel %vm3730, %v3722, %v3727
  %v3732 = vrsqrt.pop %v3502
  %v3733 = vmul.f32 %v3732, %v3502
  %v3734 = vmul.f32 %v3733, %v3732
  %v3735 = vmul.f32 0.5, %v3734
  %v3736 = vsub.f32 1.5, %v3735
  %v3737 = vmul.f32 %v3732, %v3736
  %vm3738 = vweird.f32 %v3502
  %vm3739 = vweird.f32 %v3732
  %vm3740 = vmor %vm3738, %vm3739
  %v3741 = vsel %vm3740, %v3732, %v3737
  %v3742 = vrsqrt.pop %v3503
  %v3743 = vmul.f32 %v3742, %v3503
  %v3744 = vmul.f32 %v3743, %v3742
  %v3745 = vmul.f32 0.5, %v3744
  %v3746 = vsub.f32 1.5, %v3745
  %v3747 = vmul.f32 %v3742, %v3746
  %vm3748 = vweird.f32 %v3503
  %vm3749 = vweird.f32 %v3742
  %vm3750 = vmor %vm3748, %vm3749
  %v3751 = vsel %vm3750, %v3742, %v3747
  %v3752 = vrsqrt.pop %v3504
  %v3753 = vmul.f32 %v3752, %v3504
  %v3754 = vmul.f32 %v3753, %v3752
  %v3755 = vmul.f32 0.5, %v3754
  %v3756 = vsub.f32 1.5, %v3755
  %v3757 = vmul.f32 %v3752, %v3756
  %vm3758 = vweird.f32 %v3504
  %vm3759 = vweird.f32 %v3752
  %vm3760 = vmor %vm3758, %vm3759
  %v3761 = vsel %vm3760, %v3752, %v3757
  %v3762 = vrsqrt.pop %v3505
  %v3763 = vmul.f32 %v3762, %v3505
  %v3764 = vmul.f32 %v3763, %v3762
  %v3765 = vmul.f32 0.5, %v3764
  %v3766 = vsub.f32 1.5, %v3765
  %v3767 = vmul.f32 %v3762, %v3766
  %vm3768 = vweird.f32 %v3505
  %vm3769 = vweird.f32 %v3762
  %vm3770 = vmor %vm3768, %vm3769
  %v3771 = vsel %vm3770, %v3762, %v3767
  %v3772 = vrsqrt.pop %v3506
  %v3773 = vmul.f32 %v3772, %v3506
  %v3774 = vmul.f32 %v3773, %v3772
  %v3775 = vmul.f32 0.5, %v3774
  %v3776 = vsub.f32 1.5, %v3775
  %v3777 = vmul.f32 %v3772, %v3776
  %vm3778 = vweird.f32 %v3506
  %vm3779 = vweird.f32 %v3772
  %vm3780 = vmor %vm3778, %vm3779
  %v3781 = vsel %vm3780, %v3772, %v3777
  %v3782 = vrsqrt.pop %v3507
  %v3783 = vmul.f32 %v3782, %v3507
  %v3784 = vmul.f32 %v3783, %v3782
  %v3785 = vmul.f32 0.5, %v3784
  %v3786 = vsub.f32 1.5, %v3785
  %v3787 = vmul.f32 %v3782, %v3786
  %vm3788 = vweird.f32 %v3507
  %vm3789 = vweird.f32 %v3782
  %vm3790 = vmor %vm3788, %vm3789
  %v3791 = vsel %vm3790, %v3782, %v3787
  %v3792 = vrsqrt.pop %v3508
  %v3793 = vmul.f32 %v3792, %v3508
  %v3794 = vmul.f32 %v3793, %v3792
  %v3795 = vmul.f32 0.5, %v3794
  %v3796 = vsub.f32 1.5, %v3795
  %v3797 = vmul.f32 %v3792, %v3796
  %vm3798 = vweird.f32 %v3508
  %vm3799 = vweird.f32 %v3792
  %vm3800 = vmor %vm3798, %vm3799
  %v3801 = vsel %vm3800, %v3792, %v3797
  %v3802 = vrsqrt.pop %v3509
  %v3803 = vmul.f32 %v3802, %v3509
  %v3804 = vmul.f32 %v3803, %v3802
  %v3805 = vmul.f32 0.5, %v3804
  %v3806 = vsub.f32 1.5, %v3805
  %v3807 = vmul.f32 %v3802, %v3806
  %vm3808 = vweird.f32 %v3509
  %vm3809 = vweird.f32 %v3802
  %vm3810 = vmor %vm3808, %vm3809
  %v3811 = vsel %vm3810, %v3802, %v3807
  %v3812 = vrsqrt.pop %v3510
  %v3813 = vmul.f32 %v3812, %v3510
  %v3814 = vmul.f32 %v3813, %v3812
  %v3815 = vmul.f32 0.5, %v3814
  %v3816 = vsub.f32 1.5, %v3815
  %v3817 = vmul.f32 %v3812, %v3816
  %vm3818 = vweird.f32 %v3510
  %vm3819 = vweird.f32 %v3812
  %vm3820 = vmor %vm3818, %vm3819
  %v3821 = vsel %vm3820, %v3812, %v3817
  %v3822 = vrsqrt.pop %v3511
  %v3823 = vmul.f32 %v3822, %v3511
  %v3824 = vmul.f32 %v3823, %v3822
  %v3825 = vmul.f32 0.5, %v3824
  %v3826 = vsub.f32 1.5, %v3825
  %v3827 = vmul.f32 %v3822, %v3826
  %vm3828 = vweird.f32 %v3511
  %vm3829 = vweird.f32 %v3822
  %vm3830 = vmor %vm3828, %vm3829
  %v3831 = vsel %vm3830, %v3822, %v3827
  %v3832 = vmul.f32 %v2511, %v3521
  %v3833 = vmul.f32 %v2514, %v3531
  %v3834 = vmul.f32 %v2517, %v3541
  %v3835 = vmul.f32 %v2520, %v3551
  %v3836 = vmul.f32 %v2523, %v3561
  %v3837 = vmul.f32 %v2526, %v3571
  %v3838 = vmul.f32 %v2529, %v3581
  %v3839 = vmul.f32 %v2532, %v3591
  %v3840 = vmul.f32 %v2535, %v3601
  %v3841 = vmul.f32 %v2538, %v3611
  %v3842 = vmul.f32 %v2541, %v3621
  %v3843 = vmul.f32 %v2544, %v3631
  %v3844 = vmul.f32 %v2547, %v3641
  %v3845 = vmul.f32 %v2550, %v3651
  %v3846 = vmul.f32 %v2553, %v3661
  %v3847 = vmul.f32 %v2556, %v3671
  %v3848 = vmul.f32 %v2559, %v3681
  %v3849 = vmul.f32 %v2562, %v3691
  %v3850 = vmul.f32 %v2565, %v3701
  %v3851 = vmul.f32 %v2568, %v3711
  %v3852 = vmul.f32 %v2571, %v3721
  %v3853 = vmul.f32 %v2574, %v3731
  %v3854 = vmul.f32 %v2577, %v3741
  %v3855 = vmul.f32 %v2580, %v3751
  %v3856 = vmul.f32 %v2583, %v3761
  %v3857 = vmul.f32 %v2586, %v3771
  %v3858 = vmul.f32 %v2589, %v3781
  %v3859 = vmul.f32 %v2592, %v3791
  %v3860 = vmul.f32 %v2595, %v3801
  %v3861 = vmul.f32 %v2598, %v3811
  %v3862 = vmul.f32 %v2601, %v3821
  %v3863 = vmul.f32 %v2604, %v3831
  %v3864 = vsel %vm2614, %v3832, %v3287
  %v3865 = vsel %vm2614, %v3833, %v3288
  %v3866 = vsel %vm2614, %v3834, %v3289
  %v3867 = vsel %vm2614, %v3835, %v3290
  %v3868 = vsel %vm2614, %v3836, %v3291
  %v3869 = vsel %vm2614, %v3837, %v3292
  %v3870 = vsel %vm2614, %v3838, %v3293
  %v3871 = vsel %vm2614, %v3839, %v3294
  %v3872 = vsel %vm2614, %v3840, %v3295
  %v3873 = vsel %vm2614, %v3841, %v3296
  %v3874 = vsel %vm2614, %v3842, %v3297
  %v3875 = vsel %vm2614, %v3843, %v3298
  %v3876 = vsel %vm2614, %v3844, %v3299
  %v3877 = vsel %vm2614, %v3845, %v3300
  %v3878 = vsel %vm2614, %v3846, %v3301
  %v3879 = vsel %vm2614, %v3847, %v3302
  %v3880 = vsel %vm2614, %v3848, %v3303
  %v3881 = vsel %vm2614, %v3849, %v3304
  %v3882 = vsel %vm2614, %v3850, %v3305
  %v3883 = vsel %vm2614, %v3851, %v3306
  %v3884 = vsel %vm2614, %v3852, %v3307
  %v3885 = vsel %vm2614, %v3853, %v3308
  %v3886 = vsel %vm2614, %v3854, %v3309
  %v3887 = vsel %vm2614, %v3855, %v3310
  %v3888 = vsel %vm2614, %v3856, %v3311
  %v3889 = vsel %vm2614, %v3857, %v3312
  %v3890 = vsel %vm2614, %v3858, %v3313
  %v3891 = vsel %vm2614, %v3859, %v3314
  %v3892 = vsel %vm2614, %v3860, %v3315
  %v3893 = vsel %vm2614, %v3861, %v3316
  %v3894 = vsel %vm2614, %v3862, %v3317
  %v3895 = vsel %vm2614, %v3863, %v3318
  %3896 = vst.msk [vmem:[%s5] sm:$0xff] %vm3383, %v3864
  %3897 = vst.msk [vmem:[%s5 + $0x8] sm:$0xff] %vm3383, %v3865
  %3898 = vst.msk [vmem:[%s5 + $0x10] sm:$0xff] %vm3383, %v3866
  %3899 = vst.msk [vmem:[%s5 + $0x18] sm:$0xff] %vm3383, %v3867
  %3900 = vst.msk [vmem:[%s5 + $0x20] sm:$0xff] %vm3383, %v3868
  %3901 = vst.msk [vmem:[%s5 + $0x28] sm:$0xff] %vm3383, %v3869
  %3902 = vst.msk [vmem:[%s5 + $0x30] sm:$0xff] %vm3383, %v3870
  %3903 = vst.msk [vmem:[%s5 + $0x38] sm:$0xff] %vm3383, %v3871
  %3904 = vst.msk [vmem:[%s5 + $0x40] sm:$0xff] %vm3383, %v3872
  %3905 = vst.msk [vmem:[%s5 + $0x48] sm:$0xff] %vm3383, %v3873
  %3906 = vst.msk [vmem:[%s5 + $0x50] sm:$0xff] %vm3383, %v3874
  %3907 = vst.msk [vmem:[%s5 + $0x58] sm:$0xff] %vm3383, %v3875
  %3908 = vst.msk [vmem:[%s5 + $0x60] sm:$0xff] %vm3383, %v3876
  %3909 = vst.msk [vmem:[%s5 + $0x68] sm:$0xff] %vm3383, %v3877
  %3910 = vst.msk [vmem:[%s5 + $0x70] sm:$0xff] %vm3383, %v3878
  %3911 = vst.msk [vmem:[%s5 + $0x78] sm:$0xff] %vm3383, %v3879
  %3912 = vst.msk [vmem:[%s5 + $0x80] sm:$0xff] %vm3383, %v3880
  %3913 = vst.msk [vmem:[%s5 + $0x88] sm:$0xff] %vm3383, %v3881
  %3914 = vst.msk [vmem:[%s5 + $0x90] sm:$0xff] %vm3383, %v3882
  %3915 = vst.msk [vmem:[%s5 + $0x98] sm:$0xff] %vm3383, %v3883
  %3916 = vst.msk [vmem:[%s5 + $0xa0] sm:$0xff] %vm3383, %v3884
  %3917 = vst.msk [vmem:[%s5 + $0xa8] sm:$0xff] %vm3383, %v3885
  %3918 = vst.msk [vmem:[%s5 + $0xb0] sm:$0xff] %vm3383, %v3886
  %3919 = vst.msk [vmem:[%s5 + $0xb8] sm:$0xff] %vm3383, %v3887
  %3920 = vst.msk [vmem:[%s5 + $0xc0] sm:$0xff] %vm3383, %v3888
  %3921 = vst.msk [vmem:[%s5 + $0xc8] sm:$0xff] %vm3383, %v3889
  %3922 = vst.msk [vmem:[%s5 + $0xd0] sm:$0xff] %vm3383, %v3890
  %3923 = vst.msk [vmem:[%s5 + $0xd8] sm:$0xff] %vm3383, %v3891
  %3924 = vst.msk [vmem:[%s5 + $0xe0] sm:$0xff] %vm3383, %v3892
  %3925 = vst.msk [vmem:[%s5 + $0xe8] sm:$0xff] %vm3383, %v3893
  %3926 = vst.msk [vmem:[%s5 + $0xf0] sm:$0xff] %vm3383, %v3894
  %3927 = vst.msk [vmem:[%s5 + $0xf8] sm:$0xff] %vm3383, %v3895
  // Predicated region
  $region22: #{tpu_custom_call.1} parent=0 // pred_check
    _
  $region23: #{tpu_custom_call.1} parent=0 // pred_check_branch
    %3929 = sbr.rel (0) target = $region25
  $region24: #{tpu_custom_call.1} parent=0 // pred_region
    _
  $region25: #{tpu_custom_call.1} parent=0 // pred_fallthru
    _
  // Predicated region
  $region26: #{tpu_custom_call.1} parent=0 // pred_check
    _
  $region27: #{tpu_custom_call.1} parent=0 // pred_check_branch
    %3931 = sbr.rel (0) target = $region29
  $region28: #{tpu_custom_call.1} parent=0 // pred_region
    _
  $region29: #{tpu_custom_call.1} parent=0 // pred_fallthru
    _

</llo_original>
